<compile_context>
chip_gen: v6e
topology: v6e:2x2x1
jax: 0.10.0
libtpu: 0.0.40
codegen_flags: <defaults>
</compile_context>

<pallas_src>
import jax
import jax.numpy as jnp
from jax import lax
from jax.experimental import pallas as pl
from jax.experimental.pallas import tpu as pltpu


def _round_up(x, m):
    return ((x + m - 1) // m) * m


def gru_chunk_kernel(maxlen_ref, xemb_ref, len_ref, wih_ref, whh_ref, bgi_ref,
                     bhn_ref, h_ref, gi_scr):
    """One grid step = one (batch tile b, time chunk c); grid = (num_btiles, num_chunks).

    maxlen_ref : (num_btiles,) i32 SMEM   per-tile max length (scalar prefetch)
    xemb_ref   : (tc, bt, Epad) bf16      streamed embedded-input chunk
    len_ref    : (bt, 1) i32              sequence lengths for this batch tile (resident)
    wih_ref    : (Epad, 3*Hpad) bf16      input-to-hidden weights, per-gate padded (resident)
    whh_ref    : (Hpad, 3*Hpad) bf16      hidden-to-hidden weights, per-gate padded (resident)
    bgi_ref    : (1, 3*Hpad) f32          b_ih (all gates) + b_hh (r,z gates), folded into gi
    bhn_ref    : (1, Hpad) f32            b_hh of the "n" gate (added before r*)
    h_ref      : (bt, Hpad) f32           hidden state; VMEM-resident across the time axis
    gi_scr     : (tc, bt, 3*Hpad) f32     per-chunk input projection scratch
    """
    b = pl.program_id(0)
    c = pl.program_id(1)
    tc, bt, epad = xemb_ref.shape
    hpad = h_ref.shape[1]

    @pl.when(c == 0)
    def _():
        h_ref[...] = jnp.zeros_like(h_ref)

    t0 = c * tc

    # Skip the whole chunk once every sequence in this batch tile has ended.
    @pl.when(maxlen_ref[b] > t0)
    def _():
        # Fused input projection for the whole chunk (off the serial chain):
        # one big bf16 MXU matmul with f32 accumulation, biases folded in.
        x2 = xemb_ref[...].reshape(tc * bt, epad)                         # bf16
        gi2 = jnp.dot(x2, wih_ref[...], preferred_element_type=jnp.float32)
        gi_scr[...] = (gi2 + bgi_ref[...]).reshape(tc, bt, 3 * hpad)

        lengths = len_ref[...]                                            # (bt, 1) i32
        whh = whh_ref[...]                                                # (Hpad, 3*Hpad) bf16
        bhn_b = jnp.broadcast_to(bhn_ref[...], (bt, hpad))                # hoisted out of loop

        def step(tt, h):
            gi_t = gi_scr[tt]                                             # (bt, 3*Hpad) f32
            # bf16 operands on the serial-chain matmul, f32 accumulate.
            gh = jnp.dot(h.astype(jnp.bfloat16), whh,
                         preferred_element_type=jnp.float32)              # (bt, 3*Hpad)

            # Lane-aligned gate slices (Hpad is a multiple of 128).
            i_r = gi_t[:, 0:hpad]
            i_z = gi_t[:, hpad:2 * hpad]
            i_n = gi_t[:, 2 * hpad:3 * hpad]
            h_r = gh[:, 0:hpad]
            h_z = gh[:, hpad:2 * hpad]
            h_n = gh[:, 2 * hpad:3 * hpad] + bhn_b

            r = jax.nn.sigmoid(i_r + h_r)
            z = jax.nn.sigmoid(i_z + h_z)
            n = jnp.tanh(i_n + r * h_n)
            h_new = (1.0 - z) * n + z * h

            # pack_sequence semantics: freeze h once the sequence has ended.
            return jnp.where(lengths > (t0 + tt), h_new, h)

        h_ref[...] = lax.fori_loop(0, tc, step, h_ref[...], unroll=8)


def gru_encode_pallas(tile_maxlen, xemb, lengths_col, wih_b, whh_b, bgi_row, bhn_row,
                      *, tc, bt):
    """xemb: (Tpad, Bpad, Epad) bf16. Returns padded hidden state (Bpad, Hpad) f32."""
    Tpad, Bpad, Epad = xemb.shape
    three_h = whh_b.shape[1]
    Hpad = three_h // 3
    num_chunks = Tpad // tc
    num_btiles = Bpad // bt

    grid_spec = pltpu.PrefetchScalarGridSpec(
        num_scalar_prefetch=1,
        grid=(num_btiles, num_chunks),
        in_specs=[
            pl.BlockSpec((tc, bt, Epad), lambda b, c, ml: (c, b, 0)),   # xemb chunk (streamed bf16)
            pl.BlockSpec((bt, 1), lambda b, c, ml: (b, 0)),             # lengths (per tile, resident)
            pl.BlockSpec((Epad, three_h), lambda b, c, ml: (0, 0)),     # W_ih^T (resident bf16)
            pl.BlockSpec((Hpad, three_h), lambda b, c, ml: (0, 0)),     # W_hh^T (resident bf16)
            pl.BlockSpec((1, three_h), lambda b, c, ml: (0, 0)),        # folded gi biases
            pl.BlockSpec((1, Hpad), lambda b, c, ml: (0, 0)),           # b_hn
        ],
        out_specs=pl.BlockSpec((bt, Hpad), lambda b, c, ml: (b, 0)),    # hidden carried over time
        scratch_shapes=[pltpu.VMEM((tc, bt, three_h), jnp.float32)],    # per-chunk gi
    )

    return pl.pallas_call(
        gru_chunk_kernel,
        out_shape=jax.ShapeDtypeStruct((Bpad, Hpad), jnp.float32),
        grid_spec=grid_spec,
        compiler_params=pltpu.CompilerParams(
            dimension_semantics=("parallel", "arbitrary"),   # batch parallel, time serial
            vmem_limit_bytes=48 * 1024 * 1024,               # explicit; fits v7x (64 MiB phys)
        ),
    )(tile_maxlen, xemb, lengths_col, wih_b, whh_b, bgi_row, bhn_row)


def rnn_encoder_forward(tokens_bt, lengths, params, *, time_chunk=64, batch_tile=64):
    """Full RNN_Encoder.forward: embedding (XLA gather) + fused input projection +
    GRU recurrence (Pallas). Returns final hidden state (B, H)."""
    emb_table = jnp.asarray(params["emb"], jnp.float32)     # (vocab_len, E)
    w_ih = jnp.asarray(params["w_ih"], jnp.float32)         # (3H, E)
    w_hh = jnp.asarray(params["w_hh"], jnp.float32)         # (3H, H)
    b_ih = jnp.asarray(params["b_ih"], jnp.float32)         # (3H,)
    b_hh = jnp.asarray(params["b_hh"], jnp.float32)         # (3H,)

    B, T = tokens_bt.shape
    E = emb_table.shape[1]
    H = w_hh.shape[1]

    # TPU-friendly padded sizes.
    Hpad = _round_up(H, 128)                 # lane-aligned per-gate blocks / output
    Epad = _round_up(E, 8)                   # sublane-aligned contraction dim
    bt = batch_tile                          # batch tile (>= 64 for MXU/EUP utilization)
    Bpad = _round_up(B, bt)
    if Bpad // bt < 2:
        Bpad = 2 * bt                        # >= 2 batch tiles so v7x's 2nd TC has work
    tc = min(time_chunk, T)                  # timesteps per grid step
    Tpad = _round_up(T, tc)

    # ---- per-gate padded parameters (bf16 for the MXU, biases in f32) ---------------
    def pad_gate_cols(w_t, in_pad):          # (in, 3H) -> (in_pad, 3*Hpad), per-gate padding
        parts = [jnp.pad(w_t[:, g * H:(g + 1) * H],
                         ((0, in_pad - w_t.shape[0]), (0, Hpad - H)))
                 for g in range(3)]
        return jnp.concatenate(parts, axis=1)

    def pad_gate_vec(v):                     # (H,) -> (Hpad,)
        return jnp.pad(v, (0, Hpad - H))

    wih_b = pad_gate_cols(w_ih.T, Epad).astype(jnp.bfloat16)   # (Epad, 3*Hpad)
    whh_b = pad_gate_cols(w_hh.T, Hpad).astype(jnp.bfloat16)   # (Hpad, 3*Hpad)

    # Fold b_ih (all gates) and b_hh (r, z gates) into the in-kernel input projection;
    # b_hh of the n gate must be applied inside the recurrence (before the r* multiply).
    bgi_row = jnp.concatenate([
        pad_gate_vec(b_ih[0:H] + b_hh[0:H]),
        pad_gate_vec(b_ih[H:2 * H] + b_hh[H:2 * H]),
        pad_gate_vec(b_ih[2 * H:3 * H]),
    ]).reshape(1, 3 * Hpad)                                     # (1, 3*Hpad) f32
    bhn_row = pad_gate_vec(b_hh[2 * H:3 * H]).reshape(1, Hpad)  # (1, Hpad) f32

    # ---- inputs: pad batch, embed time-major, pad time; stream as bf16 --------------
    tokens_p = jnp.pad(tokens_bt, ((0, Bpad - B), (0, 0)))
    lengths_p = jnp.pad(jnp.asarray(lengths, jnp.int32), (0, Bpad - B))

    emb_pad = jnp.pad(emb_table, ((0, 0), (0, Epad - E)))
    xemb = jnp.take(emb_pad, tokens_p.T, axis=0)                 # (T, Bpad, Epad)
    xemb = jnp.pad(xemb, ((0, Tpad - T), (0, 0), (0, 0)))        # (Tpad, Bpad, Epad)
    xemb = xemb.astype(jnp.bfloat16)

    lengths_col = lengths_p.reshape(Bpad, 1)
    # True per-tile max length (robust even if lengths aren't sorted) for chunk skipping.
    tile_maxlen = lengths_p.reshape(Bpad // bt, bt).max(axis=1).astype(jnp.int32)

    h_pad = gru_encode_pallas(tile_maxlen, xemb, lengths_col, wih_b, whh_b,
                              bgi_row, bhn_row, tc=tc, bt=bt)
    return h_pad[:B, :H]


def gru_encode_ref(xemb_tbe, mask_tb1, w_ih, w_hh, b_ih, b_hh):
    """Pure-JAX f32 reference (lax.scan) for correctness check."""
    B = xemb_tbe.shape[1]
    H = w_hh.shape[1]

    def step(h, inp):
        x_t, m_t = inp
        gi = x_t @ w_ih.T + b_ih
        gh = h @ w_hh.T + b_hh
        i_r, i_z, i_n = jnp.split(gi, 3, axis=-1)
        h_r, h_z, h_n = jnp.split(gh, 3, axis=-1)
        r = jax.nn.sigmoid(i_r + h_r)
        z = jax.nn.sigmoid(i_z + h_z)
        n = jnp.tanh(i_n + r * h_n)
        h_new = (1.0 - z) * n + z * h
        h = m_t * h_new + (1.0 - m_t) * h
        return h, None

    h0 = jnp.zeros((B, H), jnp.float32)
    h, _ = jax.lax.scan(step, h0, (xemb_tbe, mask_tb1))
    return h


if __name__ == "__main__":
    # --- deterministic synthetic "module init" -------------------------------
    vocab_size = 10                      # len(vocab)
    vocab_len = vocab_size + 2           # + BOS + PAD
    ridx_pad = vocab_size + 1
    d_emb = 16                           # config.d_emb
    q_d_h = 32                           # config.q_d_h
    B, T = 2, 8                          # batch=2, seq=8

    key = jax.random.PRNGKey(0)
    k_emb, k_wih, k_whh, k_bih, k_bhh, k_tok = jax.random.split(key, 6)

    emb = jax.random.normal(k_emb, (vocab_len, d_emb), jnp.float32)
    emb = emb.at[ridx_pad].set(0.0)      # nn.Embedding padding_idx row is zero

    k = 1.0 / jnp.sqrt(jnp.float32(q_d_h))   # PyTorch GRU default init scale
    w_ih = jax.random.uniform(k_wih, (3 * q_d_h, d_emb), jnp.float32, -k, k)
    w_hh = jax.random.uniform(k_whh, (3 * q_d_h, q_d_h), jnp.float32, -k, k)
    b_ih = jax.random.uniform(k_bih, (3 * q_d_h,), jnp.float32, -k, k)
    b_hh = jax.random.uniform(k_bhh, (3 * q_d_h,), jnp.float32, -k, k)

    params = {"emb": emb, "w_ih": w_ih, "w_hh": w_hh, "b_ih": b_ih, "b_hh": b_hh}

    # variable-length sequences (sorted by decreasing length, as pack_sequence requires)
    lengths = jnp.array([8, 5], dtype=jnp.int32)
    tokens = jax.random.randint(k_tok, (B, T), 0, vocab_size, dtype=jnp.int32)
    pad_mask = jnp.arange(T)[None, :] >= lengths[:, None]
    tokens = jnp.where(pad_mask, ridx_pad, tokens)    # pad beyond each length

    # --- run kernel -----------------------------------------------------------
    h = rnn_encoder_forward(tokens, lengths, params)
    h = jax.block_until_ready(h)

    # --- check against pure-JAX f32 reference (bf16 operands -> relaxed tol) --
    xemb_ref = jnp.transpose(jnp.take(emb, tokens, axis=0), (1, 0, 2))
    mask_ref = ((jnp.arange(T)[:, None] < lengths[None, :]).astype(jnp.float32))[..., None]
    h_ref = gru_encode_ref(xemb_ref, mask_ref, w_ih, w_hh, b_ih, b_hh)

    assert h.shape == (B, q_d_h)
    assert jnp.allclose(h, h_ref, atol=3e-2, rtol=3e-2), "Pallas GRU mismatch vs reference"

    print("KERNEL_OK")
</pallas_src>

<mosaic_0001>
module attributes {stable_mosaic.version = 11 : i64} {
  func.func @gru_chunk_kernel(%arg0: i32, %arg1: i32, %arg2: memref<2xi32, #tpu.memory_space<smem>>, %arg3: memref<8x64x16xbf16, #tpu.memory_space<vmem>>, %arg4: memref<64x1xi32, #tpu.memory_space<vmem>>, %arg5: memref<16x384xbf16, #tpu.memory_space<vmem>>, %arg6: memref<128x384xbf16, #tpu.memory_space<vmem>>, %arg7: memref<1x384xf32, #tpu.memory_space<vmem>>, %arg8: memref<1x128xf32, #tpu.memory_space<vmem>>, %arg9: memref<64x128xf32, #tpu.memory_space<vmem>>, %arg10: memref<8x64x384xf32, #tpu.memory_space<vmem>>) attributes {dimension_semantics = [#tpu.dimension_semantics<parallel>, #tpu.dimension_semantics<arbitrary>], iteration_bounds = array<i64: 2, 1>, scalar_prefetch = 1 : i64, scratch_operands = 1 : i64, tpu.core_type = #tpu.core_type<tc>, window_params = [{transform_indices = @transform_0, window_bounds = array<i64: 8, 64, 16>}, {transform_indices = @transform_1, window_bounds = array<i64: 64, 1>}, {pipeline_mode = #tpu.pipeline_mode<synchronous>, transform_indices = @transform_2, window_bounds = array<i64: 16, 384>}, {pipeline_mode = #tpu.pipeline_mode<synchronous>, transform_indices = @transform_3, window_bounds = array<i64: 128, 384>}, {pipeline_mode = #tpu.pipeline_mode<synchronous>, transform_indices = @transform_4, window_bounds = array<i64: 1, 384>}, {pipeline_mode = #tpu.pipeline_mode<synchronous>, transform_indices = @transform_5, window_bounds = array<i64: 1, 128>}, {transform_indices = @transform_6, window_bounds = array<i64: 64, 128>}]} {
    %c0_i32 = arith.constant 0 : i32
    %0 = arith.cmpi eq, %arg1, %c0_i32 : i32
    %1 = arith.extui %0 : i1 to i32
    %c0_i32_0 = arith.constant 0 : i32
    %2 = arith.cmpi ne, %1, %c0_i32_0 : i32
    scf.if %2 {
      %cst = arith.constant 0.000000e+00 : f32
      %9 = vector.broadcast %cst : f32 to vector<64x128xf32>
      %c0 = arith.constant 0 : index
      %c0_2 = arith.constant 0 : index
      %10 = vector.load %arg9[%c0, %c0_2] : memref<64x128xf32, #tpu.memory_space<vmem>>, vector<64x128xf32>
      tpu.vector_store %arg9[%c0, %c0_2], %9 {strides = array<i32>} : memref<64x128xf32, #tpu.memory_space<vmem>>, vector<64x128xf32>,
    } else {
    }
    %c8_i32 = arith.constant 8 : i32
    %3 = arith.muli %arg1, %c8_i32 : i32
    %4 = arith.index_cast %arg0 : i32 to index
    %5 = memref.load %arg2[%4] : memref<2xi32, #tpu.memory_space<smem>>
    %6 = arith.cmpi sgt, %5, %3 : i32
    %7 = arith.extui %6 : i1 to i32
    %c0_i32_1 = arith.constant 0 : i32
    %8 = arith.cmpi ne, %7, %c0_i32_1 : i32
    scf.if %8 {
      %c0 = arith.constant 0 : index
      %c0_2 = arith.constant 0 : index
      %c0_3 = arith.constant 0 : index
      %9 = vector.load %arg3[%c0, %c0_2, %c0_3] : memref<8x64x16xbf16, #tpu.memory_space<vmem>>, vector<8x64x16xbf16>
      %10 = vector.shape_cast %9 : vector<8x64x16xbf16> to vector<512x16xbf16>
      %c0_4 = arith.constant 0 : index
      %c0_5 = arith.constant 0 : index
      %11 = vector.load %arg5[%c0_4, %c0_5] : memref<16x384xbf16, #tpu.memory_space<vmem>>, vector<16x384xbf16>
      %cst = arith.constant dense<0.000000e+00> : vector<512x384xf32>
      %12 = tpu.matmul %10, %11, %cst {dimension_numbers = #tpu.dot_dimension_numbers<[1], [0], [0], [1], [0, 0, 1, 1], [], []>} : vector<512x16xbf16>, vector<16x384xbf16>, vector<512x384xf32> -> vector<512x384xf32>
      %c0_6 = arith.constant 0 : index
      %c0_7 = arith.constant 0 : index
      %13 = vector.load %arg7[%c0_6, %c0_7] : memref<1x384xf32, #tpu.memory_space<vmem>>, vector<1x384xf32>
      %14 = vector.broadcast %13 : vector<1x384xf32> to vector<512x384xf32>
      %15 = arith.addf %12, %14 : vector<512x384xf32>
      %16 = vector.shape_cast %15 : vector<512x384xf32> to vector<8x64x384xf32>
      %c0_8 = arith.constant 0 : index
      %c0_9 = arith.constant 0 : index
      %c0_10 = arith.constant 0 : index
      %17 = vector.load %arg10[%c0_8, %c0_9, %c0_10] : memref<8x64x384xf32, #tpu.memory_space<vmem>>, vector<8x64x384xf32>
      tpu.vector_store %arg10[%c0_8, %c0_9, %c0_10], %16 {strides = array<i32>} : memref<8x64x384xf32, #tpu.memory_space<vmem>>, vector<8x64x384xf32>,
      %c0_11 = arith.constant 0 : index
      %c0_12 = arith.constant 0 : index
      %18 = vector.load %arg4[%c0_11, %c0_12] : memref<64x1xi32, #tpu.memory_space<vmem>>, vector<64x1xi32>
      %c0_13 = arith.constant 0 : index
      %c0_14 = arith.constant 0 : index
      %19 = vector.load %arg6[%c0_13, %c0_14] : memref<128x384xbf16, #tpu.memory_space<vmem>>, vector<128x384xbf16>
      %c0_15 = arith.constant 0 : index
      %c0_16 = arith.constant 0 : index
      %20 = vector.load %arg8[%c0_15, %c0_16] : memref<1x128xf32, #tpu.memory_space<vmem>>, vector<1x128xf32>
      %21 = vector.shape_cast %20 : vector<1x128xf32> to vector<1x128xf32>
      %22 = vector.broadcast %21 : vector<1x128xf32> to vector<64x128xf32>
      %c0_17 = arith.constant 0 : index
      %c0_18 = arith.constant 0 : index
      %23 = vector.load %arg9[%c0_17, %c0_18] : memref<64x128xf32, #tpu.memory_space<vmem>>, vector<64x128xf32>
      %c0_i32_19 = arith.constant 0 : i32
      %24 = arith.index_cast %c0_i32_19 : i32 to index
      %c0_20 = arith.constant 0 : index
      %c0_21 = arith.constant 0 : index
      %25 = vector.load %arg10[%24, %c0_20, %c0_21] : memref<8x64x384xf32, #tpu.memory_space<vmem>>, vector<1x64x384xf32>
      %26 = vector.shape_cast %25 : vector<1x64x384xf32> to vector<64x384xf32>
      %27 = arith.truncf %23 : vector<64x128xf32> to vector<64x128xbf16>
      %cst_22 = arith.constant dense<0.000000e+00> : vector<64x384xf32>
      %28 = tpu.matmul %27, %19, %cst_22 {dimension_numbers = #tpu.dot_dimension_numbers<[1], [0], [0], [1], [0, 0, 1, 1], [], []>} : vector<64x128xbf16>, vector<128x384xbf16>, vector<64x384xf32> -> vector<64x384xf32>
      %29 = vector.extract_strided_slice %26 {offsets = [0, 0], sizes = [64, 128], strides = [1, 1]} : vector<64x384xf32> to vector<64x128xf32>
      %30 = vector.extract_strided_slice %26 {offsets = [0, 128], sizes = [64, 128], strides = [1, 1]} : vector<64x384xf32> to vector<64x128xf32>
      %31 = vector.extract_strided_slice %26 {offsets = [0, 256], sizes = [64, 128], strides = [1, 1]} : vector<64x384xf32> to vector<64x128xf32>
      %32 = vector.extract_strided_slice %28 {offsets = [0, 0], sizes = [64, 128], strides = [1, 1]} : vector<64x384xf32> to vector<64x128xf32>
      %33 = vector.extract_strided_slice %28 {offsets = [0, 128], sizes = [64, 128], strides = [1, 1]} : vector<64x384xf32> to vector<64x128xf32>
      %34 = vector.extract_strided_slice %28 {offsets = [0, 256], sizes = [64, 128], strides = [1, 1]} : vector<64x384xf32> to vector<64x128xf32>
      %35 = arith.addf %34, %22 : vector<64x128xf32>
      %36 = arith.addf %29, %32 : vector<64x128xf32>
      %37 = arith.negf %36 : vector<64x128xf32>
      %38 = math.exp %37 : vector<64x128xf32>
      %cst_23 = arith.constant 1.000000e+00 : f32
      %39 = vector.broadcast %cst_23 : f32 to vector<64x128xf32>
      %40 = arith.addf %39, %38 : vector<64x128xf32>
      %41 = arith.divf %39, %40 : vector<64x128xf32>
      %42 = arith.addf %30, %33 : vector<64x128xf32>
      %43 = arith.negf %42 : vector<64x128xf32>
      %44 = math.exp %43 : vector<64x128xf32>
      %cst_24 = arith.constant 1.000000e+00 : f32
      %45 = vector.broadcast %cst_24 : f32 to vector<64x128xf32>
      %46 = arith.addf %45, %44 : vector<64x128xf32>
      %47 = arith.divf %45, %46 : vector<64x128xf32>
      %48 = arith.mulf %41, %35 : vector<64x128xf32>
      %49 = arith.addf %31, %48 : vector<64x128xf32>
      %50 = math.tanh %49 : vector<64x128xf32>
      %cst_25 = arith.constant 1.000000e+00 : f32
      %51 = vector.broadcast %cst_25 : f32 to vector<64x128xf32>
      %52 = arith.subf %51, %47 : vector<64x128xf32>
      %53 = arith.mulf %52, %50 : vector<64x128xf32>
      %54 = arith.mulf %47, %23 : vector<64x128xf32>
      %55 = arith.addf %53, %54 : vector<64x128xf32>
      %56 = arith.addi %3, %c0_i32_19 : i32
      %57 = vector.broadcast %56 : i32 to vector<64x1xi32>
      %58 = arith.cmpi sgt, %18, %57 : vector<64x1xi32>
      %59 = vector.shape_cast %58 : vector<64x1xi1> to vector<64x1xi1>
      %60 = vector.broadcast %59 : vector<64x1xi1> to vector<64x128xi1>
      %61 = arith.select %60, %55, %23 : vector<64x128xi1>, vector<64x128xf32>
      %c1_i32 = arith.constant 1 : i32
      %62 = arith.index_cast %c1_i32 : i32 to index
      %c0_26 = arith.constant 0 : index
      %c0_27 = arith.constant 0 : index
      %63 = vector.load %arg10[%62, %c0_26, %c0_27] : memref<8x64x384xf32, #tpu.memory_space<vmem>>, vector<1x64x384xf32>
      %64 = vector.shape_cast %63 : vector<1x64x384xf32> to vector<64x384xf32>
      %65 = arith.truncf %61 : vector<64x128xf32> to vector<64x128xbf16>
      %cst_28 = arith.constant dense<0.000000e+00> : vector<64x384xf32>
      %66 = tpu.matmul %65, %19, %cst_28 {dimension_numbers = #tpu.dot_dimension_numbers<[1], [0], [0], [1], [0, 0, 1, 1], [], []>} : vector<64x128xbf16>, vector<128x384xbf16>, vector<64x384xf32> -> vector<64x384xf32>
      %67 = vector.extract_strided_slice %64 {offsets = [0, 0], sizes = [64, 128], strides = [1, 1]} : vector<64x384xf32> to vector<64x128xf32>
      %68 = vector.extract_strided_slice %64 {offsets = [0, 128], sizes = [64, 128], strides = [1, 1]} : vector<64x384xf32> to vector<64x128xf32>
      %69 = vector.extract_strided_slice %64 {offsets = [0, 256], sizes = [64, 128], strides = [1, 1]} : vector<64x384xf32> to vector<64x128xf32>
      %70 = vector.extract_strided_slice %66 {offsets = [0, 0], sizes = [64, 128], strides = [1, 1]} : vector<64x384xf32> to vector<64x128xf32>
      %71 = vector.extract_strided_slice %66 {offsets = [0, 128], sizes = [64, 128], strides = [1, 1]} : vector<64x384xf32> to vector<64x128xf32>
      %72 = vector.extract_strided_slice %66 {offsets = [0, 256], sizes = [64, 128], strides = [1, 1]} : vector<64x384xf32> to vector<64x128xf32>
      %73 = arith.addf %72, %22 : vector<64x128xf32>
      %74 = arith.addf %67, %70 : vector<64x128xf32>
      %75 = arith.negf %74 : vector<64x128xf32>
      %76 = math.exp %75 : vector<64x128xf32>
      %cst_29 = arith.constant 1.000000e+00 : f32
      %77 = vector.broadcast %cst_29 : f32 to vector<64x128xf32>
      %78 = arith.addf %77, %76 : vector<64x128xf32>
      %79 = arith.divf %77, %78 : vector<64x128xf32>
      %80 = arith.addf %68, %71 : vector<64x128xf32>
      %81 = arith.negf %80 : vector<64x128xf32>
      %82 = math.exp %81 : vector<64x128xf32>
      %cst_30 = arith.constant 1.000000e+00 : f32
      %83 = vector.broadcast %cst_30 : f32 to vector<64x128xf32>
      %84 = arith.addf %83, %82 : vector<64x128xf32>
      %85 = arith.divf %83, %84 : vector<64x128xf32>
      %86 = arith.mulf %79, %73 : vector<64x128xf32>
      %87 = arith.addf %69, %86 : vector<64x128xf32>
      %88 = math.tanh %87 : vector<64x128xf32>
      %cst_31 = arith.constant 1.000000e+00 : f32
      %89 = vector.broadcast %cst_31 : f32 to vector<64x128xf32>
      %90 = arith.subf %89, %85 : vector<64x128xf32>
      %91 = arith.mulf %90, %88 : vector<64x128xf32>
      %92 = arith.mulf %85, %61 : vector<64x128xf32>
      %93 = arith.addf %91, %92 : vector<64x128xf32>
      %94 = arith.addi %3, %c1_i32 : i32
      %95 = vector.broadcast %94 : i32 to vector<64x1xi32>
      %96 = arith.cmpi sgt, %18, %95 : vector<64x1xi32>
      %97 = vector.shape_cast %96 : vector<64x1xi1> to vector<64x1xi1>
      %98 = vector.broadcast %97 : vector<64x1xi1> to vector<64x128xi1>
      %99 = arith.select %98, %93, %61 : vector<64x128xi1>, vector<64x128xf32>
      %c2_i32 = arith.constant 2 : i32
      %100 = arith.index_cast %c2_i32 : i32 to index
      %c0_32 = arith.constant 0 : index
      %c0_33 = arith.constant 0 : index
      %101 = vector.load %arg10[%100, %c0_32, %c0_33] : memref<8x64x384xf32, #tpu.memory_space<vmem>>, vector<1x64x384xf32>
      %102 = vector.shape_cast %101 : vector<1x64x384xf32> to vector<64x384xf32>
      %103 = arith.truncf %99 : vector<64x128xf32> to vector<64x128xbf16>
      %cst_34 = arith.constant dense<0.000000e+00> : vector<64x384xf32>
      %104 = tpu.matmul %103, %19, %cst_34 {dimension_numbers = #tpu.dot_dimension_numbers<[1], [0], [0], [1], [0, 0, 1, 1], [], []>} : vector<64x128xbf16>, vector<128x384xbf16>, vector<64x384xf32> -> vector<64x384xf32>
      %105 = vector.extract_strided_slice %102 {offsets = [0, 0], sizes = [64, 128], strides = [1, 1]} : vector<64x384xf32> to vector<64x128xf32>
      %106 = vector.extract_strided_slice %102 {offsets = [0, 128], sizes = [64, 128], strides = [1, 1]} : vector<64x384xf32> to vector<64x128xf32>
      %107 = vector.extract_strided_slice %102 {offsets = [0, 256], sizes = [64, 128], strides = [1, 1]} : vector<64x384xf32> to vector<64x128xf32>
      %108 = vector.extract_strided_slice %104 {offsets = [0, 0], sizes = [64, 128], strides = [1, 1]} : vector<64x384xf32> to vector<64x128xf32>
      %109 = vector.extract_strided_slice %104 {offsets = [0, 128], sizes = [64, 128], strides = [1, 1]} : vector<64x384xf32> to vector<64x128xf32>
      %110 = vector.extract_strided_slice %104 {offsets = [0, 256], sizes = [64, 128], strides = [1, 1]} : vector<64x384xf32> to vector<64x128xf32>
      %111 = arith.addf %110, %22 : vector<64x128xf32>
      %112 = arith.addf %105, %108 : vector<64x128xf32>
      %113 = arith.negf %112 : vector<64x128xf32>
      %114 = math.exp %113 : vector<64x128xf32>
      %cst_35 = arith.constant 1.000000e+00 : f32
      %115 = vector.broadcast %cst_35 : f32 to vector<64x128xf32>
      %116 = arith.addf %115, %114 : vector<64x128xf32>
      %117 = arith.divf %115, %116 : vector<64x128xf32>
      %118 = arith.addf %106, %109 : vector<64x128xf32>
      %119 = arith.negf %118 : vector<64x128xf32>
      %120 = math.exp %119 : vector<64x128xf32>
      %cst_36 = arith.constant 1.000000e+00 : f32
      %121 = vector.broadcast %cst_36 : f32 to vector<64x128xf32>
      %122 = arith.addf %121, %120 : vector<64x128xf32>
      %123 = arith.divf %121, %122 : vector<64x128xf32>
      %124 = arith.mulf %117, %111 : vector<64x128xf32>
      %125 = arith.addf %107, %124 : vector<64x128xf32>
      %126 = math.tanh %125 : vector<64x128xf32>
      %cst_37 = arith.constant 1.000000e+00 : f32
      %127 = vector.broadcast %cst_37 : f32 to vector<64x128xf32>
      %128 = arith.subf %127, %123 : vector<64x128xf32>
      %129 = arith.mulf %128, %126 : vector<64x128xf32>
      %130 = arith.mulf %123, %99 : vector<64x128xf32>
      %131 = arith.addf %129, %130 : vector<64x128xf32>
      %132 = arith.addi %3, %c2_i32 : i32
      %133 = vector.broadcast %132 : i32 to vector<64x1xi32>
      %134 = arith.cmpi sgt, %18, %133 : vector<64x1xi32>
      %135 = vector.shape_cast %134 : vector<64x1xi1> to vector<64x1xi1>
      %136 = vector.broadcast %135 : vector<64x1xi1> to vector<64x128xi1>
      %137 = arith.select %136, %131, %99 : vector<64x128xi1>, vector<64x128xf32>
      %c3_i32 = arith.constant 3 : i32
      %138 = arith.index_cast %c3_i32 : i32 to index
      %c0_38 = arith.constant 0 : index
      %c0_39 = arith.constant 0 : index
      %139 = vector.load %arg10[%138, %c0_38, %c0_39] : memref<8x64x384xf32, #tpu.memory_space<vmem>>, vector<1x64x384xf32>
      %140 = vector.shape_cast %139 : vector<1x64x384xf32> to vector<64x384xf32>
      %141 = arith.truncf %137 : vector<64x128xf32> to vector<64x128xbf16>
      %cst_40 = arith.constant dense<0.000000e+00> : vector<64x384xf32>
      %142 = tpu.matmul %141, %19, %cst_40 {dimension_numbers = #tpu.dot_dimension_numbers<[1], [0], [0], [1], [0, 0, 1, 1], [], []>} : vector<64x128xbf16>, vector<128x384xbf16>, vector<64x384xf32> -> vector<64x384xf32>
      %143 = vector.extract_strided_slice %140 {offsets = [0, 0], sizes = [64, 128], strides = [1, 1]} : vector<64x384xf32> to vector<64x128xf32>
      %144 = vector.extract_strided_slice %140 {offsets = [0, 128], sizes = [64, 128], strides = [1, 1]} : vector<64x384xf32> to vector<64x128xf32>
      %145 = vector.extract_strided_slice %140 {offsets = [0, 256], sizes = [64, 128], strides = [1, 1]} : vector<64x384xf32> to vector<64x128xf32>
      %146 = vector.extract_strided_slice %142 {offsets = [0, 0], sizes = [64, 128], strides = [1, 1]} : vector<64x384xf32> to vector<64x128xf32>
      %147 = vector.extract_strided_slice %142 {offsets = [0, 128], sizes = [64, 128], strides = [1, 1]} : vector<64x384xf32> to vector<64x128xf32>
      %148 = vector.extract_strided_slice %142 {offsets = [0, 256], sizes = [64, 128], strides = [1, 1]} : vector<64x384xf32> to vector<64x128xf32>
      %149 = arith.addf %148, %22 : vector<64x128xf32>
      %150 = arith.addf %143, %146 : vector<64x128xf32>
      %151 = arith.negf %150 : vector<64x128xf32>
      %152 = math.exp %151 : vector<64x128xf32>
      %cst_41 = arith.constant 1.000000e+00 : f32
      %153 = vector.broadcast %cst_41 : f32 to vector<64x128xf32>
      %154 = arith.addf %153, %152 : vector<64x128xf32>
      %155 = arith.divf %153, %154 : vector<64x128xf32>
      %156 = arith.addf %144, %147 : vector<64x128xf32>
      %157 = arith.negf %156 : vector<64x128xf32>
      %158 = math.exp %157 : vector<64x128xf32>
      %cst_42 = arith.constant 1.000000e+00 : f32
      %159 = vector.broadcast %cst_42 : f32 to vector<64x128xf32>
      %160 = arith.addf %159, %158 : vector<64x128xf32>
      %161 = arith.divf %159, %160 : vector<64x128xf32>
      %162 = arith.mulf %155, %149 : vector<64x128xf32>
      %163 = arith.addf %145, %162 : vector<64x128xf32>
      %164 = math.tanh %163 : vector<64x128xf32>
      %cst_43 = arith.constant 1.000000e+00 : f32
      %165 = vector.broadcast %cst_43 : f32 to vector<64x128xf32>
      %166 = arith.subf %165, %161 : vector<64x128xf32>
      %167 = arith.mulf %166, %164 : vector<64x128xf32>
      %168 = arith.mulf %161, %137 : vector<64x128xf32>
      %169 = arith.addf %167, %168 : vector<64x128xf32>
      %170 = arith.addi %3, %c3_i32 : i32
      %171 = vector.broadcast %170 : i32 to vector<64x1xi32>
      %172 = arith.cmpi sgt, %18, %171 : vector<64x1xi32>
      %173 = vector.shape_cast %172 : vector<64x1xi1> to vector<64x1xi1>
      %174 = vector.broadcast %173 : vector<64x1xi1> to vector<64x128xi1>
      %175 = arith.select %174, %169, %137 : vector<64x128xi1>, vector<64x128xf32>
      %c4_i32 = arith.constant 4 : i32
      %176 = arith.index_cast %c4_i32 : i32 to index
      %c0_44 = arith.constant 0 : index
      %c0_45 = arith.constant 0 : index
      %177 = vector.load %arg10[%176, %c0_44, %c0_45] : memref<8x64x384xf32, #tpu.memory_space<vmem>>, vector<1x64x384xf32>
      %178 = vector.shape_cast %177 : vector<1x64x384xf32> to vector<64x384xf32>
      %179 = arith.truncf %175 : vector<64x128xf32> to vector<64x128xbf16>
      %cst_46 = arith.constant dense<0.000000e+00> : vector<64x384xf32>
      %180 = tpu.matmul %179, %19, %cst_46 {dimension_numbers = #tpu.dot_dimension_numbers<[1], [0], [0], [1], [0, 0, 1, 1], [], []>} : vector<64x128xbf16>, vector<128x384xbf16>, vector<64x384xf32> -> vector<64x384xf32>
      %181 = vector.extract_strided_slice %178 {offsets = [0, 0], sizes = [64, 128], strides = [1, 1]} : vector<64x384xf32> to vector<64x128xf32>
      %182 = vector.extract_strided_slice %178 {offsets = [0, 128], sizes = [64, 128], strides = [1, 1]} : vector<64x384xf32> to vector<64x128xf32>
      %183 = vector.extract_strided_slice %178 {offsets = [0, 256], sizes = [64, 128], strides = [1, 1]} : vector<64x384xf32> to vector<64x128xf32>
      %184 = vector.extract_strided_slice %180 {offsets = [0, 0], sizes = [64, 128], strides = [1, 1]} : vector<64x384xf32> to vector<64x128xf32>
      %185 = vector.extract_strided_slice %180 {offsets = [0, 128], sizes = [64, 128], strides = [1, 1]} : vector<64x384xf32> to vector<64x128xf32>
      %186 = vector.extract_strided_slice %180 {offsets = [0, 256], sizes = [64, 128], strides = [1, 1]} : vector<64x384xf32> to vector<64x128xf32>
      %187 = arith.addf %186, %22 : vector<64x128xf32>
      %188 = arith.addf %181, %184 : vector<64x128xf32>
      %189 = arith.negf %188 : vector<64x128xf32>
      %190 = math.exp %189 : vector<64x128xf32>
      %cst_47 = arith.constant 1.000000e+00 : f32
      %191 = vector.broadcast %cst_47 : f32 to vector<64x128xf32>
      %192 = arith.addf %191, %190 : vector<64x128xf32>
      %193 = arith.divf %191, %192 : vector<64x128xf32>
      %194 = arith.addf %182, %185 : vector<64x128xf32>
      %195 = arith.negf %194 : vector<64x128xf32>
      %196 = math.exp %195 : vector<64x128xf32>
      %cst_48 = arith.constant 1.000000e+00 : f32
      %197 = vector.broadcast %cst_48 : f32 to vector<64x128xf32>
      %198 = arith.addf %197, %196 : vector<64x128xf32>
      %199 = arith.divf %197, %198 : vector<64x128xf32>
      %200 = arith.mulf %193, %187 : vector<64x128xf32>
      %201 = arith.addf %183, %200 : vector<64x128xf32>
      %202 = math.tanh %201 : vector<64x128xf32>
      %cst_49 = arith.constant 1.000000e+00 : f32
      %203 = vector.broadcast %cst_49 : f32 to vector<64x128xf32>
      %204 = arith.subf %203, %199 : vector<64x128xf32>
      %205 = arith.mulf %204, %202 : vector<64x128xf32>
      %206 = arith.mulf %199, %175 : vector<64x128xf32>
      %207 = arith.addf %205, %206 : vector<64x128xf32>
      %208 = arith.addi %3, %c4_i32 : i32
      %209 = vector.broadcast %208 : i32 to vector<64x1xi32>
      %210 = arith.cmpi sgt, %18, %209 : vector<64x1xi32>
      %211 = vector.shape_cast %210 : vector<64x1xi1> to vector<64x1xi1>
      %212 = vector.broadcast %211 : vector<64x1xi1> to vector<64x128xi1>
      %213 = arith.select %212, %207, %175 : vector<64x128xi1>, vector<64x128xf32>
      %c5_i32 = arith.constant 5 : i32
      %214 = arith.index_cast %c5_i32 : i32 to index
      %c0_50 = arith.constant 0 : index
      %c0_51 = arith.constant 0 : index
      %215 = vector.load %arg10[%214, %c0_50, %c0_51] : memref<8x64x384xf32, #tpu.memory_space<vmem>>, vector<1x64x384xf32>
      %216 = vector.shape_cast %215 : vector<1x64x384xf32> to vector<64x384xf32>
      %217 = arith.truncf %213 : vector<64x128xf32> to vector<64x128xbf16>
      %cst_52 = arith.constant dense<0.000000e+00> : vector<64x384xf32>
      %218 = tpu.matmul %217, %19, %cst_52 {dimension_numbers = #tpu.dot_dimension_numbers<[1], [0], [0], [1], [0, 0, 1, 1], [], []>} : vector<64x128xbf16>, vector<128x384xbf16>, vector<64x384xf32> -> vector<64x384xf32>
      %219 = vector.extract_strided_slice %216 {offsets = [0, 0], sizes = [64, 128], strides = [1, 1]} : vector<64x384xf32> to vector<64x128xf32>
      %220 = vector.extract_strided_slice %216 {offsets = [0, 128], sizes = [64, 128], strides = [1, 1]} : vector<64x384xf32> to vector<64x128xf32>
      %221 = vector.extract_strided_slice %216 {offsets = [0, 256], sizes = [64, 128], strides = [1, 1]} : vector<64x384xf32> to vector<64x128xf32>
      %222 = vector.extract_strided_slice %218 {offsets = [0, 0], sizes = [64, 128], strides = [1, 1]} : vector<64x384xf32> to vector<64x128xf32>
      %223 = vector.extract_strided_slice %218 {offsets = [0, 128], sizes = [64, 128], strides = [1, 1]} : vector<64x384xf32> to vector<64x128xf32>
      %224 = vector.extract_strided_slice %218 {offsets = [0, 256], sizes = [64, 128], strides = [1, 1]} : vector<64x384xf32> to vector<64x128xf32>
      %225 = arith.addf %224, %22 : vector<64x128xf32>
      %226 = arith.addf %219, %222 : vector<64x128xf32>
      %227 = arith.negf %226 : vector<64x128xf32>
      %228 = math.exp %227 : vector<64x128xf32>
      %cst_53 = arith.constant 1.000000e+00 : f32
      %229 = vector.broadcast %cst_53 : f32 to vector<64x128xf32>
      %230 = arith.addf %229, %228 : vector<64x128xf32>
      %231 = arith.divf %229, %230 : vector<64x128xf32>
      %232 = arith.addf %220, %223 : vector<64x128xf32>
      %233 = arith.negf %232 : vector<64x128xf32>
      %234 = math.exp %233 : vector<64x128xf32>
      %cst_54 = arith.constant 1.000000e+00 : f32
      %235 = vector.broadcast %cst_54 : f32 to vector<64x128xf32>
      %236 = arith.addf %235, %234 : vector<64x128xf32>
      %237 = arith.divf %235, %236 : vector<64x128xf32>
      %238 = arith.mulf %231, %225 : vector<64x128xf32>
      %239 = arith.addf %221, %238 : vector<64x128xf32>
      %240 = math.tanh %239 : vector<64x128xf32>
      %cst_55 = arith.constant 1.000000e+00 : f32
      %241 = vector.broadcast %cst_55 : f32 to vector<64x128xf32>
      %242 = arith.subf %241, %237 : vector<64x128xf32>
      %243 = arith.mulf %242, %240 : vector<64x128xf32>
      %244 = arith.mulf %237, %213 : vector<64x128xf32>
      %245 = arith.addf %243, %244 : vector<64x128xf32>
      %246 = arith.addi %3, %c5_i32 : i32
      %247 = vector.broadcast %246 : i32 to vector<64x1xi32>
      %248 = arith.cmpi sgt, %18, %247 : vector<64x1xi32>
      %249 = vector.shape_cast %248 : vector<64x1xi1> to vector<64x1xi1>
      %250 = vector.broadcast %249 : vector<64x1xi1> to vector<64x128xi1>
      %251 = arith.select %250, %245, %213 : vector<64x128xi1>, vector<64x128xf32>
      %c6_i32 = arith.constant 6 : i32
      %252 = arith.index_cast %c6_i32 : i32 to index
      %c0_56 = arith.constant 0 : index
      %c0_57 = arith.constant 0 : index
      %253 = vector.load %arg10[%252, %c0_56, %c0_57] : memref<8x64x384xf32, #tpu.memory_space<vmem>>, vector<1x64x384xf32>
      %254 = vector.shape_cast %253 : vector<1x64x384xf32> to vector<64x384xf32>
      %255 = arith.truncf %251 : vector<64x128xf32> to vector<64x128xbf16>
      %cst_58 = arith.constant dense<0.000000e+00> : vector<64x384xf32>
      %256 = tpu.matmul %255, %19, %cst_58 {dimension_numbers = #tpu.dot_dimension_numbers<[1], [0], [0], [1], [0, 0, 1, 1], [], []>} : vector<64x128xbf16>, vector<128x384xbf16>, vector<64x384xf32> -> vector<64x384xf32>
      %257 = vector.extract_strided_slice %254 {offsets = [0, 0], sizes = [64, 128], strides = [1, 1]} : vector<64x384xf32> to vector<64x128xf32>
      %258 = vector.extract_strided_slice %254 {offsets = [0, 128], sizes = [64, 128], strides = [1, 1]} : vector<64x384xf32> to vector<64x128xf32>
      %259 = vector.extract_strided_slice %254 {offsets = [0, 256], sizes = [64, 128], strides = [1, 1]} : vector<64x384xf32> to vector<64x128xf32>
      %260 = vector.extract_strided_slice %256 {offsets = [0, 0], sizes = [64, 128], strides = [1, 1]} : vector<64x384xf32> to vector<64x128xf32>
      %261 = vector.extract_strided_slice %256 {offsets = [0, 128], sizes = [64, 128], strides = [1, 1]} : vector<64x384xf32> to vector<64x128xf32>
      %262 = vector.extract_strided_slice %256 {offsets = [0, 256], sizes = [64, 128], strides = [1, 1]} : vector<64x384xf32> to vector<64x128xf32>
      %263 = arith.addf %262, %22 : vector<64x128xf32>
      %264 = arith.addf %257, %260 : vector<64x128xf32>
      %265 = arith.negf %264 : vector<64x128xf32>
      %266 = math.exp %265 : vector<64x128xf32>
      %cst_59 = arith.constant 1.000000e+00 : f32
      %267 = vector.broadcast %cst_59 : f32 to vector<64x128xf32>
      %268 = arith.addf %267, %266 : vector<64x128xf32>
      %269 = arith.divf %267, %268 : vector<64x128xf32>
      %270 = arith.addf %258, %261 : vector<64x128xf32>
      %271 = arith.negf %270 : vector<64x128xf32>
      %272 = math.exp %271 : vector<64x128xf32>
      %cst_60 = arith.constant 1.000000e+00 : f32
      %273 = vector.broadcast %cst_60 : f32 to vector<64x128xf32>
      %274 = arith.addf %273, %272 : vector<64x128xf32>
      %275 = arith.divf %273, %274 : vector<64x128xf32>
      %276 = arith.mulf %269, %263 : vector<64x128xf32>
      %277 = arith.addf %259, %276 : vector<64x128xf32>
      %278 = math.tanh %277 : vector<64x128xf32>
      %cst_61 = arith.constant 1.000000e+00 : f32
      %279 = vector.broadcast %cst_61 : f32 to vector<64x128xf32>
      %280 = arith.subf %279, %275 : vector<64x128xf32>
      %281 = arith.mulf %280, %278 : vector<64x128xf32>
      %282 = arith.mulf %275, %251 : vector<64x128xf32>
      %283 = arith.addf %281, %282 : vector<64x128xf32>
      %284 = arith.addi %3, %c6_i32 : i32
      %285 = vector.broadcast %284 : i32 to vector<64x1xi32>
      %286 = arith.cmpi sgt, %18, %285 : vector<64x1xi32>
      %287 = vector.shape_cast %286 : vector<64x1xi1> to vector<64x1xi1>
      %288 = vector.broadcast %287 : vector<64x1xi1> to vector<64x128xi1>
      %289 = arith.select %288, %283, %251 : vector<64x128xi1>, vector<64x128xf32>
      %c7_i32 = arith.constant 7 : i32
      %290 = arith.index_cast %c7_i32 : i32 to index
      %c0_62 = arith.constant 0 : index
      %c0_63 = arith.constant 0 : index
      %291 = vector.load %arg10[%290, %c0_62, %c0_63] : memref<8x64x384xf32, #tpu.memory_space<vmem>>, vector<1x64x384xf32>
      %292 = vector.shape_cast %291 : vector<1x64x384xf32> to vector<64x384xf32>
      %293 = arith.truncf %289 : vector<64x128xf32> to vector<64x128xbf16>
      %cst_64 = arith.constant dense<0.000000e+00> : vector<64x384xf32>
      %294 = tpu.matmul %293, %19, %cst_64 {dimension_numbers = #tpu.dot_dimension_numbers<[1], [0], [0], [1], [0, 0, 1, 1], [], []>} : vector<64x128xbf16>, vector<128x384xbf16>, vector<64x384xf32> -> vector<64x384xf32>
      %295 = vector.extract_strided_slice %292 {offsets = [0, 0], sizes = [64, 128], strides = [1, 1]} : vector<64x384xf32> to vector<64x128xf32>
      %296 = vector.extract_strided_slice %292 {offsets = [0, 128], sizes = [64, 128], strides = [1, 1]} : vector<64x384xf32> to vector<64x128xf32>
      %297 = vector.extract_strided_slice %292 {offsets = [0, 256], sizes = [64, 128], strides = [1, 1]} : vector<64x384xf32> to vector<64x128xf32>
      %298 = vector.extract_strided_slice %294 {offsets = [0, 0], sizes = [64, 128], strides = [1, 1]} : vector<64x384xf32> to vector<64x128xf32>
      %299 = vector.extract_strided_slice %294 {offsets = [0, 128], sizes = [64, 128], strides = [1, 1]} : vector<64x384xf32> to vector<64x128xf32>
      %300 = vector.extract_strided_slice %294 {offsets = [0, 256], sizes = [64, 128], strides = [1, 1]} : vector<64x384xf32> to vector<64x128xf32>
      %301 = arith.addf %300, %22 : vector<64x128xf32>
      %302 = arith.addf %295, %298 : vector<64x128xf32>
      %303 = arith.negf %302 : vector<64x128xf32>
      %304 = math.exp %303 : vector<64x128xf32>
      %cst_65 = arith.constant 1.000000e+00 : f32
      %305 = vector.broadcast %cst_65 : f32 to vector<64x128xf32>
      %306 = arith.addf %305, %304 : vector<64x128xf32>
      %307 = arith.divf %305, %306 : vector<64x128xf32>
      %308 = arith.addf %296, %299 : vector<64x128xf32>
      %309 = arith.negf %308 : vector<64x128xf32>
      %310 = math.exp %309 : vector<64x128xf32>
      %cst_66 = arith.constant 1.000000e+00 : f32
      %311 = vector.broadcast %cst_66 : f32 to vector<64x128xf32>
      %312 = arith.addf %311, %310 : vector<64x128xf32>
      %313 = arith.divf %311, %312 : vector<64x128xf32>
      %314 = arith.mulf %307, %301 : vector<64x128xf32>
      %315 = arith.addf %297, %314 : vector<64x128xf32>
      %316 = math.tanh %315 : vector<64x128xf32>
      %cst_67 = arith.constant 1.000000e+00 : f32
      %317 = vector.broadcast %cst_67 : f32 to vector<64x128xf32>
      %318 = arith.subf %317, %313 : vector<64x128xf32>
      %319 = arith.mulf %318, %316 : vector<64x128xf32>
      %320 = arith.mulf %313, %289 : vector<64x128xf32>
      %321 = arith.addf %319, %320 : vector<64x128xf32>
      %322 = arith.addi %3, %c7_i32 : i32
      %323 = vector.broadcast %322 : i32 to vector<64x1xi32>
      %324 = arith.cmpi sgt, %18, %323 : vector<64x1xi32>
      %325 = vector.shape_cast %324 : vector<64x1xi1> to vector<64x1xi1>
      %326 = vector.broadcast %325 : vector<64x1xi1> to vector<64x128xi1>
      %327 = arith.select %326, %321, %289 : vector<64x128xi1>, vector<64x128xf32>
      %c8_i32_68 = arith.constant 8 : i32
      %c0_69 = arith.constant 0 : index
      %c0_70 = arith.constant 0 : index
      %328 = vector.load %arg9[%c0_69, %c0_70] : memref<64x128xf32, #tpu.memory_space<vmem>>, vector<64x128xf32>
      tpu.vector_store %arg9[%c0_69, %c0_70], %327 {strides = array<i32>} : memref<64x128xf32, #tpu.memory_space<vmem>>, vector<64x128xf32>,
    } else {
    }
    return
  }
  func.func @transform_0(%arg0: i32, %arg1: i32, %arg2: memref<2xi32, #tpu.memory_space<smem>>) -> (i32, i32, i32) {
    %c0_i32 = arith.constant 0 : i32
    %c0_i32_0 = arith.constant 0 : i32
    return %arg1, %arg0, %c0_i32 : i32, i32, i32
  }
  func.func @transform_1(%arg0: i32, %arg1: i32, %arg2: memref<2xi32, #tpu.memory_space<smem>>) -> (i32, i32) {
    %c0_i32 = arith.constant 0 : i32
    %c0_i32_0 = arith.constant 0 : i32
    return %arg0, %c0_i32 : i32, i32
  }
  func.func @transform_2(%arg0: i32, %arg1: i32, %arg2: memref<2xi32, #tpu.memory_space<smem>>) -> (i32, i32) {
    %c0_i32 = arith.constant 0 : i32
    %c0_i32_0 = arith.constant 0 : i32
    %c0_i32_1 = arith.constant 0 : i32
    return %c0_i32, %c0_i32_0 : i32, i32
  }
  func.func @transform_3(%arg0: i32, %arg1: i32, %arg2: memref<2xi32, #tpu.memory_space<smem>>) -> (i32, i32) {
    %c0_i32 = arith.constant 0 : i32
    %c0_i32_0 = arith.constant 0 : i32
    %c0_i32_1 = arith.constant 0 : i32
    return %c0_i32, %c0_i32_0 : i32, i32
  }
  func.func @transform_4(%arg0: i32, %arg1: i32, %arg2: memref<2xi32, #tpu.memory_space<smem>>) -> (i32, i32) {
    %c0_i32 = arith.constant 0 : i32
    %c0_i32_0 = arith.constant 0 : i32
    %c0_i32_1 = arith.constant 0 : i32
    return %c0_i32, %c0_i32_0 : i32, i32
  }
  func.func @transform_5(%arg0: i32, %arg1: i32, %arg2: memref<2xi32, #tpu.memory_space<smem>>) -> (i32, i32) {
    %c0_i32 = arith.constant 0 : i32
    %c0_i32_0 = arith.constant 0 : i32
    %c0_i32_1 = arith.constant 0 : i32
    return %c0_i32, %c0_i32_0 : i32, i32
  }
  func.func @transform_6(%arg0: i32, %arg1: i32, %arg2: memref<2xi32, #tpu.memory_space<smem>>) -> (i32, i32) {
    %c0_i32 = arith.constant 0 : i32
    %c0_i32_0 = arith.constant 0 : i32
    return %arg0, %c0_i32 : i32, i32
  }
}

</mosaic_0001>

<llo_original>
// kernel: tpu_custom_call.1
$region0: #{tpu_custom_call.1}
  #allocation0 [shape = 'u32[]', space=smem, size = 0x4, offset = 0x4, fixed_abs, tag = 'smem constant byte address 0x4 - core index']
  #allocation1 [shape = 'u32[144,128]{1,0:T(1,128)}', space=vmem, size = 0x12000, scoped, tag = 'internal scratch']
  #allocation2 [shape = 'f32[8,64,384]{2,1,0:T(8,128)}', space=vmem, size = 0xc0000, scoped, tag = 'scratch operand']
  #allocation3 [shape = 's32[1]{0}', space=sflag, size = 0x4, scoped, tag = 'scoped memory for tpu_custom_call.1']
  #allocation4 [shape = 'u8[512]{0}', space=smem, size = 0x200, scoped, tag = 'prefetched SMEM operand 0']
  %s0 = inlined_call_operand.vmem [shape: s32[2], index: 0, kind: input, shape index: {}]
  %s1 = inlined_call_operand.vmem [shape: bf16[8,128,16], index: 1, kind: input, shape index: {}]
  %s2 = inlined_call_operand.vmem [shape: s32[128,1], index: 2, kind: input, shape index: {}]
  %s3 = inlined_call_operand.vmem [shape: bf16[16,384], index: 3, kind: input, shape index: {}]
  %s4 = inlined_call_operand.vmem [shape: bf16[128,384], index: 4, kind: input, shape index: {}]
  %s5 = inlined_call_operand.vmem [shape: f32[1,384], index: 5, kind: input, shape index: {}]
  %s6 = inlined_call_operand.vmem [shape: f32[1,128], index: 6, kind: input, shape index: {}]
  %s7 = inlined_call_operand.hbm [shape: f32[128,128], index: 7, kind: output, shape index: {}]
  %s8 = sld [smem:[#allocation0]]
  $region106: #{tpu_custom_call.1} parent=0
    _
  %s10 = ssub.s32 1, %s8
  %s11 = scalar_select 0, %s10, %s8
  %s12 = sshll.u32 %s0, 4
  %s13 = int_to_ptr.vmem [resolvable:$true] %s12
  %15 = dma.vmem_to_smem %s13, 16, [#allocation4], [#allocation3]
  %16 = dma.done [#allocation3], 16
  %17 = sfence
  $region1: #{tpu_custom_call.1} parent=0
    #allocation5 [shape = 'u8[262144]{0}', space=vmem, size = 0x40000, scoped, tag = 'input window, operand 1']
    #allocation6 [shape = 'u8[65536]{0}', space=vmem, size = 0x10000, scoped, tag = 'output window, operand 0']
    #allocation7 [shape = 's32[2]{0}', space=sflag, size = 0x8, scoped, tag = 'scoped memory for tpu_custom_call.1']
    %18 = vsyncpa [#allocation7], 0
    %s19 = scalar_lea.sflag [#allocation7], 1
    %20 = vsyncpa %s19, 0
    loop: start=0, step=1, limit=4
    $region2: #{tpu_custom_call.1} parent=1 // loop_pre_header
      _
    $region3: #{tpu_custom_call.1} parent=1 // loop_header
      %s22 = sphi 0, %s26
      %p23 = scmp.ge.s32.totalorder %s22, 4
      %s29 = sphi 0, %s41
      %s30 = sphi 0, %s37
      %s31 = sphi 0, %s29
      %s32 = sphi 0, %s30
      %s33 = sphi 0, %s31
      %s34 = sphi 0, %s32
      %s46 = sphi 0, %s48
      %s49 = sphi 0, %s46
      %s50 = sphi 0, %s49
      %s66 = sphi 0, %s50
      %s72 = sphi 0, %s74
      %s75 = sphi 0, %s72
      %s76 = sphi 0, %s75
      %s92 = sphi 0, %s76
      %s96 = sphi 0, %s96
      %s98 = sphi 0, %s96
      %s99 = sphi 0, %s98
      %s113 = sphi 0, %s99
      %s117 = sphi 0, %s117
      %s119 = sphi 0, %s117
      %s120 = sphi 0, %s119
      %s134 = sphi 0, %s120
      %s138 = sphi 0, %s138
      %s140 = sphi 0, %s138
      %s141 = sphi 0, %s140
      %s155 = sphi 0, %s141
      %s159 = sphi 0, %s159
      %s161 = sphi 0, %s159
      %s162 = sphi 0, %s161
      %s176 = sphi 0, %s162
      %s182 = sphi 0, %s184
      %s185 = sphi 0, %s182
      %s186 = sphi 0, %s185
      %s202 = sphi 0, %s186
    $region4: #{tpu_custom_call.1} parent=1 // loop_header_branch
      %25 = sbr.rel (%p23) target = $region8
    $region5: #{tpu_custom_call.1} parent=1 // loop_body
      %s27 = ssub.s32 %s22, 1
      %s28 = ssub.s32 %s22, 2
      %s35 = sadd.s32 1, %s30
      %p36 = scmp.ge.s32.totalorder %s35, 1
      %s37 = scalar_select %p36, 0, %s35
      %s38 = sadd.s32 1, %s29
      %s39 = scalar_select %p36, %s38, %s29
      %p40 = scmp.ge.s32.totalorder %s39, 2
      %s41 = scalar_select %p40, 0, %s39
      %s42 = ssub.s32 %s30, %s37
      %s43 = ssub.s32 %s29, %s41
      %s44 = sor.u32 %s42, %s43
      %p45 = scmp.eq.s32.totalorder %s44, 0
      %s47 = sadd.s32 %s46, 1
      %s48 = scalar_select %p45, %s46, %s47
      %p51 = pneg %p45
      %p52 = scmp.eq.s32.totalorder %s22, 1
      %p53 = por %p51, %p52
      %p54 = scmp.ne.s32.totalorder %s46, %s49
      %p55 = scmp.eq.s32.totalorder %s22, 0
      %p56 = por %p54, %p55
      %p57 = scmp.ne.s32.totalorder %s46, %s49
      %p58 = scmp.eq.s32.totalorder %s27, 1
      %p59 = por %p57, %p58
      %p60 = scmp.ne.s32.totalorder %s49, %s50
      %p61 = scmp.eq.s32.totalorder %s27, 0
      %p62 = por %p60, %p61
      %p63 = scmp.ne.s32.totalorder %s49, %s50
      %p64 = scmp.eq.s32.totalorder %s28, 1
      %p65 = por %p63, %p64
      %p67 = scmp.ne.s32.totalorder %s50, %s66
      %p68 = scmp.eq.s32.totalorder %s28, 0
      %p69 = por %p67, %p68
      %s70 = ssub.s32 %s29, %s41
      %p71 = scmp.eq.s32.totalorder %s70, 0
      %s73 = sadd.s32 %s72, 1
      %s74 = scalar_select %p71, %s72, %s73
      %p77 = pneg %p71
      %p78 = scmp.eq.s32.totalorder %s22, 1
      %p79 = por %p77, %p78
      %p80 = scmp.ne.s32.totalorder %s72, %s75
      %p81 = scmp.eq.s32.totalorder %s22, 0
      %p82 = por %p80, %p81
      %p83 = scmp.ne.s32.totalorder %s72, %s75
      %p84 = scmp.eq.s32.totalorder %s27, 1
      %p85 = por %p83, %p84
      %p86 = scmp.ne.s32.totalorder %s75, %s76
      %p87 = scmp.eq.s32.totalorder %s27, 0
      %p88 = por %p86, %p87
      %p89 = scmp.ne.s32.totalorder %s75, %s76
      %p90 = scmp.eq.s32.totalorder %s28, 1
      %p91 = por %p89, %p90
      %p93 = scmp.ne.s32.totalorder %s76, %s92
      %p94 = scmp.eq.s32.totalorder %s28, 0
      %p95 = por %p93, %p94
      %s97 = sadd.s32 %s96, 1
      %p100 = scmp.eq.s32.totalorder %s22, 1
      %p101 = scmp.ne.s32.totalorder %s96, %s98
      %p102 = scmp.eq.s32.totalorder %s22, 0
      %p103 = por %p101, %p102
      %p104 = scmp.ne.s32.totalorder %s96, %s98
      %p105 = scmp.eq.s32.totalorder %s27, 1
      %p106 = por %p104, %p105
      %p107 = scmp.ne.s32.totalorder %s98, %s99
      %p108 = scmp.eq.s32.totalorder %s27, 0
      %p109 = por %p107, %p108
      %p110 = scmp.ne.s32.totalorder %s98, %s99
      %p111 = scmp.eq.s32.totalorder %s28, 1
      %p112 = por %p110, %p111
      %p114 = scmp.ne.s32.totalorder %s99, %s113
      %p115 = scmp.eq.s32.totalorder %s28, 0
      %p116 = por %p114, %p115
      %s118 = sadd.s32 %s117, 1
      %p121 = scmp.eq.s32.totalorder %s22, 1
      %p122 = scmp.ne.s32.totalorder %s117, %s119
      %p123 = scmp.eq.s32.totalorder %s22, 0
      %p124 = por %p122, %p123
      %p125 = scmp.ne.s32.totalorder %s117, %s119
      %p126 = scmp.eq.s32.totalorder %s27, 1
      %p127 = por %p125, %p126
      %p128 = scmp.ne.s32.totalorder %s119, %s120
      %p129 = scmp.eq.s32.totalorder %s27, 0
      %p130 = por %p128, %p129
      %p131 = scmp.ne.s32.totalorder %s119, %s120
      %p132 = scmp.eq.s32.totalorder %s28, 1
      %p133 = por %p131, %p132
      %p135 = scmp.ne.s32.totalorder %s120, %s134
      %p136 = scmp.eq.s32.totalorder %s28, 0
      %p137 = por %p135, %p136
      %s139 = sadd.s32 %s138, 1
      %p142 = scmp.eq.s32.totalorder %s22, 1
      %p143 = scmp.ne.s32.totalorder %s138, %s140
      %p144 = scmp.eq.s32.totalorder %s22, 0
      %p145 = por %p143, %p144
      %p146 = scmp.ne.s32.totalorder %s138, %s140
      %p147 = scmp.eq.s32.totalorder %s27, 1
      %p148 = por %p146, %p147
      %p149 = scmp.ne.s32.totalorder %s140, %s141
      %p150 = scmp.eq.s32.totalorder %s27, 0
      %p151 = por %p149, %p150
      %p152 = scmp.ne.s32.totalorder %s140, %s141
      %p153 = scmp.eq.s32.totalorder %s28, 1
      %p154 = por %p152, %p153
      %p156 = scmp.ne.s32.totalorder %s141, %s155
      %p157 = scmp.eq.s32.totalorder %s28, 0
      %p158 = por %p156, %p157
      %s160 = sadd.s32 %s159, 1
      %p163 = scmp.eq.s32.totalorder %s22, 1
      %p164 = scmp.ne.s32.totalorder %s159, %s161
      %p165 = scmp.eq.s32.totalorder %s22, 0
      %p166 = por %p164, %p165
      %p167 = scmp.ne.s32.totalorder %s159, %s161
      %p168 = scmp.eq.s32.totalorder %s27, 1
      %p169 = por %p167, %p168
      %p170 = scmp.ne.s32.totalorder %s161, %s162
      %p171 = scmp.eq.s32.totalorder %s27, 0
      %p172 = por %p170, %p171
      %p173 = scmp.ne.s32.totalorder %s161, %s162
      %p174 = scmp.eq.s32.totalorder %s28, 1
      %p175 = por %p173, %p174
      %p177 = scmp.ne.s32.totalorder %s162, %s176
      %p178 = scmp.eq.s32.totalorder %s28, 0
      %p179 = por %p177, %p178
      %s180 = ssub.s32 %s29, %s41
      %p181 = scmp.eq.s32.totalorder %s180, 0
      %s183 = sadd.s32 %s182, 1
      %s184 = scalar_select %p181, %s182, %s183
      %p187 = pneg %p181
      %p188 = scmp.eq.s32.totalorder %s22, 1
      %p189 = por %p187, %p188
      %p190 = scmp.ne.s32.totalorder %s182, %s185
      %p191 = scmp.eq.s32.totalorder %s22, 0
      %p192 = por %p190, %p191
      %p193 = scmp.ne.s32.totalorder %s182, %s185
      %p194 = scmp.eq.s32.totalorder %s27, 1
      %p195 = por %p193, %p194
      %p196 = scmp.ne.s32.totalorder %s185, %s186
      %p197 = scmp.eq.s32.totalorder %s27, 0
      %p198 = por %p196, %p197
      %p199 = scmp.ne.s32.totalorder %s185, %s186
      %p200 = scmp.eq.s32.totalorder %s28, 1
      %p201 = por %p199, %p200
      %p203 = scmp.ne.s32.totalorder %s186, %s202
      %p204 = scmp.eq.s32.totalorder %s28, 0
      %p205 = por %p203, %p204
      %p206 = scmp.le.s32.totalorder 1, %s22
      %p207 = scmp.lt.s32.totalorder %s22, 3
      %p208 = pnand %p206, %p207
      %p209 = pneg %p208
      // Predicated region
      $region9: #{tpu_custom_call.1} parent=5 // pred_check
        _
      $region10: #{tpu_custom_call.1} parent=5 // pred_check_branch
        %211 = sbr.rel (%p208) target = $region12
      $region11: #{tpu_custom_call.1} parent=5 // pred_region
        %s212 = ssub.s32 %s22, 1
        // Predicated region
        $region13: #{tpu_custom_call.1} parent=11 // pred_check
          %p213 = pneg %p109
        $region14: #{tpu_custom_call.1} parent=11 // pred_check_branch
          %215 = sbr.rel (%p213) target = $region16
        $region15: #{tpu_custom_call.1} parent=11 // pred_region
          _
        $region16: #{tpu_custom_call.1} parent=11 // pred_fallthru
          _
        // Predicated region
        $region17: #{tpu_custom_call.1} parent=11 // pred_check
          %p216 = pneg %p130
        $region18: #{tpu_custom_call.1} parent=11 // pred_check_branch
          %218 = sbr.rel (%p216) target = $region20
        $region19: #{tpu_custom_call.1} parent=11 // pred_region
          _
        $region20: #{tpu_custom_call.1} parent=11 // pred_fallthru
          _
        // Predicated region
        $region21: #{tpu_custom_call.1} parent=11 // pred_check
          %p219 = pneg %p151
        $region22: #{tpu_custom_call.1} parent=11 // pred_check_branch
          %221 = sbr.rel (%p219) target = $region24
        $region23: #{tpu_custom_call.1} parent=11 // pred_region
          _
        $region24: #{tpu_custom_call.1} parent=11 // pred_fallthru
          _
        // Predicated region
        $region25: #{tpu_custom_call.1} parent=11 // pred_check
          %p222 = pneg %p172
        $region26: #{tpu_custom_call.1} parent=11 // pred_check_branch
          %224 = sbr.rel (%p222) target = $region28
        $region27: #{tpu_custom_call.1} parent=11 // pred_region
          _
        $region28: #{tpu_custom_call.1} parent=11 // pred_fallthru
          _
      $region12: #{tpu_custom_call.1} parent=5 // pred_fallthru
        _
      %p225 = scmp.lt.s32.totalorder %s22, 2
      // Predicated region
      $region29: #{tpu_custom_call.1} parent=5 // pred_check
        %p226 = pneg %p225
      $region30: #{tpu_custom_call.1} parent=5 // pred_check_branch
        %228 = sbr.rel (%p226) target = $region32
      $region31: #{tpu_custom_call.1} parent=5 // pred_region
        // Predicated region
        $region33: #{tpu_custom_call.1} parent=31 // pred_check
          %p229 = pneg %p56
        $region34: #{tpu_custom_call.1} parent=31 // pred_check_branch
          %231 = sbr.rel (%p229) target = $region36
        $region35: #{tpu_custom_call.1} parent=31 // pred_region
          %s232 = sand.u32 %s46, 1
          %s233 = sand.u32 %s46, 1
          %s234 = smul.addr %s233, 256
          %s235 = scalar_lea.vmem [#allocation5], %s234
          %s236 = smul.u32 8, %s30
          %s237 = smul.u32 8, %s29
          %s238 = smul.addr %s236, 16
          %s239 = sadd.s32 %s237, %s238
          %s240 = smul.addr %s239, 4
          %s241 = scalar_lea.vmem %s1, %s240
          // Predicated region
          $region37: #{tpu_custom_call.1} parent=35 // pred_check
            _
          $region38: #{tpu_custom_call.1} parent=35 // pred_check_branch
            %243 = sbr.rel (0) target = $region40
          $region39: #{tpu_custom_call.1} parent=35 // pred_region
            // Predicated region
            $region41: #{tpu_custom_call.1} parent=39 // pred_check
              _
            $region42: #{tpu_custom_call.1} parent=39 // pred_check_branch
              %245 = sbr.rel target = $region44
            $region43: #{tpu_custom_call.1} parent=39 // pred_region
              // Predicated region
              $region56: #{tpu_custom_call.1} parent=43 // pred_check
                _
              $region57: #{tpu_custom_call.1} parent=43 // pred_check_branch
                %387 = sbr.rel (0) target = $region59
              $region58: #{tpu_custom_call.1} parent=43 // pred_region
                loop: start=0, step=1, limit=1
                $region60: #{tpu_custom_call.1} parent=58 // loop_pre_header
                  _
                $region61: #{tpu_custom_call.1} parent=58 // loop_header
                  %s389 = sphi 0, %s393
                  %p390 = scmp.ge.s32.totalorder %s389, 1
                  %s394 = sphi %s241, %s241
                  %s395 = sphi %s235, %s235
                $region62: #{tpu_custom_call.1} parent=58 // loop_header_branch
                  %392 = sbr.rel (%p390) target = $region66
                $region63: #{tpu_custom_call.1} parent=58 // loop_body
                  _
                $region64: #{tpu_custom_call.1} parent=58 // loop_footer
                  %s393 = sadd.s32 1, %s389
                $region65: #{tpu_custom_call.1} parent=58 // loop_footer_branch
                  %388 = sbr.rel target = $region61
                $region66: #{tpu_custom_call.1} parent=58 // loop_exit
                  _
                %s397 = ssub.s32 16, 1
                loop: start=0, step=1, limit=1
                $region67: #{tpu_custom_call.1} parent=58 // loop_pre_header
                  _
                $region68: #{tpu_custom_call.1} parent=58 // loop_header
                  %s399 = sphi 0, %s403
                  %p400 = scmp.ge.s32.totalorder %s399, 1
                  %s404 = sphi %s241, %s241
                  %s405 = sphi %s235, %s235
                $region69: #{tpu_custom_call.1} parent=58 // loop_header_branch
                  %402 = sbr.rel (%p400) target = $region73
                $region70: #{tpu_custom_call.1} parent=58 // loop_body
                  %v406 = vld [vmem:[%s404] sm:%s397]
                  %407 = vst [vmem:[%s405] sm:%s397] %v406
                  %v408 = vld [vmem:[%s404 + $0x4] sm:%s397]
                  %409 = vst [vmem:[%s405 + $0x4] sm:%s397] %v408
                  %v410 = vld [vmem:[%s404 + $0x8] sm:%s397]
                  %411 = vst [vmem:[%s405 + $0x8] sm:%s397] %v410
                  %v412 = vld [vmem:[%s404 + $0xc] sm:%s397]
                  %413 = vst [vmem:[%s405 + $0xc] sm:%s397] %v412
                  %v414 = vld [vmem:[%s404 + $0x10] sm:%s397]
                  %415 = vst [vmem:[%s405 + $0x10] sm:%s397] %v414
                  %v416 = vld [vmem:[%s404 + $0x14] sm:%s397]
                  %417 = vst [vmem:[%s405 + $0x14] sm:%s397] %v416
                  %v418 = vld [vmem:[%s404 + $0x18] sm:%s397]
                  %419 = vst [vmem:[%s405 + $0x18] sm:%s397] %v418
                  %v420 = vld [vmem:[%s404 + $0x1c] sm:%s397]
                  %421 = vst [vmem:[%s405 + $0x1c] sm:%s397] %v420
                  %v422 = vld [vmem:[%s404 + $0x40] sm:%s397]
                  %423 = vst [vmem:[%s405 + $0x20] sm:%s397] %v422
                  %v424 = vld [vmem:[%s404 + $0x44] sm:%s397]
                  %425 = vst [vmem:[%s405 + $0x24] sm:%s397] %v424
                  %v426 = vld [vmem:[%s404 + $0x48] sm:%s397]
                  %427 = vst [vmem:[%s405 + $0x28] sm:%s397] %v426
                  %v428 = vld [vmem:[%s404 + $0x4c] sm:%s397]
                  %429 = vst [vmem:[%s405 + $0x2c] sm:%s397] %v428
                  %v430 = vld [vmem:[%s404 + $0x50] sm:%s397]
                  %431 = vst [vmem:[%s405 + $0x30] sm:%s397] %v430
                  %v432 = vld [vmem:[%s404 + $0x54] sm:%s397]
                  %433 = vst [vmem:[%s405 + $0x34] sm:%s397] %v432
                  %v434 = vld [vmem:[%s404 + $0x58] sm:%s397]
                  %435 = vst [vmem:[%s405 + $0x38] sm:%s397] %v434
                  %v436 = vld [vmem:[%s404 + $0x5c] sm:%s397]
                  %437 = vst [vmem:[%s405 + $0x3c] sm:%s397] %v436
                  %v438 = vld [vmem:[%s404 + $0x80] sm:%s397]
                  %439 = vst [vmem:[%s405 + $0x40] sm:%s397] %v438
                  %v440 = vld [vmem:[%s404 + $0x84] sm:%s397]
                  %441 = vst [vmem:[%s405 + $0x44] sm:%s397] %v440
                  %v442 = vld [vmem:[%s404 + $0x88] sm:%s397]
                  %443 = vst [vmem:[%s405 + $0x48] sm:%s397] %v442
                  %v444 = vld [vmem:[%s404 + $0x8c] sm:%s397]
                  %445 = vst [vmem:[%s405 + $0x4c] sm:%s397] %v444
                  %v446 = vld [vmem:[%s404 + $0x90] sm:%s397]
                  %447 = vst [vmem:[%s405 + $0x50] sm:%s397] %v446
                  %v448 = vld [vmem:[%s404 + $0x94] sm:%s397]
                  %449 = vst [vmem:[%s405 + $0x54] sm:%s397] %v448
                  %v450 = vld [vmem:[%s404 + $0x98] sm:%s397]
                  %451 = vst [vmem:[%s405 + $0x58] sm:%s397] %v450
                  %v452 = vld [vmem:[%s404 + $0x9c] sm:%s397]
                  %453 = vst [vmem:[%s405 + $0x5c] sm:%s397] %v452
                  %v454 = vld [vmem:[%s404 + $0xc0] sm:%s397]
                  %455 = vst [vmem:[%s405 + $0x60] sm:%s397] %v454
                  %v456 = vld [vmem:[%s404 + $0xc4] sm:%s397]
                  %457 = vst [vmem:[%s405 + $0x64] sm:%s397] %v456
                  %v458 = vld [vmem:[%s404 + $0xc8] sm:%s397]
                  %459 = vst [vmem:[%s405 + $0x68] sm:%s397] %v458
                  %v460 = vld [vmem:[%s404 + $0xcc] sm:%s397]
                  %461 = vst [vmem:[%s405 + $0x6c] sm:%s397] %v460
                  %v462 = vld [vmem:[%s404 + $0xd0] sm:%s397]
                  %463 = vst [vmem:[%s405 + $0x70] sm:%s397] %v462
                  %v464 = vld [vmem:[%s404 + $0xd4] sm:%s397]
                  %465 = vst [vmem:[%s405 + $0x74] sm:%s397] %v464
                  %v466 = vld [vmem:[%s404 + $0xd8] sm:%s397]
                  %467 = vst [vmem:[%s405 + $0x78] sm:%s397] %v466
                  %v468 = vld [vmem:[%s404 + $0xdc] sm:%s397]
                  %469 = vst [vmem:[%s405 + $0x7c] sm:%s397] %v468
                  %v470 = vld [vmem:[%s404 + $0x100] sm:%s397]
                  %471 = vst [vmem:[%s405 + $0x80] sm:%s397] %v470
                  %v472 = vld [vmem:[%s404 + $0x104] sm:%s397]
                  %473 = vst [vmem:[%s405 + $0x84] sm:%s397] %v472
                  %v474 = vld [vmem:[%s404 + $0x108] sm:%s397]
                  %475 = vst [vmem:[%s405 + $0x88] sm:%s397] %v474
                  %v476 = vld [vmem:[%s404 + $0x10c] sm:%s397]
                  %477 = vst [vmem:[%s405 + $0x8c] sm:%s397] %v476
                  %v478 = vld [vmem:[%s404 + $0x110] sm:%s397]
                  %479 = vst [vmem:[%s405 + $0x90] sm:%s397] %v478
                  %v480 = vld [vmem:[%s404 + $0x114] sm:%s397]
                  %481 = vst [vmem:[%s405 + $0x94] sm:%s397] %v480
                  %v482 = vld [vmem:[%s404 + $0x118] sm:%s397]
                  %483 = vst [vmem:[%s405 + $0x98] sm:%s397] %v482
                  %v484 = vld [vmem:[%s404 + $0x11c] sm:%s397]
                  %485 = vst [vmem:[%s405 + $0x9c] sm:%s397] %v484
                  %v486 = vld [vmem:[%s404 + $0x140] sm:%s397]
                  %487 = vst [vmem:[%s405 + $0xa0] sm:%s397] %v486
                  %v488 = vld [vmem:[%s404 + $0x144] sm:%s397]
                  %489 = vst [vmem:[%s405 + $0xa4] sm:%s397] %v488
                  %v490 = vld [vmem:[%s404 + $0x148] sm:%s397]
                  %491 = vst [vmem:[%s405 + $0xa8] sm:%s397] %v490
                  %v492 = vld [vmem:[%s404 + $0x14c] sm:%s397]
                  %493 = vst [vmem:[%s405 + $0xac] sm:%s397] %v492
                  %v494 = vld [vmem:[%s404 + $0x150] sm:%s397]
                  %495 = vst [vmem:[%s405 + $0xb0] sm:%s397] %v494
                  %v496 = vld [vmem:[%s404 + $0x154] sm:%s397]
                  %497 = vst [vmem:[%s405 + $0xb4] sm:%s397] %v496
                  %v498 = vld [vmem:[%s404 + $0x158] sm:%s397]
                  %499 = vst [vmem:[%s405 + $0xb8] sm:%s397] %v498
                  %v500 = vld [vmem:[%s404 + $0x15c] sm:%s397]
                  %501 = vst [vmem:[%s405 + $0xbc] sm:%s397] %v500
                  %v502 = vld [vmem:[%s404 + $0x180] sm:%s397]
                  %503 = vst [vmem:[%s405 + $0xc0] sm:%s397] %v502
                  %v504 = vld [vmem:[%s404 + $0x184] sm:%s397]
                  %505 = vst [vmem:[%s405 + $0xc4] sm:%s397] %v504
                  %v506 = vld [vmem:[%s404 + $0x188] sm:%s397]
                  %507 = vst [vmem:[%s405 + $0xc8] sm:%s397] %v506
                  %v508 = vld [vmem:[%s404 + $0x18c] sm:%s397]
                  %509 = vst [vmem:[%s405 + $0xcc] sm:%s397] %v508
                  %v510 = vld [vmem:[%s404 + $0x190] sm:%s397]
                  %511 = vst [vmem:[%s405 + $0xd0] sm:%s397] %v510
                  %v512 = vld [vmem:[%s404 + $0x194] sm:%s397]
                  %513 = vst [vmem:[%s405 + $0xd4] sm:%s397] %v512
                  %v514 = vld [vmem:[%s404 + $0x198] sm:%s397]
                  %515 = vst [vmem:[%s405 + $0xd8] sm:%s397] %v514
                  %v516 = vld [vmem:[%s404 + $0x19c] sm:%s397]
                  %517 = vst [vmem:[%s405 + $0xdc] sm:%s397] %v516
                  %v518 = vld [vmem:[%s404 + $0x1c0] sm:%s397]
                  %519 = vst [vmem:[%s405 + $0xe0] sm:%s397] %v518
                  %v520 = vld [vmem:[%s404 + $0x1c4] sm:%s397]
                  %521 = vst [vmem:[%s405 + $0xe4] sm:%s397] %v520
                  %v522 = vld [vmem:[%s404 + $0x1c8] sm:%s397]
                  %523 = vst [vmem:[%s405 + $0xe8] sm:%s397] %v522
                  %v524 = vld [vmem:[%s404 + $0x1cc] sm:%s397]
                  %525 = vst [vmem:[%s405 + $0xec] sm:%s397] %v524
                  %v526 = vld [vmem:[%s404 + $0x1d0] sm:%s397]
                  %527 = vst [vmem:[%s405 + $0xf0] sm:%s397] %v526
                  %v528 = vld [vmem:[%s404 + $0x1d4] sm:%s397]
                  %529 = vst [vmem:[%s405 + $0xf4] sm:%s397] %v528
                  %v530 = vld [vmem:[%s404 + $0x1d8] sm:%s397]
                  %531 = vst [vmem:[%s405 + $0xf8] sm:%s397] %v530
                  %v532 = vld [vmem:[%s404 + $0x1dc] sm:%s397]
                  %533 = vst [vmem:[%s405 + $0xfc] sm:%s397] %v532
                $region71: #{tpu_custom_call.1} parent=58 // loop_footer
                  %s403 = sadd.s32 1, %s399
                $region72: #{tpu_custom_call.1} parent=58 // loop_footer_branch
                  %398 = sbr.rel target = $region68
                $region73: #{tpu_custom_call.1} parent=58 // loop_exit
                  _
              $region59: #{tpu_custom_call.1} parent=43 // pred_fallthru
                _
            $region44: #{tpu_custom_call.1} parent=39 // pred_fallthru
              _
            // Predicated region
            $region45: #{tpu_custom_call.1} parent=39 // pred_check
              _
            $region46: #{tpu_custom_call.1} parent=39 // pred_check_branch
              %247 = sbr.rel (0) target = $region48
            $region47: #{tpu_custom_call.1} parent=39 // pred_region
              %s249 = ssub.s32 16, 1
              loop: start=0, step=1, limit=1
              $region49: #{tpu_custom_call.1} parent=47 // loop_pre_header
                _
              $region50: #{tpu_custom_call.1} parent=47 // loop_header
                %s251 = sphi 0, %s255
                %p252 = scmp.ge.s32.totalorder %s251, 1
                %s256 = sphi %s241, %s241
                %s257 = sphi %s235, %s235
              $region51: #{tpu_custom_call.1} parent=47 // loop_header_branch
                %254 = sbr.rel (%p252) target = $region55
              $region52: #{tpu_custom_call.1} parent=47 // loop_body
                %v258 = vld [vmem:[%s256] sm:%s249]
                %259 = vst [vmem:[%s257] sm:%s249] %v258
                %v260 = vld [vmem:[%s256 + $0x4] sm:%s249]
                %261 = vst [vmem:[%s257 + $0x4] sm:%s249] %v260
                %v262 = vld [vmem:[%s256 + $0x8] sm:%s249]
                %263 = vst [vmem:[%s257 + $0x8] sm:%s249] %v262
                %v264 = vld [vmem:[%s256 + $0xc] sm:%s249]
                %265 = vst [vmem:[%s257 + $0xc] sm:%s249] %v264
                %v266 = vld [vmem:[%s256 + $0x10] sm:%s249]
                %267 = vst [vmem:[%s257 + $0x10] sm:%s249] %v266
                %v268 = vld [vmem:[%s256 + $0x14] sm:%s249]
                %269 = vst [vmem:[%s257 + $0x14] sm:%s249] %v268
                %v270 = vld [vmem:[%s256 + $0x18] sm:%s249]
                %271 = vst [vmem:[%s257 + $0x18] sm:%s249] %v270
                %v272 = vld [vmem:[%s256 + $0x1c] sm:%s249]
                %273 = vst [vmem:[%s257 + $0x1c] sm:%s249] %v272
                %v274 = vld [vmem:[%s256 + $0x40] sm:%s249]
                %275 = vst [vmem:[%s257 + $0x20] sm:%s249] %v274
                %v276 = vld [vmem:[%s256 + $0x44] sm:%s249]
                %277 = vst [vmem:[%s257 + $0x24] sm:%s249] %v276
                %v278 = vld [vmem:[%s256 + $0x48] sm:%s249]
                %279 = vst [vmem:[%s257 + $0x28] sm:%s249] %v278
                %v280 = vld [vmem:[%s256 + $0x4c] sm:%s249]
                %281 = vst [vmem:[%s257 + $0x2c] sm:%s249] %v280
                %v282 = vld [vmem:[%s256 + $0x50] sm:%s249]
                %283 = vst [vmem:[%s257 + $0x30] sm:%s249] %v282
                %v284 = vld [vmem:[%s256 + $0x54] sm:%s249]
                %285 = vst [vmem:[%s257 + $0x34] sm:%s249] %v284
                %v286 = vld [vmem:[%s256 + $0x58] sm:%s249]
                %287 = vst [vmem:[%s257 + $0x38] sm:%s249] %v286
                %v288 = vld [vmem:[%s256 + $0x5c] sm:%s249]
                %289 = vst [vmem:[%s257 + $0x3c] sm:%s249] %v288
                %v290 = vld [vmem:[%s256 + $0x80] sm:%s249]
                %291 = vst [vmem:[%s257 + $0x40] sm:%s249] %v290
                %v292 = vld [vmem:[%s256 + $0x84] sm:%s249]
                %293 = vst [vmem:[%s257 + $0x44] sm:%s249] %v292
                %v294 = vld [vmem:[%s256 + $0x88] sm:%s249]
                %295 = vst [vmem:[%s257 + $0x48] sm:%s249] %v294
                %v296 = vld [vmem:[%s256 + $0x8c] sm:%s249]
                %297 = vst [vmem:[%s257 + $0x4c] sm:%s249] %v296
                %v298 = vld [vmem:[%s256 + $0x90] sm:%s249]
                %299 = vst [vmem:[%s257 + $0x50] sm:%s249] %v298
                %v300 = vld [vmem:[%s256 + $0x94] sm:%s249]
                %301 = vst [vmem:[%s257 + $0x54] sm:%s249] %v300
                %v302 = vld [vmem:[%s256 + $0x98] sm:%s249]
                %303 = vst [vmem:[%s257 + $0x58] sm:%s249] %v302
                %v304 = vld [vmem:[%s256 + $0x9c] sm:%s249]
                %305 = vst [vmem:[%s257 + $0x5c] sm:%s249] %v304
                %v306 = vld [vmem:[%s256 + $0xc0] sm:%s249]
                %307 = vst [vmem:[%s257 + $0x60] sm:%s249] %v306
                %v308 = vld [vmem:[%s256 + $0xc4] sm:%s249]
                %309 = vst [vmem:[%s257 + $0x64] sm:%s249] %v308
                %v310 = vld [vmem:[%s256 + $0xc8] sm:%s249]
                %311 = vst [vmem:[%s257 + $0x68] sm:%s249] %v310
                %v312 = vld [vmem:[%s256 + $0xcc] sm:%s249]
                %313 = vst [vmem:[%s257 + $0x6c] sm:%s249] %v312
                %v314 = vld [vmem:[%s256 + $0xd0] sm:%s249]
                %315 = vst [vmem:[%s257 + $0x70] sm:%s249] %v314
                %v316 = vld [vmem:[%s256 + $0xd4] sm:%s249]
                %317 = vst [vmem:[%s257 + $0x74] sm:%s249] %v316
                %v318 = vld [vmem:[%s256 + $0xd8] sm:%s249]
                %319 = vst [vmem:[%s257 + $0x78] sm:%s249] %v318
                %v320 = vld [vmem:[%s256 + $0xdc] sm:%s249]
                %321 = vst [vmem:[%s257 + $0x7c] sm:%s249] %v320
                %v322 = vld [vmem:[%s256 + $0x100] sm:%s249]
                %323 = vst [vmem:[%s257 + $0x80] sm:%s249] %v322
                %v324 = vld [vmem:[%s256 + $0x104] sm:%s249]
                %325 = vst [vmem:[%s257 + $0x84] sm:%s249] %v324
                %v326 = vld [vmem:[%s256 + $0x108] sm:%s249]
                %327 = vst [vmem:[%s257 + $0x88] sm:%s249] %v326
                %v328 = vld [vmem:[%s256 + $0x10c] sm:%s249]
                %329 = vst [vmem:[%s257 + $0x8c] sm:%s249] %v328
                %v330 = vld [vmem:[%s256 + $0x110] sm:%s249]
                %331 = vst [vmem:[%s257 + $0x90] sm:%s249] %v330
                %v332 = vld [vmem:[%s256 + $0x114] sm:%s249]
                %333 = vst [vmem:[%s257 + $0x94] sm:%s249] %v332
                %v334 = vld [vmem:[%s256 + $0x118] sm:%s249]
                %335 = vst [vmem:[%s257 + $0x98] sm:%s249] %v334
                %v336 = vld [vmem:[%s256 + $0x11c] sm:%s249]
                %337 = vst [vmem:[%s257 + $0x9c] sm:%s249] %v336
                %v338 = vld [vmem:[%s256 + $0x140] sm:%s249]
                %339 = vst [vmem:[%s257 + $0xa0] sm:%s249] %v338
                %v340 = vld [vmem:[%s256 + $0x144] sm:%s249]
                %341 = vst [vmem:[%s257 + $0xa4] sm:%s249] %v340
                %v342 = vld [vmem:[%s256 + $0x148] sm:%s249]
                %343 = vst [vmem:[%s257 + $0xa8] sm:%s249] %v342
                %v344 = vld [vmem:[%s256 + $0x14c] sm:%s249]
                %345 = vst [vmem:[%s257 + $0xac] sm:%s249] %v344
                %v346 = vld [vmem:[%s256 + $0x150] sm:%s249]
                %347 = vst [vmem:[%s257 + $0xb0] sm:%s249] %v346
                %v348 = vld [vmem:[%s256 + $0x154] sm:%s249]
                %349 = vst [vmem:[%s257 + $0xb4] sm:%s249] %v348
                %v350 = vld [vmem:[%s256 + $0x158] sm:%s249]
                %351 = vst [vmem:[%s257 + $0xb8] sm:%s249] %v350
                %v352 = vld [vmem:[%s256 + $0x15c] sm:%s249]
                %353 = vst [vmem:[%s257 + $0xbc] sm:%s249] %v352
                %v354 = vld [vmem:[%s256 + $0x180] sm:%s249]
                %355 = vst [vmem:[%s257 + $0xc0] sm:%s249] %v354
                %v356 = vld [vmem:[%s256 + $0x184] sm:%s249]
                %357 = vst [vmem:[%s257 + $0xc4] sm:%s249] %v356
                %v358 = vld [vmem:[%s256 + $0x188] sm:%s249]
                %359 = vst [vmem:[%s257 + $0xc8] sm:%s249] %v358
                %v360 = vld [vmem:[%s256 + $0x18c] sm:%s249]
                %361 = vst [vmem:[%s257 + $0xcc] sm:%s249] %v360
                %v362 = vld [vmem:[%s256 + $0x190] sm:%s249]
                %363 = vst [vmem:[%s257 + $0xd0] sm:%s249] %v362
                %v364 = vld [vmem:[%s256 + $0x194] sm:%s249]
                %365 = vst [vmem:[%s257 + $0xd4] sm:%s249] %v364
                %v366 = vld [vmem:[%s256 + $0x198] sm:%s249]
                %367 = vst [vmem:[%s257 + $0xd8] sm:%s249] %v366
                %v368 = vld [vmem:[%s256 + $0x19c] sm:%s249]
                %369 = vst [vmem:[%s257 + $0xdc] sm:%s249] %v368
                %v370 = vld [vmem:[%s256 + $0x1c0] sm:%s249]
                %371 = vst [vmem:[%s257 + $0xe0] sm:%s249] %v370
                %v372 = vld [vmem:[%s256 + $0x1c4] sm:%s249]
                %373 = vst [vmem:[%s257 + $0xe4] sm:%s249] %v372
                %v374 = vld [vmem:[%s256 + $0x1c8] sm:%s249]
                %375 = vst [vmem:[%s257 + $0xe8] sm:%s249] %v374
                %v376 = vld [vmem:[%s256 + $0x1cc] sm:%s249]
                %377 = vst [vmem:[%s257 + $0xec] sm:%s249] %v376
                %v378 = vld [vmem:[%s256 + $0x1d0] sm:%s249]
                %379 = vst [vmem:[%s257 + $0xf0] sm:%s249] %v378
                %v380 = vld [vmem:[%s256 + $0x1d4] sm:%s249]
                %381 = vst [vmem:[%s257 + $0xf4] sm:%s249] %v380
                %v382 = vld [vmem:[%s256 + $0x1d8] sm:%s249]
                %383 = vst [vmem:[%s257 + $0xf8] sm:%s249] %v382
                %v384 = vld [vmem:[%s256 + $0x1dc] sm:%s249]
                %385 = vst [vmem:[%s257 + $0xfc] sm:%s249] %v384
              $region53: #{tpu_custom_call.1} parent=47 // loop_footer
                %s255 = sadd.s32 1, %s251
              $region54: #{tpu_custom_call.1} parent=47 // loop_footer_branch
                %250 = sbr.rel target = $region50
              $region55: #{tpu_custom_call.1} parent=47 // loop_exit
                _
            $region48: #{tpu_custom_call.1} parent=39 // pred_fallthru
              _
          $region40: #{tpu_custom_call.1} parent=35 // pred_fallthru
            _
          %534 = vnop
        $region36: #{tpu_custom_call.1} parent=31 // pred_fallthru
          _
        // Predicated region
        $region74: #{tpu_custom_call.1} parent=31 // pred_check
          %p535 = pneg %p82
        $region75: #{tpu_custom_call.1} parent=31 // pred_check_branch
          %537 = sbr.rel (%p535) target = $region77
        $region76: #{tpu_custom_call.1} parent=31 // pred_region
          %s538 = smul.u32 8, %s29
          %p539 = scmp.lt.s32.totalorder %s538, 15
          %s540 = scalar_select %p539, %s538, 15
          %s541 = smul.addr %s540, 8
          %s542 = scalar_lea.vmem %s2, %s541
          %s543 = smul.u32 8, %s29
        $region77: #{tpu_custom_call.1} parent=31 // pred_fallthru
          _
      $region32: #{tpu_custom_call.1} parent=5 // pred_fallthru
        _
      %p544 = scmp.le.s32.totalorder 1, %s22
      %p545 = scmp.lt.s32.totalorder %s22, 3
      %p546 = pnand %p544, %p545
      %p547 = pneg %p546
      // Predicated region
      $region78: #{tpu_custom_call.1} parent=5 // pred_check
        _
      $region79: #{tpu_custom_call.1} parent=5 // pred_check_branch
        %549 = sbr.rel (%p546) target = $region81
      $region80: #{tpu_custom_call.1} parent=5 // pred_region
        %s550 = ssub.s32 %s22, 1
        %s551 = sand.u32 %s49, 1
        %s552 = sand.u32 %s49, 1
        %s553 = smul.addr %s552, 256
        %s554 = scalar_lea.vmem [#allocation5], %s553
        // Predicated region
        $region82: #{tpu_custom_call.1} parent=80 // pred_check
          %p555 = pneg %p62
        $region83: #{tpu_custom_call.1} parent=80 // pred_check_branch
          %557 = sbr.rel (%p555) target = $region85
        $region84: #{tpu_custom_call.1} parent=80 // pred_region
          _
        $region85: #{tpu_custom_call.1} parent=80 // pred_fallthru
          _
        %s558 = sand.u32 %s49, 1
        %s559 = sand.u32 %s49, 1
        %s560 = smul.addr %s559, 256
        %s561 = scalar_lea.vmem [#allocation5], %s560
        %p562 = pneg %p62
        %p563 = pneg %p59
        %s564 = smul.u32 8, %s31
        %p565 = scmp.lt.s32.totalorder %s564, 15
        %s566 = scalar_select %p565, %s564, 15
        %s567 = smul.addr %s566, 8
        %s568 = scalar_lea.vmem %s2, %s567
        %p569 = pneg %p88
        %p570 = pneg %p85
        %p571 = pneg %p109
        %p572 = pneg %p106
        %p573 = pneg %p130
        %p574 = pneg %p127
        %p575 = pneg %p151
        %p576 = pneg %p148
        %p577 = pneg %p172
        %p578 = pneg %p169
        %p579 = pneg %p198
        %p580 = pneg %p195
        %s581 = sand.u32 %s185, 1
        %s582 = scalar_lea.sflag [#allocation7], %s581
        %s583 = sand.u32 %s185, 1
        %s584 = smul.addr %s583, 64
        %s585 = scalar_lea.vmem [#allocation6], %s584
        %s586 = smul.u32 8, %s32
        %s587 = smul.u32 8, %s31
        %s588 = smul.u32 8, %s31
        %p589 = scmp.lt.s32.totalorder %s588, 15
        %s590 = scalar_select %p589, %s588, 15
        %s591 = smul.addr %s590, 8
        %s592 = scalar_lea.vmem %s2, %s591
        %s593 = smul.u32 8, %s31
        %s594 = smul.u32 8, %s31
        %p596 = scmp.eq.s32.totalorder %s32, 0
        // Predicated region
        $region86: #{tpu_custom_call.1} parent=80 // pred_check
          %p597 = pneg %p596
        $region87: #{tpu_custom_call.1} parent=80 // pred_check_branch
          %599 = sbr.rel (%p597) target = $region89
        $region88: #{tpu_custom_call.1} parent=80 // pred_region
          %600 = vst [vmem:[%s585] sm:$0xff] 0.0
          %601 = vst [vmem:[%s585 + $0x8] sm:$0xff] 0.0
          %602 = vst [vmem:[%s585 + $0x10] sm:$0xff] 0.0
          %603 = vst [vmem:[%s585 + $0x18] sm:$0xff] 0.0
          %604 = vst [vmem:[%s585 + $0x20] sm:$0xff] 0.0
          %605 = vst [vmem:[%s585 + $0x28] sm:$0xff] 0.0
          %606 = vst [vmem:[%s585 + $0x30] sm:$0xff] 0.0
          %607 = vst [vmem:[%s585 + $0x38] sm:$0xff] 0.0
        $region89: #{tpu_custom_call.1} parent=80 // pred_fallthru
          _
        %s608 = smul.u32 %s32, 8
        %s609 = sld [smem:[#allocation4 + %s31]]
        %p610 = scmp.gt.s32.totalorder %s609, %s608
        // Predicated region
        $region90: #{tpu_custom_call.1} parent=80 // pred_check
          %p611 = pneg %p610
        $region91: #{tpu_custom_call.1} parent=80 // pred_check_branch
          %613 = sbr.rel (%p611) target = $region93
        $region92: #{tpu_custom_call.1} parent=80 // pred_region
          %v614 = vld [vmem:[%s554] sm:$0xf]
          %v615 = vld [vmem:[%s554 + $0x4] sm:$0xf]
          %v616 = vld [vmem:[%s554 + $0x8] sm:$0xf]
          %v617 = vld [vmem:[%s554 + $0xc] sm:$0xf]
          %v618 = vld [vmem:[%s554 + $0x10] sm:$0xf]
          %v619 = vld [vmem:[%s554 + $0x14] sm:$0xf]
          %v620 = vld [vmem:[%s554 + $0x18] sm:$0xf]
          %v621 = vld [vmem:[%s554 + $0x1c] sm:$0xf]
          %v622 = vld [vmem:[%s554 + $0x20] sm:$0xf]
          %v623 = vld [vmem:[%s554 + $0x24] sm:$0xf]
          %v624 = vld [vmem:[%s554 + $0x28] sm:$0xf]
          %v625 = vld [vmem:[%s554 + $0x2c] sm:$0xf]
          %v626 = vld [vmem:[%s554 + $0x30] sm:$0xf]
          %v627 = vld [vmem:[%s554 + $0x34] sm:$0xf]
          %v628 = vld [vmem:[%s554 + $0x38] sm:$0xf]
          %v629 = vld [vmem:[%s554 + $0x3c] sm:$0xf]
          %v630 = vld [vmem:[%s554 + $0x40] sm:$0xf]
          %v631 = vld [vmem:[%s554 + $0x44] sm:$0xf]
          %v632 = vld [vmem:[%s554 + $0x48] sm:$0xf]
          %v633 = vld [vmem:[%s554 + $0x4c] sm:$0xf]
          %v634 = vld [vmem:[%s554 + $0x50] sm:$0xf]
          %v635 = vld [vmem:[%s554 + $0x54] sm:$0xf]
          %v636 = vld [vmem:[%s554 + $0x58] sm:$0xf]
          %v637 = vld [vmem:[%s554 + $0x5c] sm:$0xf]
          %v638 = vld [vmem:[%s554 + $0x60] sm:$0xf]
          %v639 = vld [vmem:[%s554 + $0x64] sm:$0xf]
          %v640 = vld [vmem:[%s554 + $0x68] sm:$0xf]
          %v641 = vld [vmem:[%s554 + $0x6c] sm:$0xf]
          %v642 = vld [vmem:[%s554 + $0x70] sm:$0xf]
          %v643 = vld [vmem:[%s554 + $0x74] sm:$0xf]
          %v644 = vld [vmem:[%s554 + $0x78] sm:$0xf]
          %v645 = vld [vmem:[%s554 + $0x7c] sm:$0xf]
          %v646 = vld [vmem:[%s554 + $0x80] sm:$0xf]
          %v647 = vld [vmem:[%s554 + $0x84] sm:$0xf]
          %v648 = vld [vmem:[%s554 + $0x88] sm:$0xf]
          %v649 = vld [vmem:[%s554 + $0x8c] sm:$0xf]
          %v650 = vld [vmem:[%s554 + $0x90] sm:$0xf]
          %v651 = vld [vmem:[%s554 + $0x94] sm:$0xf]
          %v652 = vld [vmem:[%s554 + $0x98] sm:$0xf]
          %v653 = vld [vmem:[%s554 + $0x9c] sm:$0xf]
          %v654 = vld [vmem:[%s554 + $0xa0] sm:$0xf]
          %v655 = vld [vmem:[%s554 + $0xa4] sm:$0xf]
          %v656 = vld [vmem:[%s554 + $0xa8] sm:$0xf]
          %v657 = vld [vmem:[%s554 + $0xac] sm:$0xf]
          %v658 = vld [vmem:[%s554 + $0xb0] sm:$0xf]
          %v659 = vld [vmem:[%s554 + $0xb4] sm:$0xf]
          %v660 = vld [vmem:[%s554 + $0xb8] sm:$0xf]
          %v661 = vld [vmem:[%s554 + $0xbc] sm:$0xf]
          %v662 = vld [vmem:[%s554 + $0xc0] sm:$0xf]
          %v663 = vld [vmem:[%s554 + $0xc4] sm:$0xf]
          %v664 = vld [vmem:[%s554 + $0xc8] sm:$0xf]
          %v665 = vld [vmem:[%s554 + $0xcc] sm:$0xf]
          %v666 = vld [vmem:[%s554 + $0xd0] sm:$0xf]
          %v667 = vld [vmem:[%s554 + $0xd4] sm:$0xf]
          %v668 = vld [vmem:[%s554 + $0xd8] sm:$0xf]
          %v669 = vld [vmem:[%s554 + $0xdc] sm:$0xf]
          %v670 = vld [vmem:[%s554 + $0xe0] sm:$0xf]
          %v671 = vld [vmem:[%s554 + $0xe4] sm:$0xf]
          %v672 = vld [vmem:[%s554 + $0xe8] sm:$0xf]
          %v673 = vld [vmem:[%s554 + $0xec] sm:$0xf]
          %v674 = vld [vmem:[%s554 + $0xf0] sm:$0xf]
          %v675 = vld [vmem:[%s554 + $0xf4] sm:$0xf]
          %v676 = vld [vmem:[%s554 + $0xf8] sm:$0xf]
          %v677 = vld [vmem:[%s554 + $0xfc] sm:$0xf]
          %v678 = vld [vmem:[%s3] sm:$0xff]
          %v679 = vld [vmem:[%s3 + $0x8] sm:$0xf]
          %v680 = vld [vmem:[%s3 + $0xc] sm:$0xff]
          %v681 = vld [vmem:[%s3 + $0x14] sm:$0xf]
          %v682 = vld [vmem:[%s5] sm:$0x7]
          %v684 = vlaneseq
          %v685 = vshrl.u32 %v684, 7
          %v686 = vsub.s32 0, %v685
          %v687 = vrot.slane %v682, %v686
          %v688 = vlaneseq
          %v689 = vshrl.u32 %v688, 7
          %v690 = vsub.s32 1, %v689
          %v691 = vrot.slane %v682, %v690
          %v692 = vlaneseq
          %v693 = vshrl.u32 %v692, 7
          %v694 = vsub.s32 2, %v693
          %v695 = vrot.slane %v682, %v694
          %v763 = vunpack.c.l.b16 %v614
          %v764 = vunpack.c.l.b16 %v615
          %v765 = vunpack.c.l.b16 %v616
          %v766 = vunpack.c.l.b16 %v617
          %v767 = vunpack.c.l.b16 %v618
          %v768 = vunpack.c.l.b16 %v619
          %v769 = vunpack.c.l.b16 %v620
          %v770 = vunpack.c.l.b16 %v621
          %v771 = vunpack.c.l.b16 %v622
          %v772 = vunpack.c.l.b16 %v623
          %v773 = vunpack.c.l.b16 %v624
          %v774 = vunpack.c.l.b16 %v625
          %v775 = vunpack.c.l.b16 %v626
          %v776 = vunpack.c.l.b16 %v627
          %v777 = vunpack.c.l.b16 %v628
          %v778 = vunpack.c.l.b16 %v629
          %v779 = vunpack.c.l.b16 %v630
          %v780 = vunpack.c.l.b16 %v631
          %v781 = vunpack.c.l.b16 %v632
          %v782 = vunpack.c.l.b16 %v633
          %v783 = vunpack.c.l.b16 %v634
          %v784 = vunpack.c.l.b16 %v635
          %v785 = vunpack.c.l.b16 %v636
          %v786 = vunpack.c.l.b16 %v637
          %v787 = vunpack.c.l.b16 %v638
          %v788 = vunpack.c.l.b16 %v639
          %v789 = vunpack.c.l.b16 %v640
          %v790 = vunpack.c.l.b16 %v641
          %v791 = vunpack.c.l.b16 %v642
          %v792 = vunpack.c.l.b16 %v643
          %v793 = vunpack.c.l.b16 %v644
          %v794 = vunpack.c.l.b16 %v645
          %v795 = vunpack.c.l.b16 %v646
          %v796 = vunpack.c.l.b16 %v647
          %v797 = vunpack.c.l.b16 %v648
          %v798 = vunpack.c.l.b16 %v649
          %v799 = vunpack.c.l.b16 %v650
          %v800 = vunpack.c.l.b16 %v651
          %v801 = vunpack.c.l.b16 %v652
          %v802 = vunpack.c.l.b16 %v653
          %v803 = vunpack.c.l.b16 %v654
          %v804 = vunpack.c.l.b16 %v655
          %v805 = vunpack.c.l.b16 %v656
          %v806 = vunpack.c.l.b16 %v657
          %v807 = vunpack.c.l.b16 %v658
          %v808 = vunpack.c.l.b16 %v659
          %v809 = vunpack.c.l.b16 %v660
          %v810 = vunpack.c.l.b16 %v661
          %v811 = vunpack.c.l.b16 %v662
          %v812 = vunpack.c.l.b16 %v663
          %v813 = vunpack.c.l.b16 %v664
          %v814 = vunpack.c.l.b16 %v665
          %v815 = vunpack.c.l.b16 %v666
          %v816 = vunpack.c.l.b16 %v667
          %v817 = vunpack.c.l.b16 %v668
          %v818 = vunpack.c.l.b16 %v669
          %v819 = vunpack.c.l.b16 %v670
          %v820 = vunpack.c.l.b16 %v671
          %v821 = vunpack.c.l.b16 %v672
          %v822 = vunpack.c.l.b16 %v673
          %v823 = vunpack.c.l.b16 %v674
          %v824 = vunpack.c.l.b16 %v675
          %v825 = vunpack.c.l.b16 %v676
          %v826 = vunpack.c.l.b16 %v677
          %v827 = vpack.c.b16 %v764, %v763
          %v828 = vpack.c.b16 %v766, %v765
          %v829 = vpack.c.b16 %v768, %v767
          %v830 = vpack.c.b16 %v770, %v769
          %v831 = vpack.c.b16 %v772, %v771
          %v832 = vpack.c.b16 %v774, %v773
          %v833 = vpack.c.b16 %v776, %v775
          %v834 = vpack.c.b16 %v778, %v777
          %v835 = vpack.c.b16 %v780, %v779
          %v836 = vpack.c.b16 %v782, %v781
          %v837 = vpack.c.b16 %v784, %v783
          %v838 = vpack.c.b16 %v786, %v785
          %v839 = vpack.c.b16 %v788, %v787
          %v840 = vpack.c.b16 %v790, %v789
          %v841 = vpack.c.b16 %v792, %v791
          %v842 = vpack.c.b16 %v794, %v793
          %v843 = vpack.c.b16 %v796, %v795
          %v844 = vpack.c.b16 %v798, %v797
          %v845 = vpack.c.b16 %v800, %v799
          %v846 = vpack.c.b16 %v802, %v801
          %v847 = vpack.c.b16 %v804, %v803
          %v848 = vpack.c.b16 %v806, %v805
          %v849 = vpack.c.b16 %v808, %v807
          %v850 = vpack.c.b16 %v810, %v809
          %v851 = vpack.c.b16 %v812, %v811
          %v852 = vpack.c.b16 %v814, %v813
          %v853 = vpack.c.b16 %v816, %v815
          %v854 = vpack.c.b16 %v818, %v817
          %v855 = vpack.c.b16 %v820, %v819
          %v856 = vpack.c.b16 %v822, %v821
          %v857 = vpack.c.b16 %v824, %v823
          %v858 = vpack.c.b16 %v826, %v825
          %v863 = vunpack.c.l.b16 %v678
          %v864 = vunpack.c.h.b16 %v678
          %v865 = vunpack.c.l.b16 %v679
          %v866 = vunpack.c.l.b16 %v680
          %v867 = vunpack.c.h.b16 %v680
          %v868 = vunpack.c.l.b16 %v681
          %v869 = vpack.c.b16 %v866, %v863
          %v870 = vpack.c.b16 %v867, %v864
          %v871 = vpack.c.b16 %v868, %v865
          %vm875 = vcmask 130048
          %v877 = vsel %vm875, %v827, 0
          %v880 = vsel %vm875, %v828, 0
          %v883 = vsel %vm875, %v829, 0
          %v886 = vsel %vm875, %v830, 0
          %v889 = vsel %vm875, %v831, 0
          %v892 = vsel %vm875, %v832, 0
          %v895 = vsel %vm875, %v833, 0
          %v898 = vsel %vm875, %v834, 0
          %v901 = vsel %vm875, %v835, 0
          %v904 = vsel %vm875, %v836, 0
          %v907 = vsel %vm875, %v837, 0
          %v910 = vsel %vm875, %v838, 0
          %v913 = vsel %vm875, %v839, 0
          %v916 = vsel %vm875, %v840, 0
          %v919 = vsel %vm875, %v841, 0
          %v922 = vsel %vm875, %v842, 0
          %v925 = vsel %vm875, %v843, 0
          %v928 = vsel %vm875, %v844, 0
          %v931 = vsel %vm875, %v845, 0
          %v934 = vsel %vm875, %v846, 0
          %v937 = vsel %vm875, %v847, 0
          %v940 = vsel %vm875, %v848, 0
          %v943 = vsel %vm875, %v849, 0
          %v946 = vsel %vm875, %v850, 0
          %v949 = vsel %vm875, %v851, 0
          %v952 = vsel %vm875, %v852, 0
          %v955 = vsel %vm875, %v853, 0
          %v958 = vsel %vm875, %v854, 0
          %v961 = vsel %vm875, %v855, 0
          %v964 = vsel %vm875, %v856, 0
          %v967 = vsel %vm875, %v857, 0
          %v970 = vsel %vm875, %v858, 0
          %972 = vmatprep.subr.bf16.mxu0 0
          %973 = vmatpush1.bf16.msra.mxu0 0
          %974 = vmatprep.subr.bf16.mxu0 0
          %975 = vmatpush1.bf16.msra.mxu0 0
          %976 = vmatprep.subr.bf16.mxu0 0
          %977 = vmatpush1.bf16.msra.mxu0 0
          %978 = vmatprep.subr.bf16.mxu0 0
          %979 = vmatpush1.bf16.msra.mxu0 0
          %980 = vmatprep.subr.bf16.mxu0 0
          %981 = vmatpush1.bf16.msra.mxu0 0
          %982 = vmatprep.subr.bf16.mxu0 0
          %983 = vmatpush1.bf16.msra.mxu0 0
          %984 = vmatprep.subr.bf16.mxu0 0
          %985 = vmatpush1.bf16.msra.mxu0 0
          %986 = vmatprep.subr.bf16.mxu0 %v870
          %987 = vmatpush1.bf16.msra.mxu0 %v869
          %988 = vmatprep.subr.bf16.mxu0 0
          %989 = vmatpush2.bf16.msra.mxu0 0
          %990 = vmatprep.subr.bf16.mxu0 0
          %991 = vmatpush2.bf16.msra.mxu0 0
          %992 = vmatprep.subr.bf16.mxu0 0
          %993 = vmatpush2.bf16.msra.mxu0 0
          %994 = vmatprep.subr.bf16.mxu0 0
          %995 = vmatpush2.bf16.msra.mxu0 0
          %996 = vmatprep.subr.bf16.mxu0 0
          %997 = vmatpush2.bf16.msra.mxu0 0
          %998 = vmatprep.subr.bf16.mxu0 0
          %999 = vmatpush2.bf16.msra.mxu0 0
          %1000 = vmatprep.subr.bf16.mxu0 0
          %1001 = vmatpush2.bf16.msra.mxu0 0
          %1002 = vmatprep.subr.bf16.mxu0 0
          %1003 = vmatpush2.bf16.msra.mxu0 0
          %1004 = vmatprep.mubr.bf16.mxu0 0
          %1005 = vmatmul.mubr.bf16.gmra.mxu0 %v877
          %v1006 = vpop.f32.mrf.mxu0
          %v1007 = vadd.f32 %v687, %v1006
          %v1008 = vpop.f32.mrf.mxu0
          %v1009 = vadd.f32 %v691, %v1008
          %v1010 = vpop.f32.mrf.mxu0
          %v1011 = vadd.f32 %v687, %v1010
          %v1012 = vpop.f32.mrf.mxu0
          %v1013 = vadd.f32 %v691, %v1012
          %1014 = vmatprep.mubr.bf16.mxu0 0
          %1015 = vmatmul.mubr.bf16.gmra.mxu0 %v880
          %v1016 = vpop.f32.mrf.mxu0
          %v1017 = vadd.f32 %v687, %v1016
          %v1018 = vpop.f32.mrf.mxu0
          %v1019 = vadd.f32 %v691, %v1018
          %v1020 = vpop.f32.mrf.mxu0
          %v1021 = vadd.f32 %v687, %v1020
          %v1022 = vpop.f32.mrf.mxu0
          %v1023 = vadd.f32 %v691, %v1022
          %1024 = vmatprep.mubr.bf16.mxu0 0
          %1025 = vmatmul.mubr.bf16.gmra.mxu0 %v883
          %v1026 = vpop.f32.mrf.mxu0
          %v1027 = vadd.f32 %v687, %v1026
          %v1028 = vpop.f32.mrf.mxu0
          %v1029 = vadd.f32 %v691, %v1028
          %v1030 = vpop.f32.mrf.mxu0
          %v1031 = vadd.f32 %v687, %v1030
          %v1032 = vpop.f32.mrf.mxu0
          %v1033 = vadd.f32 %v691, %v1032
          %1034 = vmatprep.mubr.bf16.mxu0 0
          %1035 = vmatmul.mubr.bf16.gmra.mxu0 %v886
          %v1036 = vpop.f32.mrf.mxu0
          %v1037 = vadd.f32 %v687, %v1036
          %v1038 = vpop.f32.mrf.mxu0
          %v1039 = vadd.f32 %v691, %v1038
          %v1040 = vpop.f32.mrf.mxu0
          %v1041 = vadd.f32 %v687, %v1040
          %v1042 = vpop.f32.mrf.mxu0
          %v1043 = vadd.f32 %v691, %v1042
          %1044 = vmatprep.mubr.bf16.mxu0 0
          %1045 = vmatmul.mubr.bf16.gmra.mxu0 %v889
          %v1046 = vpop.f32.mrf.mxu0
          %v1047 = vadd.f32 %v687, %v1046
          %v1048 = vpop.f32.mrf.mxu0
          %v1049 = vadd.f32 %v691, %v1048
          %v1050 = vpop.f32.mrf.mxu0
          %v1051 = vadd.f32 %v687, %v1050
          %v1052 = vpop.f32.mrf.mxu0
          %v1053 = vadd.f32 %v691, %v1052
          %1054 = vmatprep.mubr.bf16.mxu0 0
          %1055 = vmatmul.mubr.bf16.gmra.mxu0 %v892
          %v1056 = vpop.f32.mrf.mxu0
          %v1057 = vadd.f32 %v687, %v1056
          %v1058 = vpop.f32.mrf.mxu0
          %v1059 = vadd.f32 %v691, %v1058
          %v1060 = vpop.f32.mrf.mxu0
          %v1061 = vadd.f32 %v687, %v1060
          %v1062 = vpop.f32.mrf.mxu0
          %v1063 = vadd.f32 %v691, %v1062
          %1064 = vmatprep.mubr.bf16.mxu0 0
          %1065 = vmatmul.mubr.bf16.gmra.mxu0 %v895
          %v1066 = vpop.f32.mrf.mxu0
          %v1067 = vadd.f32 %v687, %v1066
          %v1068 = vpop.f32.mrf.mxu0
          %v1069 = vadd.f32 %v691, %v1068
          %v1070 = vpop.f32.mrf.mxu0
          %v1071 = vadd.f32 %v687, %v1070
          %v1072 = vpop.f32.mrf.mxu0
          %v1073 = vadd.f32 %v691, %v1072
          %1074 = vmatprep.mubr.bf16.mxu0 0
          %1075 = vmatmul.mubr.bf16.gmra.mxu0 %v898
          %v1076 = vpop.f32.mrf.mxu0
          %v1077 = vadd.f32 %v687, %v1076
          %v1078 = vpop.f32.mrf.mxu0
          %v1079 = vadd.f32 %v691, %v1078
          %v1080 = vpop.f32.mrf.mxu0
          %v1081 = vadd.f32 %v687, %v1080
          %v1082 = vpop.f32.mrf.mxu0
          %v1083 = vadd.f32 %v691, %v1082
          %1084 = vmatprep.mubr.bf16.mxu0 0
          %1085 = vmatmul.mubr.bf16.gmra.mxu0 %v901
          %v1086 = vpop.f32.mrf.mxu0
          %v1087 = vadd.f32 %v687, %v1086
          %v1088 = vpop.f32.mrf.mxu0
          %v1089 = vadd.f32 %v691, %v1088
          %v1090 = vpop.f32.mrf.mxu0
          %v1091 = vadd.f32 %v687, %v1090
          %v1092 = vpop.f32.mrf.mxu0
          %v1093 = vadd.f32 %v691, %v1092
          %1094 = vmatprep.mubr.bf16.mxu0 0
          %1095 = vmatmul.mubr.bf16.gmra.mxu0 %v904
          %v1096 = vpop.f32.mrf.mxu0
          %v1097 = vadd.f32 %v687, %v1096
          %v1098 = vpop.f32.mrf.mxu0
          %v1099 = vadd.f32 %v691, %v1098
          %v1100 = vpop.f32.mrf.mxu0
          %v1101 = vadd.f32 %v687, %v1100
          %v1102 = vpop.f32.mrf.mxu0
          %v1103 = vadd.f32 %v691, %v1102
          %1104 = vmatprep.mubr.bf16.mxu0 0
          %1105 = vmatmul.mubr.bf16.gmra.mxu0 %v907
          %v1106 = vpop.f32.mrf.mxu0
          %v1107 = vadd.f32 %v687, %v1106
          %v1108 = vpop.f32.mrf.mxu0
          %v1109 = vadd.f32 %v691, %v1108
          %v1110 = vpop.f32.mrf.mxu0
          %v1111 = vadd.f32 %v687, %v1110
          %v1112 = vpop.f32.mrf.mxu0
          %v1113 = vadd.f32 %v691, %v1112
          %1114 = vmatprep.mubr.bf16.mxu0 0
          %1115 = vmatmul.mubr.bf16.gmra.mxu0 %v910
          %v1116 = vpop.f32.mrf.mxu0
          %v1117 = vadd.f32 %v687, %v1116
          %v1118 = vpop.f32.mrf.mxu0
          %v1119 = vadd.f32 %v691, %v1118
          %v1120 = vpop.f32.mrf.mxu0
          %v1121 = vadd.f32 %v687, %v1120
          %v1122 = vpop.f32.mrf.mxu0
          %v1123 = vadd.f32 %v691, %v1122
          %1124 = vmatprep.mubr.bf16.mxu0 0
          %1125 = vmatmul.mubr.bf16.gmra.mxu0 %v913
          %v1126 = vpop.f32.mrf.mxu0
          %v1127 = vadd.f32 %v687, %v1126
          %v1128 = vpop.f32.mrf.mxu0
          %v1129 = vadd.f32 %v691, %v1128
          %v1130 = vpop.f32.mrf.mxu0
          %v1131 = vadd.f32 %v687, %v1130
          %v1132 = vpop.f32.mrf.mxu0
          %v1133 = vadd.f32 %v691, %v1132
          %1134 = vmatprep.mubr.bf16.mxu0 0
          %1135 = vmatmul.mubr.bf16.gmra.mxu0 %v916
          %v1136 = vpop.f32.mrf.mxu0
          %v1137 = vadd.f32 %v687, %v1136
          %v1138 = vpop.f32.mrf.mxu0
          %v1139 = vadd.f32 %v691, %v1138
          %v1140 = vpop.f32.mrf.mxu0
          %v1141 = vadd.f32 %v687, %v1140
          %v1142 = vpop.f32.mrf.mxu0
          %v1143 = vadd.f32 %v691, %v1142
          %1144 = vmatprep.mubr.bf16.mxu0 0
          %1145 = vmatmul.mubr.bf16.gmra.mxu0 %v919
          %v1146 = vpop.f32.mrf.mxu0
          %v1147 = vadd.f32 %v687, %v1146
          %v1148 = vpop.f32.mrf.mxu0
          %v1149 = vadd.f32 %v691, %v1148
          %v1150 = vpop.f32.mrf.mxu0
          %v1151 = vadd.f32 %v687, %v1150
          %v1152 = vpop.f32.mrf.mxu0
          %v1153 = vadd.f32 %v691, %v1152
          %1154 = vmatprep.mubr.bf16.mxu0 0
          %1155 = vmatmul.mubr.bf16.gmra.mxu0 %v922
          %v1156 = vpop.f32.mrf.mxu0
          %v1157 = vadd.f32 %v687, %v1156
          %v1158 = vpop.f32.mrf.mxu0
          %v1159 = vadd.f32 %v691, %v1158
          %v1160 = vpop.f32.mrf.mxu0
          %v1161 = vadd.f32 %v687, %v1160
          %v1162 = vpop.f32.mrf.mxu0
          %v1163 = vadd.f32 %v691, %v1162
          %1164 = vmatprep.mubr.bf16.mxu0 0
          %1165 = vmatmul.mubr.bf16.gmra.mxu0 %v925
          %v1166 = vpop.f32.mrf.mxu0
          %v1167 = vadd.f32 %v687, %v1166
          %v1168 = vpop.f32.mrf.mxu0
          %v1169 = vadd.f32 %v691, %v1168
          %v1170 = vpop.f32.mrf.mxu0
          %v1171 = vadd.f32 %v687, %v1170
          %v1172 = vpop.f32.mrf.mxu0
          %v1173 = vadd.f32 %v691, %v1172
          %1174 = vmatprep.mubr.bf16.mxu0 0
          %1175 = vmatmul.mubr.bf16.gmra.mxu0 %v928
          %v1176 = vpop.f32.mrf.mxu0
          %v1177 = vadd.f32 %v687, %v1176
          %v1178 = vpop.f32.mrf.mxu0
          %v1179 = vadd.f32 %v691, %v1178
          %v1180 = vpop.f32.mrf.mxu0
          %v1181 = vadd.f32 %v687, %v1180
          %v1182 = vpop.f32.mrf.mxu0
          %v1183 = vadd.f32 %v691, %v1182
          %1184 = vmatprep.mubr.bf16.mxu0 0
          %1185 = vmatmul.mubr.bf16.gmra.mxu0 %v931
          %v1186 = vpop.f32.mrf.mxu0
          %v1187 = vadd.f32 %v687, %v1186
          %v1188 = vpop.f32.mrf.mxu0
          %v1189 = vadd.f32 %v691, %v1188
          %v1190 = vpop.f32.mrf.mxu0
          %v1191 = vadd.f32 %v687, %v1190
          %v1192 = vpop.f32.mrf.mxu0
          %v1193 = vadd.f32 %v691, %v1192
          %1194 = vmatprep.mubr.bf16.mxu0 0
          %1195 = vmatmul.mubr.bf16.gmra.mxu0 %v934
          %v1196 = vpop.f32.mrf.mxu0
          %v1197 = vadd.f32 %v687, %v1196
          %v1198 = vpop.f32.mrf.mxu0
          %v1199 = vadd.f32 %v691, %v1198
          %v1200 = vpop.f32.mrf.mxu0
          %v1201 = vadd.f32 %v687, %v1200
          %v1202 = vpop.f32.mrf.mxu0
          %v1203 = vadd.f32 %v691, %v1202
          %1204 = vmatprep.mubr.bf16.mxu0 0
          %1205 = vmatmul.mubr.bf16.gmra.mxu0 %v937
          %v1206 = vpop.f32.mrf.mxu0
          %v1207 = vadd.f32 %v687, %v1206
          %v1208 = vpop.f32.mrf.mxu0
          %v1209 = vadd.f32 %v691, %v1208
          %v1210 = vpop.f32.mrf.mxu0
          %v1211 = vadd.f32 %v687, %v1210
          %v1212 = vpop.f32.mrf.mxu0
          %v1213 = vadd.f32 %v691, %v1212
          %1214 = vmatprep.mubr.bf16.mxu0 0
          %1215 = vmatmul.mubr.bf16.gmra.mxu0 %v940
          %v1216 = vpop.f32.mrf.mxu0
          %v1217 = vadd.f32 %v687, %v1216
          %v1218 = vpop.f32.mrf.mxu0
          %v1219 = vadd.f32 %v691, %v1218
          %v1220 = vpop.f32.mrf.mxu0
          %v1221 = vadd.f32 %v687, %v1220
          %v1222 = vpop.f32.mrf.mxu0
          %v1223 = vadd.f32 %v691, %v1222
          %1224 = vmatprep.mubr.bf16.mxu0 0
          %1225 = vmatmul.mubr.bf16.gmra.mxu0 %v943
          %v1226 = vpop.f32.mrf.mxu0
          %v1227 = vadd.f32 %v687, %v1226
          %v1228 = vpop.f32.mrf.mxu0
          %v1229 = vadd.f32 %v691, %v1228
          %v1230 = vpop.f32.mrf.mxu0
          %v1231 = vadd.f32 %v687, %v1230
          %v1232 = vpop.f32.mrf.mxu0
          %v1233 = vadd.f32 %v691, %v1232
          %1234 = vmatprep.mubr.bf16.mxu0 0
          %1235 = vmatmul.mubr.bf16.gmra.mxu0 %v946
          %v1236 = vpop.f32.mrf.mxu0
          %v1237 = vadd.f32 %v687, %v1236
          %v1238 = vpop.f32.mrf.mxu0
          %v1239 = vadd.f32 %v691, %v1238
          %v1240 = vpop.f32.mrf.mxu0
          %v1241 = vadd.f32 %v687, %v1240
          %v1242 = vpop.f32.mrf.mxu0
          %v1243 = vadd.f32 %v691, %v1242
          %1244 = vmatprep.mubr.bf16.mxu0 0
          %1245 = vmatmul.mubr.bf16.gmra.mxu0 %v949
          %v1246 = vpop.f32.mrf.mxu0
          %v1247 = vadd.f32 %v687, %v1246
          %v1248 = vpop.f32.mrf.mxu0
          %v1249 = vadd.f32 %v691, %v1248
          %v1250 = vpop.f32.mrf.mxu0
          %v1251 = vadd.f32 %v687, %v1250
          %v1252 = vpop.f32.mrf.mxu0
          %v1253 = vadd.f32 %v691, %v1252
          %1254 = vmatprep.mubr.bf16.mxu0 0
          %1255 = vmatmul.mubr.bf16.gmra.mxu0 %v952
          %v1256 = vpop.f32.mrf.mxu0
          %v1257 = vadd.f32 %v687, %v1256
          %v1258 = vpop.f32.mrf.mxu0
          %v1259 = vadd.f32 %v691, %v1258
          %v1260 = vpop.f32.mrf.mxu0
          %v1261 = vadd.f32 %v687, %v1260
          %v1262 = vpop.f32.mrf.mxu0
          %v1263 = vadd.f32 %v691, %v1262
          %1264 = vmatprep.mubr.bf16.mxu0 0
          %1265 = vmatmul.mubr.bf16.gmra.mxu0 %v955
          %v1266 = vpop.f32.mrf.mxu0
          %v1267 = vadd.f32 %v687, %v1266
          %v1268 = vpop.f32.mrf.mxu0
          %v1269 = vadd.f32 %v691, %v1268
          %v1270 = vpop.f32.mrf.mxu0
          %v1271 = vadd.f32 %v687, %v1270
          %v1272 = vpop.f32.mrf.mxu0
          %v1273 = vadd.f32 %v691, %v1272
          %1274 = vmatprep.mubr.bf16.mxu0 0
          %1275 = vmatmul.mubr.bf16.gmra.mxu0 %v958
          %v1276 = vpop.f32.mrf.mxu0
          %v1277 = vadd.f32 %v687, %v1276
          %v1278 = vpop.f32.mrf.mxu0
          %v1279 = vadd.f32 %v691, %v1278
          %v1280 = vpop.f32.mrf.mxu0
          %v1281 = vadd.f32 %v687, %v1280
          %v1282 = vpop.f32.mrf.mxu0
          %v1283 = vadd.f32 %v691, %v1282
          %1284 = vmatprep.mubr.bf16.mxu0 0
          %1285 = vmatmul.mubr.bf16.gmra.mxu0 %v961
          %v1286 = vpop.f32.mrf.mxu0
          %v1287 = vadd.f32 %v687, %v1286
          %v1288 = vpop.f32.mrf.mxu0
          %v1289 = vadd.f32 %v691, %v1288
          %v1290 = vpop.f32.mrf.mxu0
          %v1291 = vadd.f32 %v687, %v1290
          %v1292 = vpop.f32.mrf.mxu0
          %v1293 = vadd.f32 %v691, %v1292
          %1294 = vmatprep.mubr.bf16.mxu0 0
          %1295 = vmatmul.mubr.bf16.gmra.mxu0 %v964
          %v1296 = vpop.f32.mrf.mxu0
          %v1297 = vadd.f32 %v687, %v1296
          %v1298 = vpop.f32.mrf.mxu0
          %v1299 = vadd.f32 %v691, %v1298
          %v1300 = vpop.f32.mrf.mxu0
          %v1301 = vadd.f32 %v687, %v1300
          %v1302 = vpop.f32.mrf.mxu0
          %v1303 = vadd.f32 %v691, %v1302
          %1304 = vmatprep.mubr.bf16.mxu0 0
          %1305 = vmatmul.mubr.bf16.gmra.mxu0 %v967
          %v1306 = vpop.f32.mrf.mxu0
          %v1307 = vadd.f32 %v687, %v1306
          %v1308 = vpop.f32.mrf.mxu0
          %v1309 = vadd.f32 %v691, %v1308
          %v1310 = vpop.f32.mrf.mxu0
          %v1311 = vadd.f32 %v687, %v1310
          %v1312 = vpop.f32.mrf.mxu0
          %v1313 = vadd.f32 %v691, %v1312
          %1314 = vmatprep.mubr.bf16.mxu0 0
          %1315 = vmatmul.mubr.bf16.gmra.mxu0 %v970
          %v1316 = vpop.f32.mrf.mxu0
          %v1317 = vadd.f32 %v687, %v1316
          %v1318 = vpop.f32.mrf.mxu0
          %v1319 = vadd.f32 %v691, %v1318
          %v1320 = vpop.f32.mrf.mxu0
          %v1321 = vadd.f32 %v687, %v1320
          %v1322 = vpop.f32.mrf.mxu0
          %v1323 = vadd.f32 %v691, %v1322
          %1324 = vdwg.mxu0
          %1325 = vmatprep.subr.bf16.mxu0 0
          %1326 = vmatpush1.bf16.msra.mxu0 0
          %1327 = vmatprep.subr.bf16.mxu0 0
          %1328 = vmatpush1.bf16.msra.mxu0 0
          %1329 = vmatprep.subr.bf16.mxu0 0
          %1330 = vmatpush1.bf16.msra.mxu0 0
          %1331 = vmatprep.subr.bf16.mxu0 0
          %1332 = vmatpush1.bf16.msra.mxu0 0
          %1333 = vmatprep.subr.bf16.mxu0 0
          %1334 = vmatpush1.bf16.msra.mxu0 0
          %1335 = vmatprep.subr.bf16.mxu0 0
          %1336 = vmatpush1.bf16.msra.mxu0 0
          %1337 = vmatprep.subr.bf16.mxu0 0
          %1338 = vmatpush1.bf16.msra.mxu0 0
          %1339 = vmatprep.subr.bf16.mxu0 0
          %1340 = vmatpush1.bf16.msra.mxu0 %v871
          %1341 = vmatprep.subr.bf16.mxu0 0
          %1342 = vmatpush2.bf16.msra.mxu0 0
          %1343 = vmatprep.subr.bf16.mxu0 0
          %1344 = vmatpush2.bf16.msra.mxu0 0
          %1345 = vmatprep.subr.bf16.mxu0 0
          %1346 = vmatpush2.bf16.msra.mxu0 0
          %1347 = vmatprep.subr.bf16.mxu0 0
          %1348 = vmatpush2.bf16.msra.mxu0 0
          %1349 = vmatprep.subr.bf16.mxu0 0
          %1350 = vmatpush2.bf16.msra.mxu0 0
          %1351 = vmatprep.subr.bf16.mxu0 0
          %1352 = vmatpush2.bf16.msra.mxu0 0
          %1353 = vmatprep.subr.bf16.mxu0 0
          %1354 = vmatpush2.bf16.msra.mxu0 0
          %1355 = vmatprep.subr.bf16.mxu0 0
          %1356 = vmatpush2.bf16.msra.mxu0 0
          %1357 = vmatprep.mubr.bf16.mxu0 0
          %1358 = vmatmul.mubr.bf16.gmra.mxu0 %v877
          %v1359 = vpop.f32.mrf.mxu0
          %v1360 = vadd.f32 %v695, %v1359
          %v1361 = vpop.f32.mrf.mxu0
          %v1362 = vpop.f32.mrf.mxu0
          %v1363 = vadd.f32 %v695, %v1362
          %v1364 = vpop.f32.mrf.mxu0
          %1365 = vmatprep.mubr.bf16.mxu0 0
          %1366 = vmatmul.mubr.bf16.gmra.mxu0 %v880
          %v1367 = vpop.f32.mrf.mxu0
          %v1368 = vadd.f32 %v695, %v1367
          %v1369 = vpop.f32.mrf.mxu0
          %v1370 = vpop.f32.mrf.mxu0
          %v1371 = vadd.f32 %v695, %v1370
          %v1372 = vpop.f32.mrf.mxu0
          %1373 = vmatprep.mubr.bf16.mxu0 0
          %1374 = vmatmul.mubr.bf16.gmra.mxu0 %v883
          %v1375 = vpop.f32.mrf.mxu0
          %v1376 = vadd.f32 %v695, %v1375
          %v1377 = vpop.f32.mrf.mxu0
          %v1378 = vpop.f32.mrf.mxu0
          %v1379 = vadd.f32 %v695, %v1378
          %v1380 = vpop.f32.mrf.mxu0
          %1381 = vmatprep.mubr.bf16.mxu0 0
          %1382 = vmatmul.mubr.bf16.gmra.mxu0 %v886
          %v1383 = vpop.f32.mrf.mxu0
          %v1384 = vadd.f32 %v695, %v1383
          %v1385 = vpop.f32.mrf.mxu0
          %v1386 = vpop.f32.mrf.mxu0
          %v1387 = vadd.f32 %v695, %v1386
          %v1388 = vpop.f32.mrf.mxu0
          %1389 = vmatprep.mubr.bf16.mxu0 0
          %1390 = vmatmul.mubr.bf16.gmra.mxu0 %v889
          %v1391 = vpop.f32.mrf.mxu0
          %v1392 = vadd.f32 %v695, %v1391
          %v1393 = vpop.f32.mrf.mxu0
          %v1394 = vpop.f32.mrf.mxu0
          %v1395 = vadd.f32 %v695, %v1394
          %v1396 = vpop.f32.mrf.mxu0
          %1397 = vmatprep.mubr.bf16.mxu0 0
          %1398 = vmatmul.mubr.bf16.gmra.mxu0 %v892
          %v1399 = vpop.f32.mrf.mxu0
          %v1400 = vadd.f32 %v695, %v1399
          %v1401 = vpop.f32.mrf.mxu0
          %v1402 = vpop.f32.mrf.mxu0
          %v1403 = vadd.f32 %v695, %v1402
          %v1404 = vpop.f32.mrf.mxu0
          %1405 = vmatprep.mubr.bf16.mxu0 0
          %1406 = vmatmul.mubr.bf16.gmra.mxu0 %v895
          %v1407 = vpop.f32.mrf.mxu0
          %v1408 = vadd.f32 %v695, %v1407
          %v1409 = vpop.f32.mrf.mxu0
          %v1410 = vpop.f32.mrf.mxu0
          %v1411 = vadd.f32 %v695, %v1410
          %v1412 = vpop.f32.mrf.mxu0
          %1413 = vmatprep.mubr.bf16.mxu0 0
          %1414 = vmatmul.mubr.bf16.gmra.mxu0 %v898
          %v1415 = vpop.f32.mrf.mxu0
          %v1416 = vadd.f32 %v695, %v1415
          %v1417 = vpop.f32.mrf.mxu0
          %v1418 = vpop.f32.mrf.mxu0
          %v1419 = vadd.f32 %v695, %v1418
          %v1420 = vpop.f32.mrf.mxu0
          %1421 = vmatprep.mubr.bf16.mxu0 0
          %1422 = vmatmul.mubr.bf16.gmra.mxu0 %v901
          %v1423 = vpop.f32.mrf.mxu0
          %v1424 = vadd.f32 %v695, %v1423
          %v1425 = vpop.f32.mrf.mxu0
          %v1426 = vpop.f32.mrf.mxu0
          %v1427 = vadd.f32 %v695, %v1426
          %v1428 = vpop.f32.mrf.mxu0
          %1429 = vmatprep.mubr.bf16.mxu0 0
          %1430 = vmatmul.mubr.bf16.gmra.mxu0 %v904
          %v1431 = vpop.f32.mrf.mxu0
          %v1432 = vadd.f32 %v695, %v1431
          %v1433 = vpop.f32.mrf.mxu0
          %v1434 = vpop.f32.mrf.mxu0
          %v1435 = vadd.f32 %v695, %v1434
          %v1436 = vpop.f32.mrf.mxu0
          %1437 = vmatprep.mubr.bf16.mxu0 0
          %1438 = vmatmul.mubr.bf16.gmra.mxu0 %v907
          %v1439 = vpop.f32.mrf.mxu0
          %v1440 = vadd.f32 %v695, %v1439
          %v1441 = vpop.f32.mrf.mxu0
          %v1442 = vpop.f32.mrf.mxu0
          %v1443 = vadd.f32 %v695, %v1442
          %v1444 = vpop.f32.mrf.mxu0
          %1445 = vmatprep.mubr.bf16.mxu0 0
          %1446 = vmatmul.mubr.bf16.gmra.mxu0 %v910
          %v1447 = vpop.f32.mrf.mxu0
          %v1448 = vadd.f32 %v695, %v1447
          %v1449 = vpop.f32.mrf.mxu0
          %v1450 = vpop.f32.mrf.mxu0
          %v1451 = vadd.f32 %v695, %v1450
          %v1452 = vpop.f32.mrf.mxu0
          %1453 = vmatprep.mubr.bf16.mxu0 0
          %1454 = vmatmul.mubr.bf16.gmra.mxu0 %v913
          %v1455 = vpop.f32.mrf.mxu0
          %v1456 = vadd.f32 %v695, %v1455
          %v1457 = vpop.f32.mrf.mxu0
          %v1458 = vpop.f32.mrf.mxu0
          %v1459 = vadd.f32 %v695, %v1458
          %v1460 = vpop.f32.mrf.mxu0
          %1461 = vmatprep.mubr.bf16.mxu0 0
          %1462 = vmatmul.mubr.bf16.gmra.mxu0 %v916
          %v1463 = vpop.f32.mrf.mxu0
          %v1464 = vadd.f32 %v695, %v1463
          %v1465 = vpop.f32.mrf.mxu0
          %v1466 = vpop.f32.mrf.mxu0
          %v1467 = vadd.f32 %v695, %v1466
          %v1468 = vpop.f32.mrf.mxu0
          %1469 = vmatprep.mubr.bf16.mxu0 0
          %1470 = vmatmul.mubr.bf16.gmra.mxu0 %v919
          %v1471 = vpop.f32.mrf.mxu0
          %v1472 = vadd.f32 %v695, %v1471
          %v1473 = vpop.f32.mrf.mxu0
          %v1474 = vpop.f32.mrf.mxu0
          %v1475 = vadd.f32 %v695, %v1474
          %v1476 = vpop.f32.mrf.mxu0
          %1477 = vmatprep.mubr.bf16.mxu0 0
          %1478 = vmatmul.mubr.bf16.gmra.mxu0 %v922
          %v1479 = vpop.f32.mrf.mxu0
          %v1480 = vadd.f32 %v695, %v1479
          %v1481 = vpop.f32.mrf.mxu0
          %v1482 = vpop.f32.mrf.mxu0
          %v1483 = vadd.f32 %v695, %v1482
          %v1484 = vpop.f32.mrf.mxu0
          %1485 = vmatprep.mubr.bf16.mxu0 0
          %1486 = vmatmul.mubr.bf16.gmra.mxu0 %v925
          %v1487 = vpop.f32.mrf.mxu0
          %v1488 = vadd.f32 %v695, %v1487
          %v1489 = vpop.f32.mrf.mxu0
          %v1490 = vpop.f32.mrf.mxu0
          %v1491 = vadd.f32 %v695, %v1490
          %v1492 = vpop.f32.mrf.mxu0
          %1493 = vmatprep.mubr.bf16.mxu0 0
          %1494 = vmatmul.mubr.bf16.gmra.mxu0 %v928
          %v1495 = vpop.f32.mrf.mxu0
          %v1496 = vadd.f32 %v695, %v1495
          %v1497 = vpop.f32.mrf.mxu0
          %v1498 = vpop.f32.mrf.mxu0
          %v1499 = vadd.f32 %v695, %v1498
          %v1500 = vpop.f32.mrf.mxu0
          %1501 = vmatprep.mubr.bf16.mxu0 0
          %1502 = vmatmul.mubr.bf16.gmra.mxu0 %v931
          %v1503 = vpop.f32.mrf.mxu0
          %v1504 = vadd.f32 %v695, %v1503
          %v1505 = vpop.f32.mrf.mxu0
          %v1506 = vpop.f32.mrf.mxu0
          %v1507 = vadd.f32 %v695, %v1506
          %v1508 = vpop.f32.mrf.mxu0
          %1509 = vmatprep.mubr.bf16.mxu0 0
          %1510 = vmatmul.mubr.bf16.gmra.mxu0 %v934
          %v1511 = vpop.f32.mrf.mxu0
          %v1512 = vadd.f32 %v695, %v1511
          %v1513 = vpop.f32.mrf.mxu0
          %v1514 = vpop.f32.mrf.mxu0
          %v1515 = vadd.f32 %v695, %v1514
          %v1516 = vpop.f32.mrf.mxu0
          %1517 = vmatprep.mubr.bf16.mxu0 0
          %1518 = vmatmul.mubr.bf16.gmra.mxu0 %v937
          %v1519 = vpop.f32.mrf.mxu0
          %v1520 = vadd.f32 %v695, %v1519
          %v1521 = vpop.f32.mrf.mxu0
          %v1522 = vpop.f32.mrf.mxu0
          %v1523 = vadd.f32 %v695, %v1522
          %v1524 = vpop.f32.mrf.mxu0
          %1525 = vmatprep.mubr.bf16.mxu0 0
          %1526 = vmatmul.mubr.bf16.gmra.mxu0 %v940
          %v1527 = vpop.f32.mrf.mxu0
          %v1528 = vadd.f32 %v695, %v1527
          %v1529 = vpop.f32.mrf.mxu0
          %v1530 = vpop.f32.mrf.mxu0
          %v1531 = vadd.f32 %v695, %v1530
          %v1532 = vpop.f32.mrf.mxu0
          %1533 = vmatprep.mubr.bf16.mxu0 0
          %1534 = vmatmul.mubr.bf16.gmra.mxu0 %v943
          %v1535 = vpop.f32.mrf.mxu0
          %v1536 = vadd.f32 %v695, %v1535
          %v1537 = vpop.f32.mrf.mxu0
          %v1538 = vpop.f32.mrf.mxu0
          %v1539 = vadd.f32 %v695, %v1538
          %v1540 = vpop.f32.mrf.mxu0
          %1541 = vmatprep.mubr.bf16.mxu0 0
          %1542 = vmatmul.mubr.bf16.gmra.mxu0 %v946
          %v1543 = vpop.f32.mrf.mxu0
          %v1544 = vadd.f32 %v695, %v1543
          %v1545 = vpop.f32.mrf.mxu0
          %v1546 = vpop.f32.mrf.mxu0
          %v1547 = vadd.f32 %v695, %v1546
          %v1548 = vpop.f32.mrf.mxu0
          %1549 = vmatprep.mubr.bf16.mxu0 0
          %1550 = vmatmul.mubr.bf16.gmra.mxu0 %v949
          %v1551 = vpop.f32.mrf.mxu0
          %v1552 = vadd.f32 %v695, %v1551
          %v1553 = vpop.f32.mrf.mxu0
          %v1554 = vpop.f32.mrf.mxu0
          %v1555 = vadd.f32 %v695, %v1554
          %v1556 = vpop.f32.mrf.mxu0
          %1557 = vmatprep.mubr.bf16.mxu0 0
          %1558 = vmatmul.mubr.bf16.gmra.mxu0 %v952
          %v1559 = vpop.f32.mrf.mxu0
          %v1560 = vadd.f32 %v695, %v1559
          %v1561 = vpop.f32.mrf.mxu0
          %v1562 = vpop.f32.mrf.mxu0
          %v1563 = vadd.f32 %v695, %v1562
          %v1564 = vpop.f32.mrf.mxu0
          %1565 = vmatprep.mubr.bf16.mxu0 0
          %1566 = vmatmul.mubr.bf16.gmra.mxu0 %v955
          %v1567 = vpop.f32.mrf.mxu0
          %v1568 = vadd.f32 %v695, %v1567
          %v1569 = vpop.f32.mrf.mxu0
          %v1570 = vpop.f32.mrf.mxu0
          %v1571 = vadd.f32 %v695, %v1570
          %v1572 = vpop.f32.mrf.mxu0
          %1573 = vmatprep.mubr.bf16.mxu0 0
          %1574 = vmatmul.mubr.bf16.gmra.mxu0 %v958
          %v1575 = vpop.f32.mrf.mxu0
          %v1576 = vadd.f32 %v695, %v1575
          %v1577 = vpop.f32.mrf.mxu0
          %v1578 = vpop.f32.mrf.mxu0
          %v1579 = vadd.f32 %v695, %v1578
          %v1580 = vpop.f32.mrf.mxu0
          %1581 = vmatprep.mubr.bf16.mxu0 0
          %1582 = vmatmul.mubr.bf16.gmra.mxu0 %v961
          %v1583 = vpop.f32.mrf.mxu0
          %v1584 = vadd.f32 %v695, %v1583
          %v1585 = vpop.f32.mrf.mxu0
          %v1586 = vpop.f32.mrf.mxu0
          %v1587 = vadd.f32 %v695, %v1586
          %v1588 = vpop.f32.mrf.mxu0
          %1589 = vmatprep.mubr.bf16.mxu0 0
          %1590 = vmatmul.mubr.bf16.gmra.mxu0 %v964
          %v1591 = vpop.f32.mrf.mxu0
          %v1592 = vadd.f32 %v695, %v1591
          %v1593 = vpop.f32.mrf.mxu0
          %v1594 = vpop.f32.mrf.mxu0
          %v1595 = vadd.f32 %v695, %v1594
          %v1596 = vpop.f32.mrf.mxu0
          %1597 = vmatprep.mubr.bf16.mxu0 0
          %1598 = vmatmul.mubr.bf16.gmra.mxu0 %v967
          %v1599 = vpop.f32.mrf.mxu0
          %v1600 = vadd.f32 %v695, %v1599
          %v1601 = vpop.f32.mrf.mxu0
          %v1602 = vpop.f32.mrf.mxu0
          %v1603 = vadd.f32 %v695, %v1602
          %v1604 = vpop.f32.mrf.mxu0
          %1605 = vmatprep.mubr.bf16.mxu0 0
          %1606 = vmatmul.mubr.bf16.gmra.mxu0 %v970
          %v1607 = vpop.f32.mrf.mxu0
          %v1608 = vadd.f32 %v695, %v1607
          %v1609 = vpop.f32.mrf.mxu0
          %v1610 = vpop.f32.mrf.mxu0
          %v1611 = vadd.f32 %v695, %v1610
          %v1612 = vpop.f32.mrf.mxu0
          %1613 = vdwg.mxu0
          %1614 = vst [vmem:[#allocation2] sm:$0xff] %v1007
          %1615 = vst [vmem:[#allocation2 + $0x8] sm:$0xff] %v1009
          %1616 = vst [vmem:[#allocation2 + $0x10] sm:$0xff] %v1360
          %1617 = vst [vmem:[#allocation2 + $0x18] sm:$0xff] %v1011
          %1618 = vst [vmem:[#allocation2 + $0x20] sm:$0xff] %v1013
          %1619 = vst [vmem:[#allocation2 + $0x28] sm:$0xff] %v1363
          %1620 = vst [vmem:[#allocation2 + $0x30] sm:$0xff] %v1017
          %1621 = vst [vmem:[#allocation2 + $0x38] sm:$0xff] %v1019
          %1622 = vst [vmem:[#allocation2 + $0x40] sm:$0xff] %v1368
          %1623 = vst [vmem:[#allocation2 + $0x48] sm:$0xff] %v1021
          %1624 = vst [vmem:[#allocation2 + $0x50] sm:$0xff] %v1023
          %1625 = vst [vmem:[#allocation2 + $0x58] sm:$0xff] %v1371
          %1626 = vst [vmem:[#allocation2 + $0x60] sm:$0xff] %v1027
          %1627 = vst [vmem:[#allocation2 + $0x68] sm:$0xff] %v1029
          %1628 = vst [vmem:[#allocation2 + $0x70] sm:$0xff] %v1376
          %1629 = vst [vmem:[#allocation2 + $0x78] sm:$0xff] %v1031
          %1630 = vst [vmem:[#allocation2 + $0x80] sm:$0xff] %v1033
          %1631 = vst [vmem:[#allocation2 + $0x88] sm:$0xff] %v1379
          %1632 = vst [vmem:[#allocation2 + $0x90] sm:$0xff] %v1037
          %1633 = vst [vmem:[#allocation2 + $0x98] sm:$0xff] %v1039
          %1634 = vst [vmem:[#allocation2 + $0xa0] sm:$0xff] %v1384
          %1635 = vst [vmem:[#allocation2 + $0xa8] sm:$0xff] %v1041
          %1636 = vst [vmem:[#allocation2 + $0xb0] sm:$0xff] %v1043
          %1637 = vst [vmem:[#allocation2 + $0xb8] sm:$0xff] %v1387
          %1638 = vst [vmem:[#allocation2 + $0xc0] sm:$0xff] %v1047
          %1639 = vst [vmem:[#allocation2 + $0xc8] sm:$0xff] %v1049
          %1640 = vst [vmem:[#allocation2 + $0xd0] sm:$0xff] %v1392
          %1641 = vst [vmem:[#allocation2 + $0xd8] sm:$0xff] %v1051
          %1642 = vst [vmem:[#allocation2 + $0xe0] sm:$0xff] %v1053
          %1643 = vst [vmem:[#allocation2 + $0xe8] sm:$0xff] %v1395
          %1644 = vst [vmem:[#allocation2 + $0xf0] sm:$0xff] %v1057
          %1645 = vst [vmem:[#allocation2 + $0xf8] sm:$0xff] %v1059
          %1646 = vst [vmem:[#allocation2 + $0x100] sm:$0xff] %v1400
          %1647 = vst [vmem:[#allocation2 + $0x108] sm:$0xff] %v1061
          %1648 = vst [vmem:[#allocation2 + $0x110] sm:$0xff] %v1063
          %1649 = vst [vmem:[#allocation2 + $0x118] sm:$0xff] %v1403
          %1650 = vst [vmem:[#allocation2 + $0x120] sm:$0xff] %v1067
          %1651 = vst [vmem:[#allocation2 + $0x128] sm:$0xff] %v1069
          %1652 = vst [vmem:[#allocation2 + $0x130] sm:$0xff] %v1408
          %1653 = vst [vmem:[#allocation2 + $0x138] sm:$0xff] %v1071
          %1654 = vst [vmem:[#allocation2 + $0x140] sm:$0xff] %v1073
          %1655 = vst [vmem:[#allocation2 + $0x148] sm:$0xff] %v1411
          %1656 = vst [vmem:[#allocation2 + $0x150] sm:$0xff] %v1077
          %1657 = vst [vmem:[#allocation2 + $0x158] sm:$0xff] %v1079
          %1658 = vst [vmem:[#allocation2 + $0x160] sm:$0xff] %v1416
          %1659 = vst [vmem:[#allocation2 + $0x168] sm:$0xff] %v1081
          %1660 = vst [vmem:[#allocation2 + $0x170] sm:$0xff] %v1083
          %1661 = vst [vmem:[#allocation2 + $0x178] sm:$0xff] %v1419
          %1662 = vst [vmem:[#allocation2 + $0x180] sm:$0xff] %v1087
          %1663 = vst [vmem:[#allocation2 + $0x188] sm:$0xff] %v1089
          %1664 = vst [vmem:[#allocation2 + $0x190] sm:$0xff] %v1424
          %1665 = vst [vmem:[#allocation2 + $0x198] sm:$0xff] %v1091
          %1666 = vst [vmem:[#allocation2 + $0x1a0] sm:$0xff] %v1093
          %1667 = vst [vmem:[#allocation2 + $0x1a8] sm:$0xff] %v1427
          %1668 = vst [vmem:[#allocation2 + $0x1b0] sm:$0xff] %v1097
          %1669 = vst [vmem:[#allocation2 + $0x1b8] sm:$0xff] %v1099
          %1670 = vst [vmem:[#allocation2 + $0x1c0] sm:$0xff] %v1432
          %1671 = vst [vmem:[#allocation2 + $0x1c8] sm:$0xff] %v1101
          %1672 = vst [vmem:[#allocation2 + $0x1d0] sm:$0xff] %v1103
          %1673 = vst [vmem:[#allocation2 + $0x1d8] sm:$0xff] %v1435
          %1674 = vst [vmem:[#allocation2 + $0x1e0] sm:$0xff] %v1107
          %1675 = vst [vmem:[#allocation2 + $0x1e8] sm:$0xff] %v1109
          %1676 = vst [vmem:[#allocation2 + $0x1f0] sm:$0xff] %v1440
          %1677 = vst [vmem:[#allocation2 + $0x1f8] sm:$0xff] %v1111
          %1678 = vst [vmem:[#allocation2 + $0x200] sm:$0xff] %v1113
          %1679 = vst [vmem:[#allocation2 + $0x208] sm:$0xff] %v1443
          %1680 = vst [vmem:[#allocation2 + $0x210] sm:$0xff] %v1117
          %1681 = vst [vmem:[#allocation2 + $0x218] sm:$0xff] %v1119
          %1682 = vst [vmem:[#allocation2 + $0x220] sm:$0xff] %v1448
          %1683 = vst [vmem:[#allocation2 + $0x228] sm:$0xff] %v1121
          %1684 = vst [vmem:[#allocation2 + $0x230] sm:$0xff] %v1123
          %1685 = vst [vmem:[#allocation2 + $0x238] sm:$0xff] %v1451
          %1686 = vst [vmem:[#allocation2 + $0x240] sm:$0xff] %v1127
          %1687 = vst [vmem:[#allocation2 + $0x248] sm:$0xff] %v1129
          %1688 = vst [vmem:[#allocation2 + $0x250] sm:$0xff] %v1456
          %1689 = vst [vmem:[#allocation2 + $0x258] sm:$0xff] %v1131
          %1690 = vst [vmem:[#allocation2 + $0x260] sm:$0xff] %v1133
          %1691 = vst [vmem:[#allocation2 + $0x268] sm:$0xff] %v1459
          %1692 = vst [vmem:[#allocation2 + $0x270] sm:$0xff] %v1137
          %1693 = vst [vmem:[#allocation2 + $0x278] sm:$0xff] %v1139
          %1694 = vst [vmem:[#allocation2 + $0x280] sm:$0xff] %v1464
          %1695 = vst [vmem:[#allocation2 + $0x288] sm:$0xff] %v1141
          %1696 = vst [vmem:[#allocation2 + $0x290] sm:$0xff] %v1143
          %1697 = vst [vmem:[#allocation2 + $0x298] sm:$0xff] %v1467
          %1698 = vst [vmem:[#allocation2 + $0x2a0] sm:$0xff] %v1147
          %1699 = vst [vmem:[#allocation2 + $0x2a8] sm:$0xff] %v1149
          %1700 = vst [vmem:[#allocation2 + $0x2b0] sm:$0xff] %v1472
          %1701 = vst [vmem:[#allocation2 + $0x2b8] sm:$0xff] %v1151
          %1702 = vst [vmem:[#allocation2 + $0x2c0] sm:$0xff] %v1153
          %1703 = vst [vmem:[#allocation2 + $0x2c8] sm:$0xff] %v1475
          %1704 = vst [vmem:[#allocation2 + $0x2d0] sm:$0xff] %v1157
          %1705 = vst [vmem:[#allocation2 + $0x2d8] sm:$0xff] %v1159
          %1706 = vst [vmem:[#allocation2 + $0x2e0] sm:$0xff] %v1480
          %1707 = vst [vmem:[#allocation2 + $0x2e8] sm:$0xff] %v1161
          %1708 = vst [vmem:[#allocation2 + $0x2f0] sm:$0xff] %v1163
          %1709 = vst [vmem:[#allocation2 + $0x2f8] sm:$0xff] %v1483
          %1710 = vst [vmem:[#allocation2 + $0x300] sm:$0xff] %v1167
          %1711 = vst [vmem:[#allocation2 + $0x308] sm:$0xff] %v1169
          %1712 = vst [vmem:[#allocation2 + $0x310] sm:$0xff] %v1488
          %1713 = vst [vmem:[#allocation2 + $0x318] sm:$0xff] %v1171
          %1714 = vst [vmem:[#allocation2 + $0x320] sm:$0xff] %v1173
          %1715 = vst [vmem:[#allocation2 + $0x328] sm:$0xff] %v1491
          %1716 = vst [vmem:[#allocation2 + $0x330] sm:$0xff] %v1177
          %1717 = vst [vmem:[#allocation2 + $0x338] sm:$0xff] %v1179
          %1718 = vst [vmem:[#allocation2 + $0x340] sm:$0xff] %v1496
          %1719 = vst [vmem:[#allocation2 + $0x348] sm:$0xff] %v1181
          %1720 = vst [vmem:[#allocation2 + $0x350] sm:$0xff] %v1183
          %1721 = vst [vmem:[#allocation2 + $0x358] sm:$0xff] %v1499
          %1722 = vst [vmem:[#allocation2 + $0x360] sm:$0xff] %v1187
          %1723 = vst [vmem:[#allocation2 + $0x368] sm:$0xff] %v1189
          %1724 = vst [vmem:[#allocation2 + $0x370] sm:$0xff] %v1504
          %1725 = vst [vmem:[#allocation2 + $0x378] sm:$0xff] %v1191
          %1726 = vst [vmem:[#allocation2 + $0x380] sm:$0xff] %v1193
          %1727 = vst [vmem:[#allocation2 + $0x388] sm:$0xff] %v1507
          %1728 = vst [vmem:[#allocation2 + $0x390] sm:$0xff] %v1197
          %1729 = vst [vmem:[#allocation2 + $0x398] sm:$0xff] %v1199
          %1730 = vst [vmem:[#allocation2 + $0x3a0] sm:$0xff] %v1512
          %1731 = vst [vmem:[#allocation2 + $0x3a8] sm:$0xff] %v1201
          %1732 = vst [vmem:[#allocation2 + $0x3b0] sm:$0xff] %v1203
          %1733 = vst [vmem:[#allocation2 + $0x3b8] sm:$0xff] %v1515
          %1734 = vst [vmem:[#allocation2 + $0x3c0] sm:$0xff] %v1207
          %1735 = vst [vmem:[#allocation2 + $0x3c8] sm:$0xff] %v1209
          %1736 = vst [vmem:[#allocation2 + $0x3d0] sm:$0xff] %v1520
          %1737 = vst [vmem:[#allocation2 + $0x3d8] sm:$0xff] %v1211
          %1738 = vst [vmem:[#allocation2 + $0x3e0] sm:$0xff] %v1213
          %1739 = vst [vmem:[#allocation2 + $0x3e8] sm:$0xff] %v1523
          %1740 = vst [vmem:[#allocation2 + $0x3f0] sm:$0xff] %v1217
          %1741 = vst [vmem:[#allocation2 + $0x3f8] sm:$0xff] %v1219
          %1742 = vst [vmem:[#allocation2 + $0x400] sm:$0xff] %v1528
          %1743 = vst [vmem:[#allocation2 + $0x408] sm:$0xff] %v1221
          %1744 = vst [vmem:[#allocation2 + $0x410] sm:$0xff] %v1223
          %1745 = vst [vmem:[#allocation2 + $0x418] sm:$0xff] %v1531
          %1746 = vst [vmem:[#allocation2 + $0x420] sm:$0xff] %v1227
          %1747 = vst [vmem:[#allocation2 + $0x428] sm:$0xff] %v1229
          %1748 = vst [vmem:[#allocation2 + $0x430] sm:$0xff] %v1536
          %1749 = vst [vmem:[#allocation2 + $0x438] sm:$0xff] %v1231
          %1750 = vst [vmem:[#allocation2 + $0x440] sm:$0xff] %v1233
          %1751 = vst [vmem:[#allocation2 + $0x448] sm:$0xff] %v1539
          %1752 = vst [vmem:[#allocation2 + $0x450] sm:$0xff] %v1237
          %1753 = vst [vmem:[#allocation2 + $0x458] sm:$0xff] %v1239
          %1754 = vst [vmem:[#allocation2 + $0x460] sm:$0xff] %v1544
          %1755 = vst [vmem:[#allocation2 + $0x468] sm:$0xff] %v1241
          %1756 = vst [vmem:[#allocation2 + $0x470] sm:$0xff] %v1243
          %1757 = vst [vmem:[#allocation2 + $0x478] sm:$0xff] %v1547
          %1758 = vst [vmem:[#allocation2 + $0x480] sm:$0xff] %v1247
          %1759 = vst [vmem:[#allocation2 + $0x488] sm:$0xff] %v1249
          %1760 = vst [vmem:[#allocation2 + $0x490] sm:$0xff] %v1552
          %1761 = vst [vmem:[#allocation2 + $0x498] sm:$0xff] %v1251
          %1762 = vst [vmem:[#allocation2 + $0x4a0] sm:$0xff] %v1253
          %1763 = vst [vmem:[#allocation2 + $0x4a8] sm:$0xff] %v1555
          %1764 = vst [vmem:[#allocation2 + $0x4b0] sm:$0xff] %v1257
          %1765 = vst [vmem:[#allocation2 + $0x4b8] sm:$0xff] %v1259
          %1766 = vst [vmem:[#allocation2 + $0x4c0] sm:$0xff] %v1560
          %1767 = vst [vmem:[#allocation2 + $0x4c8] sm:$0xff] %v1261
          %1768 = vst [vmem:[#allocation2 + $0x4d0] sm:$0xff] %v1263
          %1769 = vst [vmem:[#allocation2 + $0x4d8] sm:$0xff] %v1563
          %1770 = vst [vmem:[#allocation2 + $0x4e0] sm:$0xff] %v1267
          %1771 = vst [vmem:[#allocation2 + $0x4e8] sm:$0xff] %v1269
          %1772 = vst [vmem:[#allocation2 + $0x4f0] sm:$0xff] %v1568
          %1773 = vst [vmem:[#allocation2 + $0x4f8] sm:$0xff] %v1271
          %1774 = vst [vmem:[#allocation2 + $0x500] sm:$0xff] %v1273
          %1775 = vst [vmem:[#allocation2 + $0x508] sm:$0xff] %v1571
          %1776 = vst [vmem:[#allocation2 + $0x510] sm:$0xff] %v1277
          %1777 = vst [vmem:[#allocation2 + $0x518] sm:$0xff] %v1279
          %1778 = vst [vmem:[#allocation2 + $0x520] sm:$0xff] %v1576
          %1779 = vst [vmem:[#allocation2 + $0x528] sm:$0xff] %v1281
          %1780 = vst [vmem:[#allocation2 + $0x530] sm:$0xff] %v1283
          %1781 = vst [vmem:[#allocation2 + $0x538] sm:$0xff] %v1579
          %1782 = vst [vmem:[#allocation2 + $0x540] sm:$0xff] %v1287
          %1783 = vst [vmem:[#allocation2 + $0x548] sm:$0xff] %v1289
          %1784 = vst [vmem:[#allocation2 + $0x550] sm:$0xff] %v1584
          %1785 = vst [vmem:[#allocation2 + $0x558] sm:$0xff] %v1291
          %1786 = vst [vmem:[#allocation2 + $0x560] sm:$0xff] %v1293
          %1787 = vst [vmem:[#allocation2 + $0x568] sm:$0xff] %v1587
          %1788 = vst [vmem:[#allocation2 + $0x570] sm:$0xff] %v1297
          %1789 = vst [vmem:[#allocation2 + $0x578] sm:$0xff] %v1299
          %1790 = vst [vmem:[#allocation2 + $0x580] sm:$0xff] %v1592
          %1791 = vst [vmem:[#allocation2 + $0x588] sm:$0xff] %v1301
          %1792 = vst [vmem:[#allocation2 + $0x590] sm:$0xff] %v1303
          %1793 = vst [vmem:[#allocation2 + $0x598] sm:$0xff] %v1595
          %1794 = vst [vmem:[#allocation2 + $0x5a0] sm:$0xff] %v1307
          %1795 = vst [vmem:[#allocation2 + $0x5a8] sm:$0xff] %v1309
          %1796 = vst [vmem:[#allocation2 + $0x5b0] sm:$0xff] %v1600
          %1797 = vst [vmem:[#allocation2 + $0x5b8] sm:$0xff] %v1311
          %1798 = vst [vmem:[#allocation2 + $0x5c0] sm:$0xff] %v1313
          %1799 = vst [vmem:[#allocation2 + $0x5c8] sm:$0xff] %v1603
          %1800 = vst [vmem:[#allocation2 + $0x5d0] sm:$0xff] %v1317
          %1801 = vst [vmem:[#allocation2 + $0x5d8] sm:$0xff] %v1319
          %1802 = vst [vmem:[#allocation2 + $0x5e0] sm:$0xff] %v1608
          %1803 = vst [vmem:[#allocation2 + $0x5e8] sm:$0xff] %v1321
          %1804 = vst [vmem:[#allocation2 + $0x5f0] sm:$0xff] %v1323
          %1805 = vst [vmem:[#allocation2 + $0x5f8] sm:$0xff] %v1611
          %v1806 = vld [vmem:[%s592] sm:$0xff]
          %v1807 = vld [vmem:[%s592 + $0x8] sm:$0xff]
          %v1808 = vld [vmem:[%s592 + $0x10] sm:$0xff]
          %v1809 = vld [vmem:[%s592 + $0x18] sm:$0xff]
          %v1810 = vld [vmem:[%s592 + $0x20] sm:$0xff]
          %v1811 = vld [vmem:[%s592 + $0x28] sm:$0xff]
          %v1812 = vld [vmem:[%s592 + $0x30] sm:$0xff]
          %v1813 = vld [vmem:[%s592 + $0x38] sm:$0xff]
          %v1814 = vld [vmem:[%s4] sm:$0xff]
          %v1815 = vld [vmem:[%s4 + $0x8] sm:$0xf]
          %v1816 = vld [vmem:[%s4 + $0xc] sm:$0xff]
          %v1817 = vld [vmem:[%s4 + $0x14] sm:$0xf]
          %v1818 = vld [vmem:[%s4 + $0x18] sm:$0xff]
          %v1819 = vld [vmem:[%s4 + $0x20] sm:$0xf]
          %v1820 = vld [vmem:[%s4 + $0x24] sm:$0xff]
          %v1821 = vld [vmem:[%s4 + $0x2c] sm:$0xf]
          %v1822 = vld [vmem:[%s4 + $0x30] sm:$0xff]
          %v1823 = vld [vmem:[%s4 + $0x38] sm:$0xf]
          %v1824 = vld [vmem:[%s4 + $0x3c] sm:$0xff]
          %v1825 = vld [vmem:[%s4 + $0x44] sm:$0xf]
          %v1826 = vld [vmem:[%s4 + $0x48] sm:$0xff]
          %v1827 = vld [vmem:[%s4 + $0x50] sm:$0xf]
          %v1828 = vld [vmem:[%s4 + $0x54] sm:$0xff]
          %v1829 = vld [vmem:[%s4 + $0x5c] sm:$0xf]
          %v1830 = vld [vmem:[%s4 + $0x60] sm:$0xff]
          %v1831 = vld [vmem:[%s4 + $0x68] sm:$0xf]
          %v1832 = vld [vmem:[%s4 + $0x6c] sm:$0xff]
          %v1833 = vld [vmem:[%s4 + $0x74] sm:$0xf]
          %v1834 = vld [vmem:[%s4 + $0x78] sm:$0xff]
          %v1835 = vld [vmem:[%s4 + $0x80] sm:$0xf]
          %v1836 = vld [vmem:[%s4 + $0x84] sm:$0xff]
          %v1837 = vld [vmem:[%s4 + $0x8c] sm:$0xf]
          %v1838 = vld [vmem:[%s4 + $0x90] sm:$0xff]
          %v1839 = vld [vmem:[%s4 + $0x98] sm:$0xf]
          %v1840 = vld [vmem:[%s4 + $0x9c] sm:$0xff]
          %v1841 = vld [vmem:[%s4 + $0xa4] sm:$0xf]
          %v1842 = vld [vmem:[%s4 + $0xa8] sm:$0xff]
          %v1843 = vld [vmem:[%s4 + $0xb0] sm:$0xf]
          %v1844 = vld [vmem:[%s4 + $0xb4] sm:$0xff]
          %v1845 = vld [vmem:[%s4 + $0xbc] sm:$0xf]
          %v1846 = vld [vmem:[%s6] sm:$0x1]
          %v1848 = vlaneseq
          %v1849 = vshrl.u32 %v1848, 7
          %v1850 = vsub.s32 0, %v1849
          %v1851 = vrot.slane %v1846, %v1850
          %v1853 = vld [vmem:[%s585] sm:$0xff]
          %v1854 = vld [vmem:[%s585 + $0x8] sm:$0xff]
          %v1855 = vld [vmem:[%s585 + $0x10] sm:$0xff]
          %v1856 = vld [vmem:[%s585 + $0x18] sm:$0xff]
          %v1857 = vld [vmem:[%s585 + $0x20] sm:$0xff]
          %v1858 = vld [vmem:[%s585 + $0x28] sm:$0xff]
          %v1859 = vld [vmem:[%s585 + $0x30] sm:$0xff]
          %v1860 = vld [vmem:[%s585 + $0x38] sm:$0xff]
          %v1861 = vld [vmem:[#allocation2] sm:$0xff]
          %v1862 = vld [vmem:[#allocation2 + $0x8] sm:$0xff]
          %v1863 = vld [vmem:[#allocation2 + $0x10] sm:$0xff]
          %v1864 = vld [vmem:[#allocation2 + $0x18] sm:$0xff]
          %v1865 = vld [vmem:[#allocation2 + $0x20] sm:$0xff]
          %v1866 = vld [vmem:[#allocation2 + $0x28] sm:$0xff]
          %v1867 = vld [vmem:[#allocation2 + $0x30] sm:$0xff]
          %v1868 = vld [vmem:[#allocation2 + $0x38] sm:$0xff]
          %v1869 = vld [vmem:[#allocation2 + $0x40] sm:$0xff]
          %v1870 = vld [vmem:[#allocation2 + $0x48] sm:$0xff]
          %v1871 = vld [vmem:[#allocation2 + $0x50] sm:$0xff]
          %v1872 = vld [vmem:[#allocation2 + $0x58] sm:$0xff]
          %v1873 = vld [vmem:[#allocation2 + $0x60] sm:$0xff]
          %v1874 = vld [vmem:[#allocation2 + $0x68] sm:$0xff]
          %v1875 = vld [vmem:[#allocation2 + $0x70] sm:$0xff]
          %v1876 = vld [vmem:[#allocation2 + $0x78] sm:$0xff]
          %v1877 = vld [vmem:[#allocation2 + $0x80] sm:$0xff]
          %v1878 = vld [vmem:[#allocation2 + $0x88] sm:$0xff]
          %v1879 = vld [vmem:[#allocation2 + $0x90] sm:$0xff]
          %v1880 = vld [vmem:[#allocation2 + $0x98] sm:$0xff]
          %v1881 = vld [vmem:[#allocation2 + $0xa0] sm:$0xff]
          %v1882 = vld [vmem:[#allocation2 + $0xa8] sm:$0xff]
          %v1883 = vld [vmem:[#allocation2 + $0xb0] sm:$0xff]
          %v1884 = vld [vmem:[#allocation2 + $0xb8] sm:$0xff]
          %v1885 = vpack.c.bf16 %v1854, %v1853
          %v1886 = vpack.c.bf16 %v1856, %v1855
          %v1887 = vpack.c.bf16 %v1858, %v1857
          %v1888 = vpack.c.bf16 %v1860, %v1859
          %v1921 = vunpack.c.l.b16 %v1814
          %v1922 = vunpack.c.h.b16 %v1814
          %v1923 = vunpack.c.l.b16 %v1815
          %v1924 = vunpack.c.l.b16 %v1816
          %v1925 = vunpack.c.h.b16 %v1816
          %v1926 = vunpack.c.l.b16 %v1817
          %v1927 = vunpack.c.l.b16 %v1818
          %v1928 = vunpack.c.h.b16 %v1818
          %v1929 = vunpack.c.l.b16 %v1819
          %v1930 = vunpack.c.l.b16 %v1820
          %v1931 = vunpack.c.h.b16 %v1820
          %v1932 = vunpack.c.l.b16 %v1821
          %v1933 = vunpack.c.l.b16 %v1822
          %v1934 = vunpack.c.h.b16 %v1822
          %v1935 = vunpack.c.l.b16 %v1823
          %v1936 = vunpack.c.l.b16 %v1824
          %v1937 = vunpack.c.h.b16 %v1824
          %v1938 = vunpack.c.l.b16 %v1825
          %v1939 = vunpack.c.l.b16 %v1826
          %v1940 = vunpack.c.h.b16 %v1826
          %v1941 = vunpack.c.l.b16 %v1827
          %v1942 = vunpack.c.l.b16 %v1828
          %v1943 = vunpack.c.h.b16 %v1828
          %v1944 = vunpack.c.l.b16 %v1829
          %v1945 = vunpack.c.l.b16 %v1830
          %v1946 = vunpack.c.h.b16 %v1830
          %v1947 = vunpack.c.l.b16 %v1831
          %v1948 = vunpack.c.l.b16 %v1832
          %v1949 = vunpack.c.h.b16 %v1832
          %v1950 = vunpack.c.l.b16 %v1833
          %v1951 = vunpack.c.l.b16 %v1834
          %v1952 = vunpack.c.h.b16 %v1834
          %v1953 = vunpack.c.l.b16 %v1835
          %v1954 = vunpack.c.l.b16 %v1836
          %v1955 = vunpack.c.h.b16 %v1836
          %v1956 = vunpack.c.l.b16 %v1837
          %v1957 = vunpack.c.l.b16 %v1838
          %v1958 = vunpack.c.h.b16 %v1838
          %v1959 = vunpack.c.l.b16 %v1839
          %v1960 = vunpack.c.l.b16 %v1840
          %v1961 = vunpack.c.h.b16 %v1840
          %v1962 = vunpack.c.l.b16 %v1841
          %v1963 = vunpack.c.l.b16 %v1842
          %v1964 = vunpack.c.h.b16 %v1842
          %v1965 = vunpack.c.l.b16 %v1843
          %v1966 = vunpack.c.l.b16 %v1844
          %v1967 = vunpack.c.h.b16 %v1844
          %v1968 = vunpack.c.l.b16 %v1845
          %v1969 = vpack.c.b16 %v1924, %v1921
          %v1970 = vpack.c.b16 %v1925, %v1922
          %v1971 = vpack.c.b16 %v1926, %v1923
          %v1972 = vpack.c.b16 %v1930, %v1927
          %v1973 = vpack.c.b16 %v1931, %v1928
          %v1974 = vpack.c.b16 %v1932, %v1929
          %v1975 = vpack.c.b16 %v1936, %v1933
          %v1976 = vpack.c.b16 %v1937, %v1934
          %v1977 = vpack.c.b16 %v1938, %v1935
          %v1978 = vpack.c.b16 %v1942, %v1939
          %v1979 = vpack.c.b16 %v1943, %v1940
          %v1980 = vpack.c.b16 %v1944, %v1941
          %v1981 = vpack.c.b16 %v1948, %v1945
          %v1982 = vpack.c.b16 %v1949, %v1946
          %v1983 = vpack.c.b16 %v1950, %v1947
          %v1984 = vpack.c.b16 %v1954, %v1951
          %v1985 = vpack.c.b16 %v1955, %v1952
          %v1986 = vpack.c.b16 %v1956, %v1953
          %v1987 = vpack.c.b16 %v1960, %v1957
          %v1988 = vpack.c.b16 %v1961, %v1958
          %v1989 = vpack.c.b16 %v1962, %v1959
          %v1990 = vpack.c.b16 %v1966, %v1963
          %v1991 = vpack.c.b16 %v1967, %v1964
          %v1992 = vpack.c.b16 %v1968, %v1965
          %2017 = vmatprep.subr.bf16.mxu0 %v1991
          %2018 = vmatpush1.bf16.msra.mxu0 %v1990
          %2019 = vmatprep.subr.bf16.mxu0 %v1988
          %2020 = vmatpush1.bf16.msra.mxu0 %v1987
          %2021 = vmatprep.subr.bf16.mxu0 %v1985
          %2022 = vmatpush1.bf16.msra.mxu0 %v1984
          %2023 = vmatprep.subr.bf16.mxu0 %v1982
          %2024 = vmatpush1.bf16.msra.mxu0 %v1981
          %2025 = vmatprep.subr.bf16.mxu0 %v1979
          %2026 = vmatpush1.bf16.msra.mxu0 %v1978
          %2027 = vmatprep.subr.bf16.mxu0 %v1976
          %2028 = vmatpush1.bf16.msra.mxu0 %v1975
          %2029 = vmatprep.subr.bf16.mxu0 %v1973
          %2030 = vmatpush1.bf16.msra.mxu0 %v1972
          %2031 = vmatprep.subr.bf16.mxu0 %v1970
          %2032 = vmatpush1.bf16.msra.mxu0 %v1969
          %2033 = vmatprep.subr.bf16.mxu0 0
          %2034 = vmatpush2.bf16.msra.mxu0 0
          %2035 = vmatprep.subr.bf16.mxu0 0
          %2036 = vmatpush2.bf16.msra.mxu0 0
          %2037 = vmatprep.subr.bf16.mxu0 0
          %2038 = vmatpush2.bf16.msra.mxu0 0
          %2039 = vmatprep.subr.bf16.mxu0 0
          %2040 = vmatpush2.bf16.msra.mxu0 0
          %2041 = vmatprep.subr.bf16.mxu0 0
          %2042 = vmatpush2.bf16.msra.mxu0 0
          %2043 = vmatprep.subr.bf16.mxu0 0
          %2044 = vmatpush2.bf16.msra.mxu0 0
          %2045 = vmatprep.subr.bf16.mxu0 0
          %2046 = vmatpush2.bf16.msra.mxu0 0
          %2047 = vmatprep.subr.bf16.mxu0 0
          %2048 = vmatpush2.bf16.msra.mxu0 0
          %2049 = vmatprep.mubr.bf16.mxu0 0
          %2050 = vmatmul.mubr.bf16.gmra.mxu0 %v1885
          %v2051 = vpop.f32.mrf.mxu0
          %v2052 = vadd.f32 0.0, %v2051
          %v2053 = vpop.f32.mrf.mxu0
          %v2054 = vadd.f32 0.0, %v2053
          %v2055 = vpop.f32.mrf.mxu0
          %v2056 = vadd.f32 0.0, %v2055
          %v2057 = vpop.f32.mrf.mxu0
          %v2058 = vadd.f32 0.0, %v2057
          %2059 = vmatprep.mubr.bf16.mxu0 0
          %2060 = vmatmul.mubr.bf16.gmra.mxu0 %v1886
          %v2061 = vpop.f32.mrf.mxu0
          %v2062 = vadd.f32 0.0, %v2061
          %v2063 = vpop.f32.mrf.mxu0
          %v2064 = vadd.f32 0.0, %v2063
          %v2065 = vpop.f32.mrf.mxu0
          %v2066 = vadd.f32 0.0, %v2065
          %v2067 = vpop.f32.mrf.mxu0
          %v2068 = vadd.f32 0.0, %v2067
          %2069 = vmatprep.mubr.bf16.mxu0 0
          %2070 = vmatmul.mubr.bf16.gmra.mxu0 %v1887
          %v2071 = vpop.f32.mrf.mxu0
          %v2072 = vadd.f32 0.0, %v2071
          %v2073 = vpop.f32.mrf.mxu0
          %v2074 = vadd.f32 0.0, %v2073
          %v2075 = vpop.f32.mrf.mxu0
          %v2076 = vadd.f32 0.0, %v2075
          %v2077 = vpop.f32.mrf.mxu0
          %v2078 = vadd.f32 0.0, %v2077
          %2079 = vmatprep.mubr.bf16.mxu0 0
          %2080 = vmatmul.mubr.bf16.gmra.mxu0 %v1888
          %v2081 = vpop.f32.mrf.mxu0
          %v2082 = vadd.f32 0.0, %v2081
          %v2083 = vpop.f32.mrf.mxu0
          %v2084 = vadd.f32 0.0, %v2083
          %v2085 = vpop.f32.mrf.mxu0
          %v2086 = vadd.f32 0.0, %v2085
          %v2087 = vpop.f32.mrf.mxu0
          %v2088 = vadd.f32 0.0, %v2087
          %2089 = vdwg.mxu0
          %2090 = vmatprep.subr.bf16.mxu0 0
          %2091 = vmatpush1.bf16.msra.mxu0 %v1992
          %2092 = vmatprep.subr.bf16.mxu0 0
          %2093 = vmatpush1.bf16.msra.mxu0 %v1989
          %2094 = vmatprep.subr.bf16.mxu0 0
          %2095 = vmatpush1.bf16.msra.mxu0 %v1986
          %2096 = vmatprep.subr.bf16.mxu0 0
          %2097 = vmatpush1.bf16.msra.mxu0 %v1983
          %2098 = vmatprep.subr.bf16.mxu0 0
          %2099 = vmatpush1.bf16.msra.mxu0 %v1980
          %2100 = vmatprep.subr.bf16.mxu0 0
          %2101 = vmatpush1.bf16.msra.mxu0 %v1977
          %2102 = vmatprep.subr.bf16.mxu0 0
          %2103 = vmatpush1.bf16.msra.mxu0 %v1974
          %2104 = vmatprep.subr.bf16.mxu0 0
          %2105 = vmatpush1.bf16.msra.mxu0 %v1971
          %2106 = vmatprep.subr.bf16.mxu0 0
          %2107 = vmatpush2.bf16.msra.mxu0 0
          %2108 = vmatprep.subr.bf16.mxu0 0
          %2109 = vmatpush2.bf16.msra.mxu0 0
          %2110 = vmatprep.subr.bf16.mxu0 0
          %2111 = vmatpush2.bf16.msra.mxu0 0
          %2112 = vmatprep.subr.bf16.mxu0 0
          %2113 = vmatpush2.bf16.msra.mxu0 0
          %2114 = vmatprep.subr.bf16.mxu0 0
          %2115 = vmatpush2.bf16.msra.mxu0 0
          %2116 = vmatprep.subr.bf16.mxu0 0
          %2117 = vmatpush2.bf16.msra.mxu0 0
          %2118 = vmatprep.subr.bf16.mxu0 0
          %2119 = vmatpush2.bf16.msra.mxu0 0
          %2120 = vmatprep.subr.bf16.mxu0 0
          %2121 = vmatpush2.bf16.msra.mxu0 0
          %2122 = vmatprep.mubr.bf16.mxu0 0
          %2123 = vmatmul.mubr.bf16.gmra.mxu0 %v1885
          %v2124 = vpop.f32.mrf.mxu0
          %v2125 = vadd.f32 0.0, %v2124
          %v2126 = vpop.f32.mrf.mxu0
          %v2127 = vpop.f32.mrf.mxu0
          %v2128 = vadd.f32 0.0, %v2127
          %v2129 = vpop.f32.mrf.mxu0
          %2130 = vmatprep.mubr.bf16.mxu0 0
          %2131 = vmatmul.mubr.bf16.gmra.mxu0 %v1886
          %v2132 = vpop.f32.mrf.mxu0
          %v2133 = vadd.f32 0.0, %v2132
          %v2134 = vpop.f32.mrf.mxu0
          %v2135 = vpop.f32.mrf.mxu0
          %v2136 = vadd.f32 0.0, %v2135
          %v2137 = vpop.f32.mrf.mxu0
          %2138 = vmatprep.mubr.bf16.mxu0 0
          %2139 = vmatmul.mubr.bf16.gmra.mxu0 %v1887
          %v2140 = vpop.f32.mrf.mxu0
          %v2141 = vadd.f32 0.0, %v2140
          %v2142 = vpop.f32.mrf.mxu0
          %v2143 = vpop.f32.mrf.mxu0
          %v2144 = vadd.f32 0.0, %v2143
          %v2145 = vpop.f32.mrf.mxu0
          %2146 = vmatprep.mubr.bf16.mxu0 0
          %2147 = vmatmul.mubr.bf16.gmra.mxu0 %v1888
          %v2148 = vpop.f32.mrf.mxu0
          %v2149 = vadd.f32 0.0, %v2148
          %v2150 = vpop.f32.mrf.mxu0
          %v2151 = vpop.f32.mrf.mxu0
          %v2152 = vadd.f32 0.0, %v2151
          %v2153 = vpop.f32.mrf.mxu0
          %2154 = vdwg.mxu0
          %v2155 = vadd.f32 %v2125, %v1851
          %v2156 = vadd.f32 %v2128, %v1851
          %v2157 = vadd.f32 %v2133, %v1851
          %v2158 = vadd.f32 %v2136, %v1851
          %v2159 = vadd.f32 %v2141, %v1851
          %v2160 = vadd.f32 %v2144, %v1851
          %v2161 = vadd.f32 %v2149, %v1851
          %v2162 = vadd.f32 %v2152, %v1851
          %v2163 = vadd.f32 %v1861, %v2052
          %v2164 = vadd.f32 %v1864, %v2056
          %v2165 = vadd.f32 %v1867, %v2062
          %v2166 = vadd.f32 %v1870, %v2066
          %v2167 = vadd.f32 %v1873, %v2072
          %v2168 = vadd.f32 %v1876, %v2076
          %v2169 = vadd.f32 %v1879, %v2082
          %v2170 = vadd.f32 %v1882, %v2086
          %v2171 = vxor.u32 %v2163, 2147483648
          %v2172 = vxor.u32 %v2164, 2147483648
          %v2173 = vxor.u32 %v2165, 2147483648
          %v2174 = vxor.u32 %v2166, 2147483648
          %v2175 = vxor.u32 %v2167, 2147483648
          %v2176 = vxor.u32 %v2168, 2147483648
          %v2177 = vxor.u32 %v2169, 2147483648
          %v2178 = vxor.u32 %v2170, 2147483648
          %v2179 = vmul.f32 %v2171, 1.442695
          %v2180 = vpow.pop %v2179
          %v2181 = vmul.f32 %v2172, 1.442695
          %v2182 = vpow.pop %v2181
          %v2183 = vmul.f32 %v2173, 1.442695
          %v2184 = vpow.pop %v2183
          %v2185 = vmul.f32 %v2174, 1.442695
          %v2186 = vpow.pop %v2185
          %v2187 = vmul.f32 %v2175, 1.442695
          %v2188 = vpow.pop %v2187
          %v2189 = vmul.f32 %v2176, 1.442695
          %v2190 = vpow.pop %v2189
          %v2191 = vmul.f32 %v2177, 1.442695
          %v2192 = vpow.pop %v2191
          %v2193 = vmul.f32 %v2178, 1.442695
          %v2194 = vpow.pop %v2193
          %v2195 = vadd.f32 %v2180, 1.0
          %v2196 = vadd.f32 %v2182, 1.0
          %v2197 = vadd.f32 %v2184, 1.0
          %v2198 = vadd.f32 %v2186, 1.0
          %v2199 = vadd.f32 %v2188, 1.0
          %v2200 = vadd.f32 %v2190, 1.0
          %v2201 = vadd.f32 %v2192, 1.0
          %v2202 = vadd.f32 %v2194, 1.0
          %v2203 = vrcp.pop %v2195
          %v2204 = vmul.f32 1.0, %v2203
          %v2205 = vrcp.pop %v2196
          %v2206 = vmul.f32 1.0, %v2205
          %v2207 = vrcp.pop %v2197
          %v2208 = vmul.f32 1.0, %v2207
          %v2209 = vrcp.pop %v2198
          %v2210 = vmul.f32 1.0, %v2209
          %v2211 = vrcp.pop %v2199
          %v2212 = vmul.f32 1.0, %v2211
          %v2213 = vrcp.pop %v2200
          %v2214 = vmul.f32 1.0, %v2213
          %v2215 = vrcp.pop %v2201
          %v2216 = vmul.f32 1.0, %v2215
          %v2217 = vrcp.pop %v2202
          %v2218 = vmul.f32 1.0, %v2217
          %v2219 = vadd.f32 %v1862, %v2054
          %v2220 = vadd.f32 %v1865, %v2058
          %v2221 = vadd.f32 %v1868, %v2064
          %v2222 = vadd.f32 %v1871, %v2068
          %v2223 = vadd.f32 %v1874, %v2074
          %v2224 = vadd.f32 %v1877, %v2078
          %v2225 = vadd.f32 %v1880, %v2084
          %v2226 = vadd.f32 %v1883, %v2088
          %v2227 = vxor.u32 %v2219, 2147483648
          %v2228 = vxor.u32 %v2220, 2147483648
          %v2229 = vxor.u32 %v2221, 2147483648
          %v2230 = vxor.u32 %v2222, 2147483648
          %v2231 = vxor.u32 %v2223, 2147483648
          %v2232 = vxor.u32 %v2224, 2147483648
          %v2233 = vxor.u32 %v2225, 2147483648
          %v2234 = vxor.u32 %v2226, 2147483648
          %v2235 = vmul.f32 %v2227, 1.442695
          %v2236 = vpow.pop %v2235
          %v2237 = vmul.f32 %v2228, 1.442695
          %v2238 = vpow.pop %v2237
          %v2239 = vmul.f32 %v2229, 1.442695
          %v2240 = vpow.pop %v2239
          %v2241 = vmul.f32 %v2230, 1.442695
          %v2242 = vpow.pop %v2241
          %v2243 = vmul.f32 %v2231, 1.442695
          %v2244 = vpow.pop %v2243
          %v2245 = vmul.f32 %v2232, 1.442695
          %v2246 = vpow.pop %v2245
          %v2247 = vmul.f32 %v2233, 1.442695
          %v2248 = vpow.pop %v2247
          %v2249 = vmul.f32 %v2234, 1.442695
          %v2250 = vpow.pop %v2249
          %v2251 = vadd.f32 %v2236, 1.0
          %v2252 = vadd.f32 %v2238, 1.0
          %v2253 = vadd.f32 %v2240, 1.0
          %v2254 = vadd.f32 %v2242, 1.0
          %v2255 = vadd.f32 %v2244, 1.0
          %v2256 = vadd.f32 %v2246, 1.0
          %v2257 = vadd.f32 %v2248, 1.0
          %v2258 = vadd.f32 %v2250, 1.0
          %v2259 = vrcp.pop %v2251
          %v2260 = vmul.f32 1.0, %v2259
          %v2261 = vrcp.pop %v2252
          %v2262 = vmul.f32 1.0, %v2261
          %v2263 = vrcp.pop %v2253
          %v2264 = vmul.f32 1.0, %v2263
          %v2265 = vrcp.pop %v2254
          %v2266 = vmul.f32 1.0, %v2265
          %v2267 = vrcp.pop %v2255
          %v2268 = vmul.f32 1.0, %v2267
          %v2269 = vrcp.pop %v2256
          %v2270 = vmul.f32 1.0, %v2269
          %v2271 = vrcp.pop %v2257
          %v2272 = vmul.f32 1.0, %v2271
          %v2273 = vrcp.pop %v2258
          %v2274 = vmul.f32 1.0, %v2273
          %v2275 = vmul.f32 %v2204, %v2155
          %v2276 = vmul.f32 %v2206, %v2156
          %v2277 = vmul.f32 %v2208, %v2157
          %v2278 = vmul.f32 %v2210, %v2158
          %v2279 = vmul.f32 %v2212, %v2159
          %v2280 = vmul.f32 %v2214, %v2160
          %v2281 = vmul.f32 %v2216, %v2161
          %v2282 = vmul.f32 %v2218, %v2162
          %v2283 = vadd.f32 %v1863, %v2275
          %v2284 = vadd.f32 %v1866, %v2276
          %v2285 = vadd.f32 %v1869, %v2277
          %v2286 = vadd.f32 %v1872, %v2278
          %v2287 = vadd.f32 %v1875, %v2279
          %v2288 = vadd.f32 %v1878, %v2280
          %v2289 = vadd.f32 %v1881, %v2281
          %v2290 = vadd.f32 %v1884, %v2282
          %v2291 = vtanh.pop %v2283
          %v2292 = vtanh.pop %v2284
          %v2293 = vtanh.pop %v2285
          %v2294 = vtanh.pop %v2286
          %v2295 = vtanh.pop %v2287
          %v2296 = vtanh.pop %v2288
          %v2297 = vtanh.pop %v2289
          %v2298 = vtanh.pop %v2290
          %v2299 = vsub.f32 1.0, %v2260
          %v2300 = vsub.f32 1.0, %v2262
          %v2301 = vsub.f32 1.0, %v2264
          %v2302 = vsub.f32 1.0, %v2266
          %v2303 = vsub.f32 1.0, %v2268
          %v2304 = vsub.f32 1.0, %v2270
          %v2305 = vsub.f32 1.0, %v2272
          %v2306 = vsub.f32 1.0, %v2274
          %v2307 = vmul.f32 %v2299, %v2291
          %v2308 = vmul.f32 %v2300, %v2292
          %v2309 = vmul.f32 %v2301, %v2293
          %v2310 = vmul.f32 %v2302, %v2294
          %v2311 = vmul.f32 %v2303, %v2295
          %v2312 = vmul.f32 %v2304, %v2296
          %v2313 = vmul.f32 %v2305, %v2297
          %v2314 = vmul.f32 %v2306, %v2298
          %v2315 = vmul.f32 %v2260, %v1853
          %v2316 = vmul.f32 %v2262, %v1854
          %v2317 = vmul.f32 %v2264, %v1855
          %v2318 = vmul.f32 %v2266, %v1856
          %v2319 = vmul.f32 %v2268, %v1857
          %v2320 = vmul.f32 %v2270, %v1858
          %v2321 = vmul.f32 %v2272, %v1859
          %v2322 = vmul.f32 %v2274, %v1860
          %v2323 = vadd.f32 %v2307, %v2315
          %v2324 = vadd.f32 %v2308, %v2316
          %v2325 = vadd.f32 %v2309, %v2317
          %v2326 = vadd.f32 %v2310, %v2318
          %v2327 = vadd.f32 %v2311, %v2319
          %v2328 = vadd.f32 %v2312, %v2320
          %v2329 = vadd.f32 %v2313, %v2321
          %v2330 = vadd.f32 %v2314, %v2322
          %v2331 = vstv %s608
          %vm2332 = vcmp.gt.s32.totalorder %v1806, %v2331
          %vm2333 = vcmp.gt.s32.totalorder %v1807, %v2331
          %vm2334 = vcmp.gt.s32.totalorder %v1808, %v2331
          %vm2335 = vcmp.gt.s32.totalorder %v1809, %v2331
          %vm2336 = vcmp.gt.s32.totalorder %v1810, %v2331
          %vm2337 = vcmp.gt.s32.totalorder %v1811, %v2331
          %vm2338 = vcmp.gt.s32.totalorder %v1812, %v2331
          %vm2339 = vcmp.gt.s32.totalorder %v1813, %v2331
          %v2340 = vsel %vm2332, 1, 0
          %v2341 = vsel %vm2333, 1, 0
          %v2342 = vsel %vm2334, 1, 0
          %v2343 = vsel %vm2335, 1, 0
          %v2344 = vsel %vm2336, 1, 0
          %v2345 = vsel %vm2337, 1, 0
          %v2346 = vsel %vm2338, 1, 0
          %v2347 = vsel %vm2339, 1, 0
          %2348 = vset.pattern.permute.xlu0 0
          %2349 = vperm.xlu0 %2348, %v2340
          %v2350 = vpop.permute.xlu0 %2349
          %2351 = vset.pattern.permute.xlu0 0
          %2352 = vperm.xlu0 %2351, %v2341
          %v2353 = vpop.permute.xlu0 %2352
          %2354 = vset.pattern.permute.xlu0 0
          %2355 = vperm.xlu0 %2354, %v2342
          %v2356 = vpop.permute.xlu0 %2355
          %2357 = vset.pattern.permute.xlu0 0
          %2358 = vperm.xlu0 %2357, %v2343
          %v2359 = vpop.permute.xlu0 %2358
          %2360 = vset.pattern.permute.xlu0 0
          %2361 = vperm.xlu0 %2360, %v2344
          %v2362 = vpop.permute.xlu0 %2361
          %2363 = vset.pattern.permute.xlu0 0
          %2364 = vperm.xlu0 %2363, %v2345
          %v2365 = vpop.permute.xlu0 %2364
          %2366 = vset.pattern.permute.xlu0 0
          %2367 = vperm.xlu0 %2366, %v2346
          %v2368 = vpop.permute.xlu0 %2367
          %2369 = vset.pattern.permute.xlu0 0
          %2370 = vperm.xlu0 %2369, %v2347
          %v2371 = vpop.permute.xlu0 %2370
          %vm2372 = vcmp.eq.s32.totalorder %v2350, 1
          %vm2373 = vcmp.eq.s32.totalorder %v2353, 1
          %vm2374 = vcmp.eq.s32.totalorder %v2356, 1
          %vm2375 = vcmp.eq.s32.totalorder %v2359, 1
          %vm2376 = vcmp.eq.s32.totalorder %v2362, 1
          %vm2377 = vcmp.eq.s32.totalorder %v2365, 1
          %vm2378 = vcmp.eq.s32.totalorder %v2368, 1
          %vm2379 = vcmp.eq.s32.totalorder %v2371, 1
          %v2380 = vsel %vm2372, %v2323, %v1853
          %v2381 = vsel %vm2373, %v2324, %v1854
          %v2382 = vsel %vm2374, %v2325, %v1855
          %v2383 = vsel %vm2375, %v2326, %v1856
          %v2384 = vsel %vm2376, %v2327, %v1857
          %v2385 = vsel %vm2377, %v2328, %v1858
          %v2386 = vsel %vm2378, %v2329, %v1859
          %v2387 = vsel %vm2379, %v2330, %v1860
          %s2388 = scalar_lea.vmem [#allocation2], 192
          %v2389 = vld [vmem:[%s2388] sm:$0xff]
          %v2390 = vld [vmem:[%s2388 + $0x8] sm:$0xff]
          %v2391 = vld [vmem:[%s2388 + $0x10] sm:$0xff]
          %v2392 = vld [vmem:[%s2388 + $0x18] sm:$0xff]
          %v2393 = vld [vmem:[%s2388 + $0x20] sm:$0xff]
          %v2394 = vld [vmem:[%s2388 + $0x28] sm:$0xff]
          %v2395 = vld [vmem:[%s2388 + $0x30] sm:$0xff]
          %v2396 = vld [vmem:[%s2388 + $0x38] sm:$0xff]
          %v2397 = vld [vmem:[%s2388 + $0x40] sm:$0xff]
          %v2398 = vld [vmem:[%s2388 + $0x48] sm:$0xff]
          %v2399 = vld [vmem:[%s2388 + $0x50] sm:$0xff]
          %v2400 = vld [vmem:[%s2388 + $0x58] sm:$0xff]
          %v2401 = vld [vmem:[%s2388 + $0x60] sm:$0xff]
          %v2402 = vld [vmem:[%s2388 + $0x68] sm:$0xff]
          %v2403 = vld [vmem:[%s2388 + $0x70] sm:$0xff]
          %v2404 = vld [vmem:[%s2388 + $0x78] sm:$0xff]
          %v2405 = vld [vmem:[%s2388 + $0x80] sm:$0xff]
          %v2406 = vld [vmem:[%s2388 + $0x88] sm:$0xff]
          %v2407 = vld [vmem:[%s2388 + $0x90] sm:$0xff]
          %v2408 = vld [vmem:[%s2388 + $0x98] sm:$0xff]
          %v2409 = vld [vmem:[%s2388 + $0xa0] sm:$0xff]
          %v2410 = vld [vmem:[%s2388 + $0xa8] sm:$0xff]
          %v2411 = vld [vmem:[%s2388 + $0xb0] sm:$0xff]
          %v2412 = vld [vmem:[%s2388 + $0xb8] sm:$0xff]
          %v2413 = vpack.c.bf16 %v2381, %v2380
          %v2414 = vpack.c.bf16 %v2383, %v2382
          %v2415 = vpack.c.bf16 %v2385, %v2384
          %v2416 = vpack.c.bf16 %v2387, %v2386
          %2417 = vmatprep.subr.bf16.mxu0 %v1991
          %2418 = vmatpush1.bf16.msra.mxu0 %v1990
          %2419 = vmatprep.subr.bf16.mxu0 %v1988
          %2420 = vmatpush1.bf16.msra.mxu0 %v1987
          %2421 = vmatprep.subr.bf16.mxu0 %v1985
          %2422 = vmatpush1.bf16.msra.mxu0 %v1984
          %2423 = vmatprep.subr.bf16.mxu0 %v1982
          %2424 = vmatpush1.bf16.msra.mxu0 %v1981
          %2425 = vmatprep.subr.bf16.mxu0 %v1979
          %2426 = vmatpush1.bf16.msra.mxu0 %v1978
          %2427 = vmatprep.subr.bf16.mxu0 %v1976
          %2428 = vmatpush1.bf16.msra.mxu0 %v1975
          %2429 = vmatprep.subr.bf16.mxu0 %v1973
          %2430 = vmatpush1.bf16.msra.mxu0 %v1972
          %2431 = vmatprep.subr.bf16.mxu0 %v1970
          %2432 = vmatpush1.bf16.msra.mxu0 %v1969
          %2433 = vmatprep.subr.bf16.mxu0 0
          %2434 = vmatpush2.bf16.msra.mxu0 0
          %2435 = vmatprep.subr.bf16.mxu0 0
          %2436 = vmatpush2.bf16.msra.mxu0 0
          %2437 = vmatprep.subr.bf16.mxu0 0
          %2438 = vmatpush2.bf16.msra.mxu0 0
          %2439 = vmatprep.subr.bf16.mxu0 0
          %2440 = vmatpush2.bf16.msra.mxu0 0
          %2441 = vmatprep.subr.bf16.mxu0 0
          %2442 = vmatpush2.bf16.msra.mxu0 0
          %2443 = vmatprep.subr.bf16.mxu0 0
          %2444 = vmatpush2.bf16.msra.mxu0 0
          %2445 = vmatprep.subr.bf16.mxu0 0
          %2446 = vmatpush2.bf16.msra.mxu0 0
          %2447 = vmatprep.subr.bf16.mxu0 0
          %2448 = vmatpush2.bf16.msra.mxu0 0
          %2449 = vmatprep.mubr.bf16.mxu0 0
          %2450 = vmatmul.mubr.bf16.gmra.mxu0 %v2413
          %v2451 = vpop.f32.mrf.mxu0
          %v2452 = vadd.f32 0.0, %v2451
          %v2453 = vpop.f32.mrf.mxu0
          %v2454 = vadd.f32 0.0, %v2453
          %v2455 = vpop.f32.mrf.mxu0
          %v2456 = vadd.f32 0.0, %v2455
          %v2457 = vpop.f32.mrf.mxu0
          %v2458 = vadd.f32 0.0, %v2457
          %2459 = vmatprep.mubr.bf16.mxu0 0
          %2460 = vmatmul.mubr.bf16.gmra.mxu0 %v2414
          %v2461 = vpop.f32.mrf.mxu0
          %v2462 = vadd.f32 0.0, %v2461
          %v2463 = vpop.f32.mrf.mxu0
          %v2464 = vadd.f32 0.0, %v2463
          %v2465 = vpop.f32.mrf.mxu0
          %v2466 = vadd.f32 0.0, %v2465
          %v2467 = vpop.f32.mrf.mxu0
          %v2468 = vadd.f32 0.0, %v2467
          %2469 = vmatprep.mubr.bf16.mxu0 0
          %2470 = vmatmul.mubr.bf16.gmra.mxu0 %v2415
          %v2471 = vpop.f32.mrf.mxu0
          %v2472 = vadd.f32 0.0, %v2471
          %v2473 = vpop.f32.mrf.mxu0
          %v2474 = vadd.f32 0.0, %v2473
          %v2475 = vpop.f32.mrf.mxu0
          %v2476 = vadd.f32 0.0, %v2475
          %v2477 = vpop.f32.mrf.mxu0
          %v2478 = vadd.f32 0.0, %v2477
          %2479 = vmatprep.mubr.bf16.mxu0 0
          %2480 = vmatmul.mubr.bf16.gmra.mxu0 %v2416
          %v2481 = vpop.f32.mrf.mxu0
          %v2482 = vadd.f32 0.0, %v2481
          %v2483 = vpop.f32.mrf.mxu0
          %v2484 = vadd.f32 0.0, %v2483
          %v2485 = vpop.f32.mrf.mxu0
          %v2486 = vadd.f32 0.0, %v2485
          %v2487 = vpop.f32.mrf.mxu0
          %v2488 = vadd.f32 0.0, %v2487
          %2489 = vdwg.mxu0
          %2490 = vmatprep.subr.bf16.mxu0 0
          %2491 = vmatpush1.bf16.msra.mxu0 %v1992
          %2492 = vmatprep.subr.bf16.mxu0 0
          %2493 = vmatpush1.bf16.msra.mxu0 %v1989
          %2494 = vmatprep.subr.bf16.mxu0 0
          %2495 = vmatpush1.bf16.msra.mxu0 %v1986
          %2496 = vmatprep.subr.bf16.mxu0 0
          %2497 = vmatpush1.bf16.msra.mxu0 %v1983
          %2498 = vmatprep.subr.bf16.mxu0 0
          %2499 = vmatpush1.bf16.msra.mxu0 %v1980
          %2500 = vmatprep.subr.bf16.mxu0 0
          %2501 = vmatpush1.bf16.msra.mxu0 %v1977
          %2502 = vmatprep.subr.bf16.mxu0 0
          %2503 = vmatpush1.bf16.msra.mxu0 %v1974
          %2504 = vmatprep.subr.bf16.mxu0 0
          %2505 = vmatpush1.bf16.msra.mxu0 %v1971
          %2506 = vmatprep.subr.bf16.mxu0 0
          %2507 = vmatpush2.bf16.msra.mxu0 0
          %2508 = vmatprep.subr.bf16.mxu0 0
          %2509 = vmatpush2.bf16.msra.mxu0 0
          %2510 = vmatprep.subr.bf16.mxu0 0
          %2511 = vmatpush2.bf16.msra.mxu0 0
          %2512 = vmatprep.subr.bf16.mxu0 0
          %2513 = vmatpush2.bf16.msra.mxu0 0
          %2514 = vmatprep.subr.bf16.mxu0 0
          %2515 = vmatpush2.bf16.msra.mxu0 0
          %2516 = vmatprep.subr.bf16.mxu0 0
          %2517 = vmatpush2.bf16.msra.mxu0 0
          %2518 = vmatprep.subr.bf16.mxu0 0
          %2519 = vmatpush2.bf16.msra.mxu0 0
          %2520 = vmatprep.subr.bf16.mxu0 0
          %2521 = vmatpush2.bf16.msra.mxu0 0
          %2522 = vmatprep.mubr.bf16.mxu0 0
          %2523 = vmatmul.mubr.bf16.gmra.mxu0 %v2413
          %v2524 = vpop.f32.mrf.mxu0
          %v2525 = vadd.f32 0.0, %v2524
          %v2526 = vpop.f32.mrf.mxu0
          %v2527 = vpop.f32.mrf.mxu0
          %v2528 = vadd.f32 0.0, %v2527
          %v2529 = vpop.f32.mrf.mxu0
          %2530 = vmatprep.mubr.bf16.mxu0 0
          %2531 = vmatmul.mubr.bf16.gmra.mxu0 %v2414
          %v2532 = vpop.f32.mrf.mxu0
          %v2533 = vadd.f32 0.0, %v2532
          %v2534 = vpop.f32.mrf.mxu0
          %v2535 = vpop.f32.mrf.mxu0
          %v2536 = vadd.f32 0.0, %v2535
          %v2537 = vpop.f32.mrf.mxu0
          %2538 = vmatprep.mubr.bf16.mxu0 0
          %2539 = vmatmul.mubr.bf16.gmra.mxu0 %v2415
          %v2540 = vpop.f32.mrf.mxu0
          %v2541 = vadd.f32 0.0, %v2540
          %v2542 = vpop.f32.mrf.mxu0
          %v2543 = vpop.f32.mrf.mxu0
          %v2544 = vadd.f32 0.0, %v2543
          %v2545 = vpop.f32.mrf.mxu0
          %2546 = vmatprep.mubr.bf16.mxu0 0
          %2547 = vmatmul.mubr.bf16.gmra.mxu0 %v2416
          %v2548 = vpop.f32.mrf.mxu0
          %v2549 = vadd.f32 0.0, %v2548
          %v2550 = vpop.f32.mrf.mxu0
          %v2551 = vpop.f32.mrf.mxu0
          %v2552 = vadd.f32 0.0, %v2551
          %v2553 = vpop.f32.mrf.mxu0
          %2554 = vdwg.mxu0
          %v2555 = vadd.f32 %v2525, %v1851
          %v2556 = vadd.f32 %v2528, %v1851
          %v2557 = vadd.f32 %v2533, %v1851
          %v2558 = vadd.f32 %v2536, %v1851
          %v2559 = vadd.f32 %v2541, %v1851
          %v2560 = vadd.f32 %v2544, %v1851
          %v2561 = vadd.f32 %v2549, %v1851
          %v2562 = vadd.f32 %v2552, %v1851
          %v2563 = vadd.f32 %v2389, %v2452
          %v2564 = vadd.f32 %v2392, %v2456
          %v2565 = vadd.f32 %v2395, %v2462
          %v2566 = vadd.f32 %v2398, %v2466
          %v2567 = vadd.f32 %v2401, %v2472
          %v2568 = vadd.f32 %v2404, %v2476
          %v2569 = vadd.f32 %v2407, %v2482
          %v2570 = vadd.f32 %v2410, %v2486
          %v2571 = vxor.u32 %v2563, 2147483648
          %v2572 = vxor.u32 %v2564, 2147483648
          %v2573 = vxor.u32 %v2565, 2147483648
          %v2574 = vxor.u32 %v2566, 2147483648
          %v2575 = vxor.u32 %v2567, 2147483648
          %v2576 = vxor.u32 %v2568, 2147483648
          %v2577 = vxor.u32 %v2569, 2147483648
          %v2578 = vxor.u32 %v2570, 2147483648
          %v2579 = vmul.f32 %v2571, 1.442695
          %v2580 = vpow.pop %v2579
          %v2581 = vmul.f32 %v2572, 1.442695
          %v2582 = vpow.pop %v2581
          %v2583 = vmul.f32 %v2573, 1.442695
          %v2584 = vpow.pop %v2583
          %v2585 = vmul.f32 %v2574, 1.442695
          %v2586 = vpow.pop %v2585
          %v2587 = vmul.f32 %v2575, 1.442695
          %v2588 = vpow.pop %v2587
          %v2589 = vmul.f32 %v2576, 1.442695
          %v2590 = vpow.pop %v2589
          %v2591 = vmul.f32 %v2577, 1.442695
          %v2592 = vpow.pop %v2591
          %v2593 = vmul.f32 %v2578, 1.442695
          %v2594 = vpow.pop %v2593
          %v2595 = vadd.f32 %v2580, 1.0
          %v2596 = vadd.f32 %v2582, 1.0
          %v2597 = vadd.f32 %v2584, 1.0
          %v2598 = vadd.f32 %v2586, 1.0
          %v2599 = vadd.f32 %v2588, 1.0
          %v2600 = vadd.f32 %v2590, 1.0
          %v2601 = vadd.f32 %v2592, 1.0
          %v2602 = vadd.f32 %v2594, 1.0
          %v2603 = vrcp.pop %v2595
          %v2604 = vmul.f32 1.0, %v2603
          %v2605 = vrcp.pop %v2596
          %v2606 = vmul.f32 1.0, %v2605
          %v2607 = vrcp.pop %v2597
          %v2608 = vmul.f32 1.0, %v2607
          %v2609 = vrcp.pop %v2598
          %v2610 = vmul.f32 1.0, %v2609
          %v2611 = vrcp.pop %v2599
          %v2612 = vmul.f32 1.0, %v2611
          %v2613 = vrcp.pop %v2600
          %v2614 = vmul.f32 1.0, %v2613
          %v2615 = vrcp.pop %v2601
          %v2616 = vmul.f32 1.0, %v2615
          %v2617 = vrcp.pop %v2602
          %v2618 = vmul.f32 1.0, %v2617
          %v2619 = vadd.f32 %v2390, %v2454
          %v2620 = vadd.f32 %v2393, %v2458
          %v2621 = vadd.f32 %v2396, %v2464
          %v2622 = vadd.f32 %v2399, %v2468
          %v2623 = vadd.f32 %v2402, %v2474
          %v2624 = vadd.f32 %v2405, %v2478
          %v2625 = vadd.f32 %v2408, %v2484
          %v2626 = vadd.f32 %v2411, %v2488
          %v2627 = vxor.u32 %v2619, 2147483648
          %v2628 = vxor.u32 %v2620, 2147483648
          %v2629 = vxor.u32 %v2621, 2147483648
          %v2630 = vxor.u32 %v2622, 2147483648
          %v2631 = vxor.u32 %v2623, 2147483648
          %v2632 = vxor.u32 %v2624, 2147483648
          %v2633 = vxor.u32 %v2625, 2147483648
          %v2634 = vxor.u32 %v2626, 2147483648
          %v2635 = vmul.f32 %v2627, 1.442695
          %v2636 = vpow.pop %v2635
          %v2637 = vmul.f32 %v2628, 1.442695
          %v2638 = vpow.pop %v2637
          %v2639 = vmul.f32 %v2629, 1.442695
          %v2640 = vpow.pop %v2639
          %v2641 = vmul.f32 %v2630, 1.442695
          %v2642 = vpow.pop %v2641
          %v2643 = vmul.f32 %v2631, 1.442695
          %v2644 = vpow.pop %v2643
          %v2645 = vmul.f32 %v2632, 1.442695
          %v2646 = vpow.pop %v2645
          %v2647 = vmul.f32 %v2633, 1.442695
          %v2648 = vpow.pop %v2647
          %v2649 = vmul.f32 %v2634, 1.442695
          %v2650 = vpow.pop %v2649
          %v2651 = vadd.f32 %v2636, 1.0
          %v2652 = vadd.f32 %v2638, 1.0
          %v2653 = vadd.f32 %v2640, 1.0
          %v2654 = vadd.f32 %v2642, 1.0
          %v2655 = vadd.f32 %v2644, 1.0
          %v2656 = vadd.f32 %v2646, 1.0
          %v2657 = vadd.f32 %v2648, 1.0
          %v2658 = vadd.f32 %v2650, 1.0
          %v2659 = vrcp.pop %v2651
          %v2660 = vmul.f32 1.0, %v2659
          %v2661 = vrcp.pop %v2652
          %v2662 = vmul.f32 1.0, %v2661
          %v2663 = vrcp.pop %v2653
          %v2664 = vmul.f32 1.0, %v2663
          %v2665 = vrcp.pop %v2654
          %v2666 = vmul.f32 1.0, %v2665
          %v2667 = vrcp.pop %v2655
          %v2668 = vmul.f32 1.0, %v2667
          %v2669 = vrcp.pop %v2656
          %v2670 = vmul.f32 1.0, %v2669
          %v2671 = vrcp.pop %v2657
          %v2672 = vmul.f32 1.0, %v2671
          %v2673 = vrcp.pop %v2658
          %v2674 = vmul.f32 1.0, %v2673
          %v2675 = vmul.f32 %v2604, %v2555
          %v2676 = vmul.f32 %v2606, %v2556
          %v2677 = vmul.f32 %v2608, %v2557
          %v2678 = vmul.f32 %v2610, %v2558
          %v2679 = vmul.f32 %v2612, %v2559
          %v2680 = vmul.f32 %v2614, %v2560
          %v2681 = vmul.f32 %v2616, %v2561
          %v2682 = vmul.f32 %v2618, %v2562
          %v2683 = vadd.f32 %v2391, %v2675
          %v2684 = vadd.f32 %v2394, %v2676
          %v2685 = vadd.f32 %v2397, %v2677
          %v2686 = vadd.f32 %v2400, %v2678
          %v2687 = vadd.f32 %v2403, %v2679
          %v2688 = vadd.f32 %v2406, %v2680
          %v2689 = vadd.f32 %v2409, %v2681
          %v2690 = vadd.f32 %v2412, %v2682
          %v2691 = vtanh.pop %v2683
          %v2692 = vtanh.pop %v2684
          %v2693 = vtanh.pop %v2685
          %v2694 = vtanh.pop %v2686
          %v2695 = vtanh.pop %v2687
          %v2696 = vtanh.pop %v2688
          %v2697 = vtanh.pop %v2689
          %v2698 = vtanh.pop %v2690
          %v2699 = vsub.f32 1.0, %v2660
          %v2700 = vsub.f32 1.0, %v2662
          %v2701 = vsub.f32 1.0, %v2664
          %v2702 = vsub.f32 1.0, %v2666
          %v2703 = vsub.f32 1.0, %v2668
          %v2704 = vsub.f32 1.0, %v2670
          %v2705 = vsub.f32 1.0, %v2672
          %v2706 = vsub.f32 1.0, %v2674
          %v2707 = vmul.f32 %v2699, %v2691
          %v2708 = vmul.f32 %v2700, %v2692
          %v2709 = vmul.f32 %v2701, %v2693
          %v2710 = vmul.f32 %v2702, %v2694
          %v2711 = vmul.f32 %v2703, %v2695
          %v2712 = vmul.f32 %v2704, %v2696
          %v2713 = vmul.f32 %v2705, %v2697
          %v2714 = vmul.f32 %v2706, %v2698
          %v2715 = vmul.f32 %v2660, %v2380
          %v2716 = vmul.f32 %v2662, %v2381
          %v2717 = vmul.f32 %v2664, %v2382
          %v2718 = vmul.f32 %v2666, %v2383
          %v2719 = vmul.f32 %v2668, %v2384
          %v2720 = vmul.f32 %v2670, %v2385
          %v2721 = vmul.f32 %v2672, %v2386
          %v2722 = vmul.f32 %v2674, %v2387
          %v2723 = vadd.f32 %v2707, %v2715
          %v2724 = vadd.f32 %v2708, %v2716
          %v2725 = vadd.f32 %v2709, %v2717
          %v2726 = vadd.f32 %v2710, %v2718
          %v2727 = vadd.f32 %v2711, %v2719
          %v2728 = vadd.f32 %v2712, %v2720
          %v2729 = vadd.f32 %v2713, %v2721
          %v2730 = vadd.f32 %v2714, %v2722
          %s2731 = sadd.s32 %s608, 1
          %v2732 = vstv %s2731
          %vm2733 = vcmp.gt.s32.totalorder %v1806, %v2732
          %vm2734 = vcmp.gt.s32.totalorder %v1807, %v2732
          %vm2735 = vcmp.gt.s32.totalorder %v1808, %v2732
          %vm2736 = vcmp.gt.s32.totalorder %v1809, %v2732
          %vm2737 = vcmp.gt.s32.totalorder %v1810, %v2732
          %vm2738 = vcmp.gt.s32.totalorder %v1811, %v2732
          %vm2739 = vcmp.gt.s32.totalorder %v1812, %v2732
          %vm2740 = vcmp.gt.s32.totalorder %v1813, %v2732
          %v2741 = vsel %vm2733, 1, 0
          %v2742 = vsel %vm2734, 1, 0
          %v2743 = vsel %vm2735, 1, 0
          %v2744 = vsel %vm2736, 1, 0
          %v2745 = vsel %vm2737, 1, 0
          %v2746 = vsel %vm2738, 1, 0
          %v2747 = vsel %vm2739, 1, 0
          %v2748 = vsel %vm2740, 1, 0
          %2749 = vset.pattern.permute.xlu0 0
          %2750 = vperm.xlu0 %2749, %v2741
          %v2751 = vpop.permute.xlu0 %2750
          %2752 = vset.pattern.permute.xlu0 0
          %2753 = vperm.xlu0 %2752, %v2742
          %v2754 = vpop.permute.xlu0 %2753
          %2755 = vset.pattern.permute.xlu0 0
          %2756 = vperm.xlu0 %2755, %v2743
          %v2757 = vpop.permute.xlu0 %2756
          %2758 = vset.pattern.permute.xlu0 0
          %2759 = vperm.xlu0 %2758, %v2744
          %v2760 = vpop.permute.xlu0 %2759
          %2761 = vset.pattern.permute.xlu0 0
          %2762 = vperm.xlu0 %2761, %v2745
          %v2763 = vpop.permute.xlu0 %2762
          %2764 = vset.pattern.permute.xlu0 0
          %2765 = vperm.xlu0 %2764, %v2746
          %v2766 = vpop.permute.xlu0 %2765
          %2767 = vset.pattern.permute.xlu0 0
          %2768 = vperm.xlu0 %2767, %v2747
          %v2769 = vpop.permute.xlu0 %2768
          %2770 = vset.pattern.permute.xlu0 0
          %2771 = vperm.xlu0 %2770, %v2748
          %v2772 = vpop.permute.xlu0 %2771
          %vm2773 = vcmp.eq.s32.totalorder %v2751, 1
          %vm2774 = vcmp.eq.s32.totalorder %v2754, 1
          %vm2775 = vcmp.eq.s32.totalorder %v2757, 1
          %vm2776 = vcmp.eq.s32.totalorder %v2760, 1
          %vm2777 = vcmp.eq.s32.totalorder %v2763, 1
          %vm2778 = vcmp.eq.s32.totalorder %v2766, 1
          %vm2779 = vcmp.eq.s32.totalorder %v2769, 1
          %vm2780 = vcmp.eq.s32.totalorder %v2772, 1
          %v2781 = vsel %vm2773, %v2723, %v2380
          %v2782 = vsel %vm2774, %v2724, %v2381
          %v2783 = vsel %vm2775, %v2725, %v2382
          %v2784 = vsel %vm2776, %v2726, %v2383
          %v2785 = vsel %vm2777, %v2727, %v2384
          %v2786 = vsel %vm2778, %v2728, %v2385
          %v2787 = vsel %vm2779, %v2729, %v2386
          %v2788 = vsel %vm2780, %v2730, %v2387
          %s2789 = scalar_lea.vmem [#allocation2], 384
          %v2790 = vld [vmem:[%s2789] sm:$0xff]
          %v2791 = vld [vmem:[%s2789 + $0x8] sm:$0xff]
          %v2792 = vld [vmem:[%s2789 + $0x10] sm:$0xff]
          %v2793 = vld [vmem:[%s2789 + $0x18] sm:$0xff]
          %v2794 = vld [vmem:[%s2789 + $0x20] sm:$0xff]
          %v2795 = vld [vmem:[%s2789 + $0x28] sm:$0xff]
          %v2796 = vld [vmem:[%s2789 + $0x30] sm:$0xff]
          %v2797 = vld [vmem:[%s2789 + $0x38] sm:$0xff]
          %v2798 = vld [vmem:[%s2789 + $0x40] sm:$0xff]
          %v2799 = vld [vmem:[%s2789 + $0x48] sm:$0xff]
          %v2800 = vld [vmem:[%s2789 + $0x50] sm:$0xff]
          %v2801 = vld [vmem:[%s2789 + $0x58] sm:$0xff]
          %v2802 = vld [vmem:[%s2789 + $0x60] sm:$0xff]
          %v2803 = vld [vmem:[%s2789 + $0x68] sm:$0xff]
          %v2804 = vld [vmem:[%s2789 + $0x70] sm:$0xff]
          %v2805 = vld [vmem:[%s2789 + $0x78] sm:$0xff]
          %v2806 = vld [vmem:[%s2789 + $0x80] sm:$0xff]
          %v2807 = vld [vmem:[%s2789 + $0x88] sm:$0xff]
          %v2808 = vld [vmem:[%s2789 + $0x90] sm:$0xff]
          %v2809 = vld [vmem:[%s2789 + $0x98] sm:$0xff]
          %v2810 = vld [vmem:[%s2789 + $0xa0] sm:$0xff]
          %v2811 = vld [vmem:[%s2789 + $0xa8] sm:$0xff]
          %v2812 = vld [vmem:[%s2789 + $0xb0] sm:$0xff]
          %v2813 = vld [vmem:[%s2789 + $0xb8] sm:$0xff]
          %v2814 = vpack.c.bf16 %v2782, %v2781
          %v2815 = vpack.c.bf16 %v2784, %v2783
          %v2816 = vpack.c.bf16 %v2786, %v2785
          %v2817 = vpack.c.bf16 %v2788, %v2787
          %2818 = vmatprep.subr.bf16.mxu0 %v1991
          %2819 = vmatpush1.bf16.msra.mxu0 %v1990
          %2820 = vmatprep.subr.bf16.mxu0 %v1988
          %2821 = vmatpush1.bf16.msra.mxu0 %v1987
          %2822 = vmatprep.subr.bf16.mxu0 %v1985
          %2823 = vmatpush1.bf16.msra.mxu0 %v1984
          %2824 = vmatprep.subr.bf16.mxu0 %v1982
          %2825 = vmatpush1.bf16.msra.mxu0 %v1981
          %2826 = vmatprep.subr.bf16.mxu0 %v1979
          %2827 = vmatpush1.bf16.msra.mxu0 %v1978
          %2828 = vmatprep.subr.bf16.mxu0 %v1976
          %2829 = vmatpush1.bf16.msra.mxu0 %v1975
          %2830 = vmatprep.subr.bf16.mxu0 %v1973
          %2831 = vmatpush1.bf16.msra.mxu0 %v1972
          %2832 = vmatprep.subr.bf16.mxu0 %v1970
          %2833 = vmatpush1.bf16.msra.mxu0 %v1969
          %2834 = vmatprep.subr.bf16.mxu0 0
          %2835 = vmatpush2.bf16.msra.mxu0 0
          %2836 = vmatprep.subr.bf16.mxu0 0
          %2837 = vmatpush2.bf16.msra.mxu0 0
          %2838 = vmatprep.subr.bf16.mxu0 0
          %2839 = vmatpush2.bf16.msra.mxu0 0
          %2840 = vmatprep.subr.bf16.mxu0 0
          %2841 = vmatpush2.bf16.msra.mxu0 0
          %2842 = vmatprep.subr.bf16.mxu0 0
          %2843 = vmatpush2.bf16.msra.mxu0 0
          %2844 = vmatprep.subr.bf16.mxu0 0
          %2845 = vmatpush2.bf16.msra.mxu0 0
          %2846 = vmatprep.subr.bf16.mxu0 0
          %2847 = vmatpush2.bf16.msra.mxu0 0
          %2848 = vmatprep.subr.bf16.mxu0 0
          %2849 = vmatpush2.bf16.msra.mxu0 0
          %2850 = vmatprep.mubr.bf16.mxu0 0
          %2851 = vmatmul.mubr.bf16.gmra.mxu0 %v2814
          %v2852 = vpop.f32.mrf.mxu0
          %v2853 = vadd.f32 0.0, %v2852
          %v2854 = vpop.f32.mrf.mxu0
          %v2855 = vadd.f32 0.0, %v2854
          %v2856 = vpop.f32.mrf.mxu0
          %v2857 = vadd.f32 0.0, %v2856
          %v2858 = vpop.f32.mrf.mxu0
          %v2859 = vadd.f32 0.0, %v2858
          %2860 = vmatprep.mubr.bf16.mxu0 0
          %2861 = vmatmul.mubr.bf16.gmra.mxu0 %v2815
          %v2862 = vpop.f32.mrf.mxu0
          %v2863 = vadd.f32 0.0, %v2862
          %v2864 = vpop.f32.mrf.mxu0
          %v2865 = vadd.f32 0.0, %v2864
          %v2866 = vpop.f32.mrf.mxu0
          %v2867 = vadd.f32 0.0, %v2866
          %v2868 = vpop.f32.mrf.mxu0
          %v2869 = vadd.f32 0.0, %v2868
          %2870 = vmatprep.mubr.bf16.mxu0 0
          %2871 = vmatmul.mubr.bf16.gmra.mxu0 %v2816
          %v2872 = vpop.f32.mrf.mxu0
          %v2873 = vadd.f32 0.0, %v2872
          %v2874 = vpop.f32.mrf.mxu0
          %v2875 = vadd.f32 0.0, %v2874
          %v2876 = vpop.f32.mrf.mxu0
          %v2877 = vadd.f32 0.0, %v2876
          %v2878 = vpop.f32.mrf.mxu0
          %v2879 = vadd.f32 0.0, %v2878
          %2880 = vmatprep.mubr.bf16.mxu0 0
          %2881 = vmatmul.mubr.bf16.gmra.mxu0 %v2817
          %v2882 = vpop.f32.mrf.mxu0
          %v2883 = vadd.f32 0.0, %v2882
          %v2884 = vpop.f32.mrf.mxu0
          %v2885 = vadd.f32 0.0, %v2884
          %v2886 = vpop.f32.mrf.mxu0
          %v2887 = vadd.f32 0.0, %v2886
          %v2888 = vpop.f32.mrf.mxu0
          %v2889 = vadd.f32 0.0, %v2888
          %2890 = vdwg.mxu0
          %2891 = vmatprep.subr.bf16.mxu0 0
          %2892 = vmatpush1.bf16.msra.mxu0 %v1992
          %2893 = vmatprep.subr.bf16.mxu0 0
          %2894 = vmatpush1.bf16.msra.mxu0 %v1989
          %2895 = vmatprep.subr.bf16.mxu0 0
          %2896 = vmatpush1.bf16.msra.mxu0 %v1986
          %2897 = vmatprep.subr.bf16.mxu0 0
          %2898 = vmatpush1.bf16.msra.mxu0 %v1983
          %2899 = vmatprep.subr.bf16.mxu0 0
          %2900 = vmatpush1.bf16.msra.mxu0 %v1980
          %2901 = vmatprep.subr.bf16.mxu0 0
          %2902 = vmatpush1.bf16.msra.mxu0 %v1977
          %2903 = vmatprep.subr.bf16.mxu0 0
          %2904 = vmatpush1.bf16.msra.mxu0 %v1974
          %2905 = vmatprep.subr.bf16.mxu0 0
          %2906 = vmatpush1.bf16.msra.mxu0 %v1971
          %2907 = vmatprep.subr.bf16.mxu0 0
          %2908 = vmatpush2.bf16.msra.mxu0 0
          %2909 = vmatprep.subr.bf16.mxu0 0
          %2910 = vmatpush2.bf16.msra.mxu0 0
          %2911 = vmatprep.subr.bf16.mxu0 0
          %2912 = vmatpush2.bf16.msra.mxu0 0
          %2913 = vmatprep.subr.bf16.mxu0 0
          %2914 = vmatpush2.bf16.msra.mxu0 0
          %2915 = vmatprep.subr.bf16.mxu0 0
          %2916 = vmatpush2.bf16.msra.mxu0 0
          %2917 = vmatprep.subr.bf16.mxu0 0
          %2918 = vmatpush2.bf16.msra.mxu0 0
          %2919 = vmatprep.subr.bf16.mxu0 0
          %2920 = vmatpush2.bf16.msra.mxu0 0
          %2921 = vmatprep.subr.bf16.mxu0 0
          %2922 = vmatpush2.bf16.msra.mxu0 0
          %2923 = vmatprep.mubr.bf16.mxu0 0
          %2924 = vmatmul.mubr.bf16.gmra.mxu0 %v2814
          %v2925 = vpop.f32.mrf.mxu0
          %v2926 = vadd.f32 0.0, %v2925
          %v2927 = vpop.f32.mrf.mxu0
          %v2928 = vpop.f32.mrf.mxu0
          %v2929 = vadd.f32 0.0, %v2928
          %v2930 = vpop.f32.mrf.mxu0
          %2931 = vmatprep.mubr.bf16.mxu0 0
          %2932 = vmatmul.mubr.bf16.gmra.mxu0 %v2815
          %v2933 = vpop.f32.mrf.mxu0
          %v2934 = vadd.f32 0.0, %v2933
          %v2935 = vpop.f32.mrf.mxu0
          %v2936 = vpop.f32.mrf.mxu0
          %v2937 = vadd.f32 0.0, %v2936
          %v2938 = vpop.f32.mrf.mxu0
          %2939 = vmatprep.mubr.bf16.mxu0 0
          %2940 = vmatmul.mubr.bf16.gmra.mxu0 %v2816
          %v2941 = vpop.f32.mrf.mxu0
          %v2942 = vadd.f32 0.0, %v2941
          %v2943 = vpop.f32.mrf.mxu0
          %v2944 = vpop.f32.mrf.mxu0
          %v2945 = vadd.f32 0.0, %v2944
          %v2946 = vpop.f32.mrf.mxu0
          %2947 = vmatprep.mubr.bf16.mxu0 0
          %2948 = vmatmul.mubr.bf16.gmra.mxu0 %v2817
          %v2949 = vpop.f32.mrf.mxu0
          %v2950 = vadd.f32 0.0, %v2949
          %v2951 = vpop.f32.mrf.mxu0
          %v2952 = vpop.f32.mrf.mxu0
          %v2953 = vadd.f32 0.0, %v2952
          %v2954 = vpop.f32.mrf.mxu0
          %2955 = vdwg.mxu0
          %v2956 = vadd.f32 %v2926, %v1851
          %v2957 = vadd.f32 %v2929, %v1851
          %v2958 = vadd.f32 %v2934, %v1851
          %v2959 = vadd.f32 %v2937, %v1851
          %v2960 = vadd.f32 %v2942, %v1851
          %v2961 = vadd.f32 %v2945, %v1851
          %v2962 = vadd.f32 %v2950, %v1851
          %v2963 = vadd.f32 %v2953, %v1851
          %v2964 = vadd.f32 %v2790, %v2853
          %v2965 = vadd.f32 %v2793, %v2857
          %v2966 = vadd.f32 %v2796, %v2863
          %v2967 = vadd.f32 %v2799, %v2867
          %v2968 = vadd.f32 %v2802, %v2873
          %v2969 = vadd.f32 %v2805, %v2877
          %v2970 = vadd.f32 %v2808, %v2883
          %v2971 = vadd.f32 %v2811, %v2887
          %v2972 = vxor.u32 %v2964, 2147483648
          %v2973 = vxor.u32 %v2965, 2147483648
          %v2974 = vxor.u32 %v2966, 2147483648
          %v2975 = vxor.u32 %v2967, 2147483648
          %v2976 = vxor.u32 %v2968, 2147483648
          %v2977 = vxor.u32 %v2969, 2147483648
          %v2978 = vxor.u32 %v2970, 2147483648
          %v2979 = vxor.u32 %v2971, 2147483648
          %v2980 = vmul.f32 %v2972, 1.442695
          %v2981 = vpow.pop %v2980
          %v2982 = vmul.f32 %v2973, 1.442695
          %v2983 = vpow.pop %v2982
          %v2984 = vmul.f32 %v2974, 1.442695
          %v2985 = vpow.pop %v2984
          %v2986 = vmul.f32 %v2975, 1.442695
          %v2987 = vpow.pop %v2986
          %v2988 = vmul.f32 %v2976, 1.442695
          %v2989 = vpow.pop %v2988
          %v2990 = vmul.f32 %v2977, 1.442695
          %v2991 = vpow.pop %v2990
          %v2992 = vmul.f32 %v2978, 1.442695
          %v2993 = vpow.pop %v2992
          %v2994 = vmul.f32 %v2979, 1.442695
          %v2995 = vpow.pop %v2994
          %v2996 = vadd.f32 %v2981, 1.0
          %v2997 = vadd.f32 %v2983, 1.0
          %v2998 = vadd.f32 %v2985, 1.0
          %v2999 = vadd.f32 %v2987, 1.0
          %v3000 = vadd.f32 %v2989, 1.0
          %v3001 = vadd.f32 %v2991, 1.0
          %v3002 = vadd.f32 %v2993, 1.0
          %v3003 = vadd.f32 %v2995, 1.0
          %v3004 = vrcp.pop %v2996
          %v3005 = vmul.f32 1.0, %v3004
          %v3006 = vrcp.pop %v2997
          %v3007 = vmul.f32 1.0, %v3006
          %v3008 = vrcp.pop %v2998
          %v3009 = vmul.f32 1.0, %v3008
          %v3010 = vrcp.pop %v2999
          %v3011 = vmul.f32 1.0, %v3010
          %v3012 = vrcp.pop %v3000
          %v3013 = vmul.f32 1.0, %v3012
          %v3014 = vrcp.pop %v3001
          %v3015 = vmul.f32 1.0, %v3014
          %v3016 = vrcp.pop %v3002
          %v3017 = vmul.f32 1.0, %v3016
          %v3018 = vrcp.pop %v3003
          %v3019 = vmul.f32 1.0, %v3018
          %v3020 = vadd.f32 %v2791, %v2855
          %v3021 = vadd.f32 %v2794, %v2859
          %v3022 = vadd.f32 %v2797, %v2865
          %v3023 = vadd.f32 %v2800, %v2869
          %v3024 = vadd.f32 %v2803, %v2875
          %v3025 = vadd.f32 %v2806, %v2879
          %v3026 = vadd.f32 %v2809, %v2885
          %v3027 = vadd.f32 %v2812, %v2889
          %v3028 = vxor.u32 %v3020, 2147483648
          %v3029 = vxor.u32 %v3021, 2147483648
          %v3030 = vxor.u32 %v3022, 2147483648
          %v3031 = vxor.u32 %v3023, 2147483648
          %v3032 = vxor.u32 %v3024, 2147483648
          %v3033 = vxor.u32 %v3025, 2147483648
          %v3034 = vxor.u32 %v3026, 2147483648
          %v3035 = vxor.u32 %v3027, 2147483648
          %v3036 = vmul.f32 %v3028, 1.442695
          %v3037 = vpow.pop %v3036
          %v3038 = vmul.f32 %v3029, 1.442695
          %v3039 = vpow.pop %v3038
          %v3040 = vmul.f32 %v3030, 1.442695
          %v3041 = vpow.pop %v3040
          %v3042 = vmul.f32 %v3031, 1.442695
          %v3043 = vpow.pop %v3042
          %v3044 = vmul.f32 %v3032, 1.442695
          %v3045 = vpow.pop %v3044
          %v3046 = vmul.f32 %v3033, 1.442695
          %v3047 = vpow.pop %v3046
          %v3048 = vmul.f32 %v3034, 1.442695
          %v3049 = vpow.pop %v3048
          %v3050 = vmul.f32 %v3035, 1.442695
          %v3051 = vpow.pop %v3050
          %v3052 = vadd.f32 %v3037, 1.0
          %v3053 = vadd.f32 %v3039, 1.0
          %v3054 = vadd.f32 %v3041, 1.0
          %v3055 = vadd.f32 %v3043, 1.0
          %v3056 = vadd.f32 %v3045, 1.0
          %v3057 = vadd.f32 %v3047, 1.0
          %v3058 = vadd.f32 %v3049, 1.0
          %v3059 = vadd.f32 %v3051, 1.0
          %v3060 = vrcp.pop %v3052
          %v3061 = vmul.f32 1.0, %v3060
          %v3062 = vrcp.pop %v3053
          %v3063 = vmul.f32 1.0, %v3062
          %v3064 = vrcp.pop %v3054
          %v3065 = vmul.f32 1.0, %v3064
          %v3066 = vrcp.pop %v3055
          %v3067 = vmul.f32 1.0, %v3066
          %v3068 = vrcp.pop %v3056
          %v3069 = vmul.f32 1.0, %v3068
          %v3070 = vrcp.pop %v3057
          %v3071 = vmul.f32 1.0, %v3070
          %v3072 = vrcp.pop %v3058
          %v3073 = vmul.f32 1.0, %v3072
          %v3074 = vrcp.pop %v3059
          %v3075 = vmul.f32 1.0, %v3074
          %v3076 = vmul.f32 %v3005, %v2956
          %v3077 = vmul.f32 %v3007, %v2957
          %v3078 = vmul.f32 %v3009, %v2958
          %v3079 = vmul.f32 %v3011, %v2959
          %v3080 = vmul.f32 %v3013, %v2960
          %v3081 = vmul.f32 %v3015, %v2961
          %v3082 = vmul.f32 %v3017, %v2962
          %v3083 = vmul.f32 %v3019, %v2963
          %v3084 = vadd.f32 %v2792, %v3076
          %v3085 = vadd.f32 %v2795, %v3077
          %v3086 = vadd.f32 %v2798, %v3078
          %v3087 = vadd.f32 %v2801, %v3079
          %v3088 = vadd.f32 %v2804, %v3080
          %v3089 = vadd.f32 %v2807, %v3081
          %v3090 = vadd.f32 %v2810, %v3082
          %v3091 = vadd.f32 %v2813, %v3083
          %v3092 = vtanh.pop %v3084
          %v3093 = vtanh.pop %v3085
          %v3094 = vtanh.pop %v3086
          %v3095 = vtanh.pop %v3087
          %v3096 = vtanh.pop %v3088
          %v3097 = vtanh.pop %v3089
          %v3098 = vtanh.pop %v3090
          %v3099 = vtanh.pop %v3091
          %v3100 = vsub.f32 1.0, %v3061
          %v3101 = vsub.f32 1.0, %v3063
          %v3102 = vsub.f32 1.0, %v3065
          %v3103 = vsub.f32 1.0, %v3067
          %v3104 = vsub.f32 1.0, %v3069
          %v3105 = vsub.f32 1.0, %v3071
          %v3106 = vsub.f32 1.0, %v3073
          %v3107 = vsub.f32 1.0, %v3075
          %v3108 = vmul.f32 %v3100, %v3092
          %v3109 = vmul.f32 %v3101, %v3093
          %v3110 = vmul.f32 %v3102, %v3094
          %v3111 = vmul.f32 %v3103, %v3095
          %v3112 = vmul.f32 %v3104, %v3096
          %v3113 = vmul.f32 %v3105, %v3097
          %v3114 = vmul.f32 %v3106, %v3098
          %v3115 = vmul.f32 %v3107, %v3099
          %v3116 = vmul.f32 %v3061, %v2781
          %v3117 = vmul.f32 %v3063, %v2782
          %v3118 = vmul.f32 %v3065, %v2783
          %v3119 = vmul.f32 %v3067, %v2784
          %v3120 = vmul.f32 %v3069, %v2785
          %v3121 = vmul.f32 %v3071, %v2786
          %v3122 = vmul.f32 %v3073, %v2787
          %v3123 = vmul.f32 %v3075, %v2788
          %v3124 = vadd.f32 %v3108, %v3116
          %v3125 = vadd.f32 %v3109, %v3117
          %v3126 = vadd.f32 %v3110, %v3118
          %v3127 = vadd.f32 %v3111, %v3119
          %v3128 = vadd.f32 %v3112, %v3120
          %v3129 = vadd.f32 %v3113, %v3121
          %v3130 = vadd.f32 %v3114, %v3122
          %v3131 = vadd.f32 %v3115, %v3123
          %s3132 = sadd.s32 %s608, 2
          %v3133 = vstv %s3132
          %vm3134 = vcmp.gt.s32.totalorder %v1806, %v3133
          %vm3135 = vcmp.gt.s32.totalorder %v1807, %v3133
          %vm3136 = vcmp.gt.s32.totalorder %v1808, %v3133
          %vm3137 = vcmp.gt.s32.totalorder %v1809, %v3133
          %vm3138 = vcmp.gt.s32.totalorder %v1810, %v3133
          %vm3139 = vcmp.gt.s32.totalorder %v1811, %v3133
          %vm3140 = vcmp.gt.s32.totalorder %v1812, %v3133
          %vm3141 = vcmp.gt.s32.totalorder %v1813, %v3133
          %v3142 = vsel %vm3134, 1, 0
          %v3143 = vsel %vm3135, 1, 0
          %v3144 = vsel %vm3136, 1, 0
          %v3145 = vsel %vm3137, 1, 0
          %v3146 = vsel %vm3138, 1, 0
          %v3147 = vsel %vm3139, 1, 0
          %v3148 = vsel %vm3140, 1, 0
          %v3149 = vsel %vm3141, 1, 0
          %3150 = vset.pattern.permute.xlu0 0
          %3151 = vperm.xlu0 %3150, %v3142
          %v3152 = vpop.permute.xlu0 %3151
          %3153 = vset.pattern.permute.xlu0 0
          %3154 = vperm.xlu0 %3153, %v3143
          %v3155 = vpop.permute.xlu0 %3154
          %3156 = vset.pattern.permute.xlu0 0
          %3157 = vperm.xlu0 %3156, %v3144
          %v3158 = vpop.permute.xlu0 %3157
          %3159 = vset.pattern.permute.xlu0 0
          %3160 = vperm.xlu0 %3159, %v3145
          %v3161 = vpop.permute.xlu0 %3160
          %3162 = vset.pattern.permute.xlu0 0
          %3163 = vperm.xlu0 %3162, %v3146
          %v3164 = vpop.permute.xlu0 %3163
          %3165 = vset.pattern.permute.xlu0 0
          %3166 = vperm.xlu0 %3165, %v3147
          %v3167 = vpop.permute.xlu0 %3166
          %3168 = vset.pattern.permute.xlu0 0
          %3169 = vperm.xlu0 %3168, %v3148
          %v3170 = vpop.permute.xlu0 %3169
          %3171 = vset.pattern.permute.xlu0 0
          %3172 = vperm.xlu0 %3171, %v3149
          %v3173 = vpop.permute.xlu0 %3172
          %vm3174 = vcmp.eq.s32.totalorder %v3152, 1
          %vm3175 = vcmp.eq.s32.totalorder %v3155, 1
          %vm3176 = vcmp.eq.s32.totalorder %v3158, 1
          %vm3177 = vcmp.eq.s32.totalorder %v3161, 1
          %vm3178 = vcmp.eq.s32.totalorder %v3164, 1
          %vm3179 = vcmp.eq.s32.totalorder %v3167, 1
          %vm3180 = vcmp.eq.s32.totalorder %v3170, 1
          %vm3181 = vcmp.eq.s32.totalorder %v3173, 1
          %v3182 = vsel %vm3174, %v3124, %v2781
          %v3183 = vsel %vm3175, %v3125, %v2782
          %v3184 = vsel %vm3176, %v3126, %v2783
          %v3185 = vsel %vm3177, %v3127, %v2784
          %v3186 = vsel %vm3178, %v3128, %v2785
          %v3187 = vsel %vm3179, %v3129, %v2786
          %v3188 = vsel %vm3180, %v3130, %v2787
          %v3189 = vsel %vm3181, %v3131, %v2788
          %s3190 = scalar_lea.vmem [#allocation2], 576
          %v3191 = vld [vmem:[%s3190] sm:$0xff]
          %v3192 = vld [vmem:[%s3190 + $0x8] sm:$0xff]
          %v3193 = vld [vmem:[%s3190 + $0x10] sm:$0xff]
          %v3194 = vld [vmem:[%s3190 + $0x18] sm:$0xff]
          %v3195 = vld [vmem:[%s3190 + $0x20] sm:$0xff]
          %v3196 = vld [vmem:[%s3190 + $0x28] sm:$0xff]
          %v3197 = vld [vmem:[%s3190 + $0x30] sm:$0xff]
          %v3198 = vld [vmem:[%s3190 + $0x38] sm:$0xff]
          %v3199 = vld [vmem:[%s3190 + $0x40] sm:$0xff]
          %v3200 = vld [vmem:[%s3190 + $0x48] sm:$0xff]
          %v3201 = vld [vmem:[%s3190 + $0x50] sm:$0xff]
          %v3202 = vld [vmem:[%s3190 + $0x58] sm:$0xff]
          %v3203 = vld [vmem:[%s3190 + $0x60] sm:$0xff]
          %v3204 = vld [vmem:[%s3190 + $0x68] sm:$0xff]
          %v3205 = vld [vmem:[%s3190 + $0x70] sm:$0xff]
          %v3206 = vld [vmem:[%s3190 + $0x78] sm:$0xff]
          %v3207 = vld [vmem:[%s3190 + $0x80] sm:$0xff]
          %v3208 = vld [vmem:[%s3190 + $0x88] sm:$0xff]
          %v3209 = vld [vmem:[%s3190 + $0x90] sm:$0xff]
          %v3210 = vld [vmem:[%s3190 + $0x98] sm:$0xff]
          %v3211 = vld [vmem:[%s3190 + $0xa0] sm:$0xff]
          %v3212 = vld [vmem:[%s3190 + $0xa8] sm:$0xff]
          %v3213 = vld [vmem:[%s3190 + $0xb0] sm:$0xff]
          %v3214 = vld [vmem:[%s3190 + $0xb8] sm:$0xff]
          %v3215 = vpack.c.bf16 %v3183, %v3182
          %v3216 = vpack.c.bf16 %v3185, %v3184
          %v3217 = vpack.c.bf16 %v3187, %v3186
          %v3218 = vpack.c.bf16 %v3189, %v3188
          %3219 = vmatprep.subr.bf16.mxu0 %v1991
          %3220 = vmatpush1.bf16.msra.mxu0 %v1990
          %3221 = vmatprep.subr.bf16.mxu0 %v1988
          %3222 = vmatpush1.bf16.msra.mxu0 %v1987
          %3223 = vmatprep.subr.bf16.mxu0 %v1985
          %3224 = vmatpush1.bf16.msra.mxu0 %v1984
          %3225 = vmatprep.subr.bf16.mxu0 %v1982
          %3226 = vmatpush1.bf16.msra.mxu0 %v1981
          %3227 = vmatprep.subr.bf16.mxu0 %v1979
          %3228 = vmatpush1.bf16.msra.mxu0 %v1978
          %3229 = vmatprep.subr.bf16.mxu0 %v1976
          %3230 = vmatpush1.bf16.msra.mxu0 %v1975
          %3231 = vmatprep.subr.bf16.mxu0 %v1973
          %3232 = vmatpush1.bf16.msra.mxu0 %v1972
          %3233 = vmatprep.subr.bf16.mxu0 %v1970
          %3234 = vmatpush1.bf16.msra.mxu0 %v1969
          %3235 = vmatprep.subr.bf16.mxu0 0
          %3236 = vmatpush2.bf16.msra.mxu0 0
          %3237 = vmatprep.subr.bf16.mxu0 0
          %3238 = vmatpush2.bf16.msra.mxu0 0
          %3239 = vmatprep.subr.bf16.mxu0 0
          %3240 = vmatpush2.bf16.msra.mxu0 0
          %3241 = vmatprep.subr.bf16.mxu0 0
          %3242 = vmatpush2.bf16.msra.mxu0 0
          %3243 = vmatprep.subr.bf16.mxu0 0
          %3244 = vmatpush2.bf16.msra.mxu0 0
          %3245 = vmatprep.subr.bf16.mxu0 0
          %3246 = vmatpush2.bf16.msra.mxu0 0
          %3247 = vmatprep.subr.bf16.mxu0 0
          %3248 = vmatpush2.bf16.msra.mxu0 0
          %3249 = vmatprep.subr.bf16.mxu0 0
          %3250 = vmatpush2.bf16.msra.mxu0 0
          %3251 = vmatprep.mubr.bf16.mxu0 0
          %3252 = vmatmul.mubr.bf16.gmra.mxu0 %v3215
          %v3253 = vpop.f32.mrf.mxu0
          %v3254 = vadd.f32 0.0, %v3253
          %v3255 = vpop.f32.mrf.mxu0
          %v3256 = vadd.f32 0.0, %v3255
          %v3257 = vpop.f32.mrf.mxu0
          %v3258 = vadd.f32 0.0, %v3257
          %v3259 = vpop.f32.mrf.mxu0
          %v3260 = vadd.f32 0.0, %v3259
          %3261 = vmatprep.mubr.bf16.mxu0 0
          %3262 = vmatmul.mubr.bf16.gmra.mxu0 %v3216
          %v3263 = vpop.f32.mrf.mxu0
          %v3264 = vadd.f32 0.0, %v3263
          %v3265 = vpop.f32.mrf.mxu0
          %v3266 = vadd.f32 0.0, %v3265
          %v3267 = vpop.f32.mrf.mxu0
          %v3268 = vadd.f32 0.0, %v3267
          %v3269 = vpop.f32.mrf.mxu0
          %v3270 = vadd.f32 0.0, %v3269
          %3271 = vmatprep.mubr.bf16.mxu0 0
          %3272 = vmatmul.mubr.bf16.gmra.mxu0 %v3217
          %v3273 = vpop.f32.mrf.mxu0
          %v3274 = vadd.f32 0.0, %v3273
          %v3275 = vpop.f32.mrf.mxu0
          %v3276 = vadd.f32 0.0, %v3275
          %v3277 = vpop.f32.mrf.mxu0
          %v3278 = vadd.f32 0.0, %v3277
          %v3279 = vpop.f32.mrf.mxu0
          %v3280 = vadd.f32 0.0, %v3279
          %3281 = vmatprep.mubr.bf16.mxu0 0
          %3282 = vmatmul.mubr.bf16.gmra.mxu0 %v3218
          %v3283 = vpop.f32.mrf.mxu0
          %v3284 = vadd.f32 0.0, %v3283
          %v3285 = vpop.f32.mrf.mxu0
          %v3286 = vadd.f32 0.0, %v3285
          %v3287 = vpop.f32.mrf.mxu0
          %v3288 = vadd.f32 0.0, %v3287
          %v3289 = vpop.f32.mrf.mxu0
          %v3290 = vadd.f32 0.0, %v3289
          %3291 = vdwg.mxu0
          %3292 = vmatprep.subr.bf16.mxu0 0
          %3293 = vmatpush1.bf16.msra.mxu0 %v1992
          %3294 = vmatprep.subr.bf16.mxu0 0
          %3295 = vmatpush1.bf16.msra.mxu0 %v1989
          %3296 = vmatprep.subr.bf16.mxu0 0
          %3297 = vmatpush1.bf16.msra.mxu0 %v1986
          %3298 = vmatprep.subr.bf16.mxu0 0
          %3299 = vmatpush1.bf16.msra.mxu0 %v1983
          %3300 = vmatprep.subr.bf16.mxu0 0
          %3301 = vmatpush1.bf16.msra.mxu0 %v1980
          %3302 = vmatprep.subr.bf16.mxu0 0
          %3303 = vmatpush1.bf16.msra.mxu0 %v1977
          %3304 = vmatprep.subr.bf16.mxu0 0
          %3305 = vmatpush1.bf16.msra.mxu0 %v1974
          %3306 = vmatprep.subr.bf16.mxu0 0
          %3307 = vmatpush1.bf16.msra.mxu0 %v1971
          %3308 = vmatprep.subr.bf16.mxu0 0
          %3309 = vmatpush2.bf16.msra.mxu0 0
          %3310 = vmatprep.subr.bf16.mxu0 0
          %3311 = vmatpush2.bf16.msra.mxu0 0
          %3312 = vmatprep.subr.bf16.mxu0 0
          %3313 = vmatpush2.bf16.msra.mxu0 0
          %3314 = vmatprep.subr.bf16.mxu0 0
          %3315 = vmatpush2.bf16.msra.mxu0 0
          %3316 = vmatprep.subr.bf16.mxu0 0
          %3317 = vmatpush2.bf16.msra.mxu0 0
          %3318 = vmatprep.subr.bf16.mxu0 0
          %3319 = vmatpush2.bf16.msra.mxu0 0
          %3320 = vmatprep.subr.bf16.mxu0 0
          %3321 = vmatpush2.bf16.msra.mxu0 0
          %3322 = vmatprep.subr.bf16.mxu0 0
          %3323 = vmatpush2.bf16.msra.mxu0 0
          %3324 = vmatprep.mubr.bf16.mxu0 0
          %3325 = vmatmul.mubr.bf16.gmra.mxu0 %v3215
          %v3326 = vpop.f32.mrf.mxu0
          %v3327 = vadd.f32 0.0, %v3326
          %v3328 = vpop.f32.mrf.mxu0
          %v3329 = vpop.f32.mrf.mxu0
          %v3330 = vadd.f32 0.0, %v3329
          %v3331 = vpop.f32.mrf.mxu0
          %3332 = vmatprep.mubr.bf16.mxu0 0
          %3333 = vmatmul.mubr.bf16.gmra.mxu0 %v3216
          %v3334 = vpop.f32.mrf.mxu0
          %v3335 = vadd.f32 0.0, %v3334
          %v3336 = vpop.f32.mrf.mxu0
          %v3337 = vpop.f32.mrf.mxu0
          %v3338 = vadd.f32 0.0, %v3337
          %v3339 = vpop.f32.mrf.mxu0
          %3340 = vmatprep.mubr.bf16.mxu0 0
          %3341 = vmatmul.mubr.bf16.gmra.mxu0 %v3217
          %v3342 = vpop.f32.mrf.mxu0
          %v3343 = vadd.f32 0.0, %v3342
          %v3344 = vpop.f32.mrf.mxu0
          %v3345 = vpop.f32.mrf.mxu0
          %v3346 = vadd.f32 0.0, %v3345
          %v3347 = vpop.f32.mrf.mxu0
          %3348 = vmatprep.mubr.bf16.mxu0 0
          %3349 = vmatmul.mubr.bf16.gmra.mxu0 %v3218
          %v3350 = vpop.f32.mrf.mxu0
          %v3351 = vadd.f32 0.0, %v3350
          %v3352 = vpop.f32.mrf.mxu0
          %v3353 = vpop.f32.mrf.mxu0
          %v3354 = vadd.f32 0.0, %v3353
          %v3355 = vpop.f32.mrf.mxu0
          %3356 = vdwg.mxu0
          %v3357 = vadd.f32 %v3327, %v1851
          %v3358 = vadd.f32 %v3330, %v1851
          %v3359 = vadd.f32 %v3335, %v1851
          %v3360 = vadd.f32 %v3338, %v1851
          %v3361 = vadd.f32 %v3343, %v1851
          %v3362 = vadd.f32 %v3346, %v1851
          %v3363 = vadd.f32 %v3351, %v1851
          %v3364 = vadd.f32 %v3354, %v1851
          %v3365 = vadd.f32 %v3191, %v3254
          %v3366 = vadd.f32 %v3194, %v3258
          %v3367 = vadd.f32 %v3197, %v3264
          %v3368 = vadd.f32 %v3200, %v3268
          %v3369 = vadd.f32 %v3203, %v3274
          %v3370 = vadd.f32 %v3206, %v3278
          %v3371 = vadd.f32 %v3209, %v3284
          %v3372 = vadd.f32 %v3212, %v3288
          %v3373 = vxor.u32 %v3365, 2147483648
          %v3374 = vxor.u32 %v3366, 2147483648
          %v3375 = vxor.u32 %v3367, 2147483648
          %v3376 = vxor.u32 %v3368, 2147483648
          %v3377 = vxor.u32 %v3369, 2147483648
          %v3378 = vxor.u32 %v3370, 2147483648
          %v3379 = vxor.u32 %v3371, 2147483648
          %v3380 = vxor.u32 %v3372, 2147483648
          %v3381 = vmul.f32 %v3373, 1.442695
          %v3382 = vpow.pop %v3381
          %v3383 = vmul.f32 %v3374, 1.442695
          %v3384 = vpow.pop %v3383
          %v3385 = vmul.f32 %v3375, 1.442695
          %v3386 = vpow.pop %v3385
          %v3387 = vmul.f32 %v3376, 1.442695
          %v3388 = vpow.pop %v3387
          %v3389 = vmul.f32 %v3377, 1.442695
          %v3390 = vpow.pop %v3389
          %v3391 = vmul.f32 %v3378, 1.442695
          %v3392 = vpow.pop %v3391
          %v3393 = vmul.f32 %v3379, 1.442695
          %v3394 = vpow.pop %v3393
          %v3395 = vmul.f32 %v3380, 1.442695
          %v3396 = vpow.pop %v3395
          %v3397 = vadd.f32 %v3382, 1.0
          %v3398 = vadd.f32 %v3384, 1.0
          %v3399 = vadd.f32 %v3386, 1.0
          %v3400 = vadd.f32 %v3388, 1.0
          %v3401 = vadd.f32 %v3390, 1.0
          %v3402 = vadd.f32 %v3392, 1.0
          %v3403 = vadd.f32 %v3394, 1.0
          %v3404 = vadd.f32 %v3396, 1.0
          %v3405 = vrcp.pop %v3397
          %v3406 = vmul.f32 1.0, %v3405
          %v3407 = vrcp.pop %v3398
          %v3408 = vmul.f32 1.0, %v3407
          %v3409 = vrcp.pop %v3399
          %v3410 = vmul.f32 1.0, %v3409
          %v3411 = vrcp.pop %v3400
          %v3412 = vmul.f32 1.0, %v3411
          %v3413 = vrcp.pop %v3401
          %v3414 = vmul.f32 1.0, %v3413
          %v3415 = vrcp.pop %v3402
          %v3416 = vmul.f32 1.0, %v3415
          %v3417 = vrcp.pop %v3403
          %v3418 = vmul.f32 1.0, %v3417
          %v3419 = vrcp.pop %v3404
          %v3420 = vmul.f32 1.0, %v3419
          %v3421 = vadd.f32 %v3192, %v3256
          %v3422 = vadd.f32 %v3195, %v3260
          %v3423 = vadd.f32 %v3198, %v3266
          %v3424 = vadd.f32 %v3201, %v3270
          %v3425 = vadd.f32 %v3204, %v3276
          %v3426 = vadd.f32 %v3207, %v3280
          %v3427 = vadd.f32 %v3210, %v3286
          %v3428 = vadd.f32 %v3213, %v3290
          %v3429 = vxor.u32 %v3421, 2147483648
          %v3430 = vxor.u32 %v3422, 2147483648
          %v3431 = vxor.u32 %v3423, 2147483648
          %v3432 = vxor.u32 %v3424, 2147483648
          %v3433 = vxor.u32 %v3425, 2147483648
          %v3434 = vxor.u32 %v3426, 2147483648
          %v3435 = vxor.u32 %v3427, 2147483648
          %v3436 = vxor.u32 %v3428, 2147483648
          %v3437 = vmul.f32 %v3429, 1.442695
          %v3438 = vpow.pop %v3437
          %v3439 = vmul.f32 %v3430, 1.442695
          %v3440 = vpow.pop %v3439
          %v3441 = vmul.f32 %v3431, 1.442695
          %v3442 = vpow.pop %v3441
          %v3443 = vmul.f32 %v3432, 1.442695
          %v3444 = vpow.pop %v3443
          %v3445 = vmul.f32 %v3433, 1.442695
          %v3446 = vpow.pop %v3445
          %v3447 = vmul.f32 %v3434, 1.442695
          %v3448 = vpow.pop %v3447
          %v3449 = vmul.f32 %v3435, 1.442695
          %v3450 = vpow.pop %v3449
          %v3451 = vmul.f32 %v3436, 1.442695
          %v3452 = vpow.pop %v3451
          %v3453 = vadd.f32 %v3438, 1.0
          %v3454 = vadd.f32 %v3440, 1.0
          %v3455 = vadd.f32 %v3442, 1.0
          %v3456 = vadd.f32 %v3444, 1.0
          %v3457 = vadd.f32 %v3446, 1.0
          %v3458 = vadd.f32 %v3448, 1.0
          %v3459 = vadd.f32 %v3450, 1.0
          %v3460 = vadd.f32 %v3452, 1.0
          %v3461 = vrcp.pop %v3453
          %v3462 = vmul.f32 1.0, %v3461
          %v3463 = vrcp.pop %v3454
          %v3464 = vmul.f32 1.0, %v3463
          %v3465 = vrcp.pop %v3455
          %v3466 = vmul.f32 1.0, %v3465
          %v3467 = vrcp.pop %v3456
          %v3468 = vmul.f32 1.0, %v3467
          %v3469 = vrcp.pop %v3457
          %v3470 = vmul.f32 1.0, %v3469
          %v3471 = vrcp.pop %v3458
          %v3472 = vmul.f32 1.0, %v3471
          %v3473 = vrcp.pop %v3459
          %v3474 = vmul.f32 1.0, %v3473
          %v3475 = vrcp.pop %v3460
          %v3476 = vmul.f32 1.0, %v3475
          %v3477 = vmul.f32 %v3406, %v3357
          %v3478 = vmul.f32 %v3408, %v3358
          %v3479 = vmul.f32 %v3410, %v3359
          %v3480 = vmul.f32 %v3412, %v3360
          %v3481 = vmul.f32 %v3414, %v3361
          %v3482 = vmul.f32 %v3416, %v3362
          %v3483 = vmul.f32 %v3418, %v3363
          %v3484 = vmul.f32 %v3420, %v3364
          %v3485 = vadd.f32 %v3193, %v3477
          %v3486 = vadd.f32 %v3196, %v3478
          %v3487 = vadd.f32 %v3199, %v3479
          %v3488 = vadd.f32 %v3202, %v3480
          %v3489 = vadd.f32 %v3205, %v3481
          %v3490 = vadd.f32 %v3208, %v3482
          %v3491 = vadd.f32 %v3211, %v3483
          %v3492 = vadd.f32 %v3214, %v3484
          %v3493 = vtanh.pop %v3485
          %v3494 = vtanh.pop %v3486
          %v3495 = vtanh.pop %v3487
          %v3496 = vtanh.pop %v3488
          %v3497 = vtanh.pop %v3489
          %v3498 = vtanh.pop %v3490
          %v3499 = vtanh.pop %v3491
          %v3500 = vtanh.pop %v3492
          %v3501 = vsub.f32 1.0, %v3462
          %v3502 = vsub.f32 1.0, %v3464
          %v3503 = vsub.f32 1.0, %v3466
          %v3504 = vsub.f32 1.0, %v3468
          %v3505 = vsub.f32 1.0, %v3470
          %v3506 = vsub.f32 1.0, %v3472
          %v3507 = vsub.f32 1.0, %v3474
          %v3508 = vsub.f32 1.0, %v3476
          %v3509 = vmul.f32 %v3501, %v3493
          %v3510 = vmul.f32 %v3502, %v3494
          %v3511 = vmul.f32 %v3503, %v3495
          %v3512 = vmul.f32 %v3504, %v3496
          %v3513 = vmul.f32 %v3505, %v3497
          %v3514 = vmul.f32 %v3506, %v3498
          %v3515 = vmul.f32 %v3507, %v3499
          %v3516 = vmul.f32 %v3508, %v3500
          %v3517 = vmul.f32 %v3462, %v3182
          %v3518 = vmul.f32 %v3464, %v3183
          %v3519 = vmul.f32 %v3466, %v3184
          %v3520 = vmul.f32 %v3468, %v3185
          %v3521 = vmul.f32 %v3470, %v3186
          %v3522 = vmul.f32 %v3472, %v3187
          %v3523 = vmul.f32 %v3474, %v3188
          %v3524 = vmul.f32 %v3476, %v3189
          %v3525 = vadd.f32 %v3509, %v3517
          %v3526 = vadd.f32 %v3510, %v3518
          %v3527 = vadd.f32 %v3511, %v3519
          %v3528 = vadd.f32 %v3512, %v3520
          %v3529 = vadd.f32 %v3513, %v3521
          %v3530 = vadd.f32 %v3514, %v3522
          %v3531 = vadd.f32 %v3515, %v3523
          %v3532 = vadd.f32 %v3516, %v3524
          %s3533 = sadd.s32 %s608, 3
          %v3534 = vstv %s3533
          %vm3535 = vcmp.gt.s32.totalorder %v1806, %v3534
          %vm3536 = vcmp.gt.s32.totalorder %v1807, %v3534
          %vm3537 = vcmp.gt.s32.totalorder %v1808, %v3534
          %vm3538 = vcmp.gt.s32.totalorder %v1809, %v3534
          %vm3539 = vcmp.gt.s32.totalorder %v1810, %v3534
          %vm3540 = vcmp.gt.s32.totalorder %v1811, %v3534
          %vm3541 = vcmp.gt.s32.totalorder %v1812, %v3534
          %vm3542 = vcmp.gt.s32.totalorder %v1813, %v3534
          %v3543 = vsel %vm3535, 1, 0
          %v3544 = vsel %vm3536, 1, 0
          %v3545 = vsel %vm3537, 1, 0
          %v3546 = vsel %vm3538, 1, 0
          %v3547 = vsel %vm3539, 1, 0
          %v3548 = vsel %vm3540, 1, 0
          %v3549 = vsel %vm3541, 1, 0
          %v3550 = vsel %vm3542, 1, 0
          %3551 = vset.pattern.permute.xlu0 0
          %3552 = vperm.xlu0 %3551, %v3543
          %v3553 = vpop.permute.xlu0 %3552
          %3554 = vset.pattern.permute.xlu0 0
          %3555 = vperm.xlu0 %3554, %v3544
          %v3556 = vpop.permute.xlu0 %3555
          %3557 = vset.pattern.permute.xlu0 0
          %3558 = vperm.xlu0 %3557, %v3545
          %v3559 = vpop.permute.xlu0 %3558
          %3560 = vset.pattern.permute.xlu0 0
          %3561 = vperm.xlu0 %3560, %v3546
          %v3562 = vpop.permute.xlu0 %3561
          %3563 = vset.pattern.permute.xlu0 0
          %3564 = vperm.xlu0 %3563, %v3547
          %v3565 = vpop.permute.xlu0 %3564
          %3566 = vset.pattern.permute.xlu0 0
          %3567 = vperm.xlu0 %3566, %v3548
          %v3568 = vpop.permute.xlu0 %3567
          %3569 = vset.pattern.permute.xlu0 0
          %3570 = vperm.xlu0 %3569, %v3549
          %v3571 = vpop.permute.xlu0 %3570
          %3572 = vset.pattern.permute.xlu0 0
          %3573 = vperm.xlu0 %3572, %v3550
          %v3574 = vpop.permute.xlu0 %3573
          %vm3575 = vcmp.eq.s32.totalorder %v3553, 1
          %vm3576 = vcmp.eq.s32.totalorder %v3556, 1
          %vm3577 = vcmp.eq.s32.totalorder %v3559, 1
          %vm3578 = vcmp.eq.s32.totalorder %v3562, 1
          %vm3579 = vcmp.eq.s32.totalorder %v3565, 1
          %vm3580 = vcmp.eq.s32.totalorder %v3568, 1
          %vm3581 = vcmp.eq.s32.totalorder %v3571, 1
          %vm3582 = vcmp.eq.s32.totalorder %v3574, 1
          %v3583 = vsel %vm3575, %v3525, %v3182
          %v3584 = vsel %vm3576, %v3526, %v3183
          %v3585 = vsel %vm3577, %v3527, %v3184
          %v3586 = vsel %vm3578, %v3528, %v3185
          %v3587 = vsel %vm3579, %v3529, %v3186
          %v3588 = vsel %vm3580, %v3530, %v3187
          %v3589 = vsel %vm3581, %v3531, %v3188
          %v3590 = vsel %vm3582, %v3532, %v3189
          %s3591 = scalar_lea.vmem [#allocation2], 768
          %v3592 = vld [vmem:[%s3591] sm:$0xff]
          %v3593 = vld [vmem:[%s3591 + $0x8] sm:$0xff]
          %v3594 = vld [vmem:[%s3591 + $0x10] sm:$0xff]
          %v3595 = vld [vmem:[%s3591 + $0x18] sm:$0xff]
          %v3596 = vld [vmem:[%s3591 + $0x20] sm:$0xff]
          %v3597 = vld [vmem:[%s3591 + $0x28] sm:$0xff]
          %v3598 = vld [vmem:[%s3591 + $0x30] sm:$0xff]
          %v3599 = vld [vmem:[%s3591 + $0x38] sm:$0xff]
          %v3600 = vld [vmem:[%s3591 + $0x40] sm:$0xff]
          %v3601 = vld [vmem:[%s3591 + $0x48] sm:$0xff]
          %v3602 = vld [vmem:[%s3591 + $0x50] sm:$0xff]
          %v3603 = vld [vmem:[%s3591 + $0x58] sm:$0xff]
          %v3604 = vld [vmem:[%s3591 + $0x60] sm:$0xff]
          %v3605 = vld [vmem:[%s3591 + $0x68] sm:$0xff]
          %v3606 = vld [vmem:[%s3591 + $0x70] sm:$0xff]
          %v3607 = vld [vmem:[%s3591 + $0x78] sm:$0xff]
          %v3608 = vld [vmem:[%s3591 + $0x80] sm:$0xff]
          %v3609 = vld [vmem:[%s3591 + $0x88] sm:$0xff]
          %v3610 = vld [vmem:[%s3591 + $0x90] sm:$0xff]
          %v3611 = vld [vmem:[%s3591 + $0x98] sm:$0xff]
          %v3612 = vld [vmem:[%s3591 + $0xa0] sm:$0xff]
          %v3613 = vld [vmem:[%s3591 + $0xa8] sm:$0xff]
          %v3614 = vld [vmem:[%s3591 + $0xb0] sm:$0xff]
          %v3615 = vld [vmem:[%s3591 + $0xb8] sm:$0xff]
          %v3616 = vpack.c.bf16 %v3584, %v3583
          %v3617 = vpack.c.bf16 %v3586, %v3585
          %v3618 = vpack.c.bf16 %v3588, %v3587
          %v3619 = vpack.c.bf16 %v3590, %v3589
          %3620 = vmatprep.subr.bf16.mxu0 %v1991
          %3621 = vmatpush1.bf16.msra.mxu0 %v1990
          %3622 = vmatprep.subr.bf16.mxu0 %v1988
          %3623 = vmatpush1.bf16.msra.mxu0 %v1987
          %3624 = vmatprep.subr.bf16.mxu0 %v1985
          %3625 = vmatpush1.bf16.msra.mxu0 %v1984
          %3626 = vmatprep.subr.bf16.mxu0 %v1982
          %3627 = vmatpush1.bf16.msra.mxu0 %v1981
          %3628 = vmatprep.subr.bf16.mxu0 %v1979
          %3629 = vmatpush1.bf16.msra.mxu0 %v1978
          %3630 = vmatprep.subr.bf16.mxu0 %v1976
          %3631 = vmatpush1.bf16.msra.mxu0 %v1975
          %3632 = vmatprep.subr.bf16.mxu0 %v1973
          %3633 = vmatpush1.bf16.msra.mxu0 %v1972
          %3634 = vmatprep.subr.bf16.mxu0 %v1970
          %3635 = vmatpush1.bf16.msra.mxu0 %v1969
          %3636 = vmatprep.subr.bf16.mxu0 0
          %3637 = vmatpush2.bf16.msra.mxu0 0
          %3638 = vmatprep.subr.bf16.mxu0 0
          %3639 = vmatpush2.bf16.msra.mxu0 0
          %3640 = vmatprep.subr.bf16.mxu0 0
          %3641 = vmatpush2.bf16.msra.mxu0 0
          %3642 = vmatprep.subr.bf16.mxu0 0
          %3643 = vmatpush2.bf16.msra.mxu0 0
          %3644 = vmatprep.subr.bf16.mxu0 0
          %3645 = vmatpush2.bf16.msra.mxu0 0
          %3646 = vmatprep.subr.bf16.mxu0 0
          %3647 = vmatpush2.bf16.msra.mxu0 0
          %3648 = vmatprep.subr.bf16.mxu0 0
          %3649 = vmatpush2.bf16.msra.mxu0 0
          %3650 = vmatprep.subr.bf16.mxu0 0
          %3651 = vmatpush2.bf16.msra.mxu0 0
          %3652 = vmatprep.mubr.bf16.mxu0 0
          %3653 = vmatmul.mubr.bf16.gmra.mxu0 %v3616
          %v3654 = vpop.f32.mrf.mxu0
          %v3655 = vadd.f32 0.0, %v3654
          %v3656 = vpop.f32.mrf.mxu0
          %v3657 = vadd.f32 0.0, %v3656
          %v3658 = vpop.f32.mrf.mxu0
          %v3659 = vadd.f32 0.0, %v3658
          %v3660 = vpop.f32.mrf.mxu0
          %v3661 = vadd.f32 0.0, %v3660
          %3662 = vmatprep.mubr.bf16.mxu0 0
          %3663 = vmatmul.mubr.bf16.gmra.mxu0 %v3617
          %v3664 = vpop.f32.mrf.mxu0
          %v3665 = vadd.f32 0.0, %v3664
          %v3666 = vpop.f32.mrf.mxu0
          %v3667 = vadd.f32 0.0, %v3666
          %v3668 = vpop.f32.mrf.mxu0
          %v3669 = vadd.f32 0.0, %v3668
          %v3670 = vpop.f32.mrf.mxu0
          %v3671 = vadd.f32 0.0, %v3670
          %3672 = vmatprep.mubr.bf16.mxu0 0
          %3673 = vmatmul.mubr.bf16.gmra.mxu0 %v3618
          %v3674 = vpop.f32.mrf.mxu0
          %v3675 = vadd.f32 0.0, %v3674
          %v3676 = vpop.f32.mrf.mxu0
          %v3677 = vadd.f32 0.0, %v3676
          %v3678 = vpop.f32.mrf.mxu0
          %v3679 = vadd.f32 0.0, %v3678
          %v3680 = vpop.f32.mrf.mxu0
          %v3681 = vadd.f32 0.0, %v3680
          %3682 = vmatprep.mubr.bf16.mxu0 0
          %3683 = vmatmul.mubr.bf16.gmra.mxu0 %v3619
          %v3684 = vpop.f32.mrf.mxu0
          %v3685 = vadd.f32 0.0, %v3684
          %v3686 = vpop.f32.mrf.mxu0
          %v3687 = vadd.f32 0.0, %v3686
          %v3688 = vpop.f32.mrf.mxu0
          %v3689 = vadd.f32 0.0, %v3688
          %v3690 = vpop.f32.mrf.mxu0
          %v3691 = vadd.f32 0.0, %v3690
          %3692 = vdwg.mxu0
          %3693 = vmatprep.subr.bf16.mxu0 0
          %3694 = vmatpush1.bf16.msra.mxu0 %v1992
          %3695 = vmatprep.subr.bf16.mxu0 0
          %3696 = vmatpush1.bf16.msra.mxu0 %v1989
          %3697 = vmatprep.subr.bf16.mxu0 0
          %3698 = vmatpush1.bf16.msra.mxu0 %v1986
          %3699 = vmatprep.subr.bf16.mxu0 0
          %3700 = vmatpush1.bf16.msra.mxu0 %v1983
          %3701 = vmatprep.subr.bf16.mxu0 0
          %3702 = vmatpush1.bf16.msra.mxu0 %v1980
          %3703 = vmatprep.subr.bf16.mxu0 0
          %3704 = vmatpush1.bf16.msra.mxu0 %v1977
          %3705 = vmatprep.subr.bf16.mxu0 0
          %3706 = vmatpush1.bf16.msra.mxu0 %v1974
          %3707 = vmatprep.subr.bf16.mxu0 0
          %3708 = vmatpush1.bf16.msra.mxu0 %v1971
          %3709 = vmatprep.subr.bf16.mxu0 0
          %3710 = vmatpush2.bf16.msra.mxu0 0
          %3711 = vmatprep.subr.bf16.mxu0 0
          %3712 = vmatpush2.bf16.msra.mxu0 0
          %3713 = vmatprep.subr.bf16.mxu0 0
          %3714 = vmatpush2.bf16.msra.mxu0 0
          %3715 = vmatprep.subr.bf16.mxu0 0
          %3716 = vmatpush2.bf16.msra.mxu0 0
          %3717 = vmatprep.subr.bf16.mxu0 0
          %3718 = vmatpush2.bf16.msra.mxu0 0
          %3719 = vmatprep.subr.bf16.mxu0 0
          %3720 = vmatpush2.bf16.msra.mxu0 0
          %3721 = vmatprep.subr.bf16.mxu0 0
          %3722 = vmatpush2.bf16.msra.mxu0 0
          %3723 = vmatprep.subr.bf16.mxu0 0
          %3724 = vmatpush2.bf16.msra.mxu0 0
          %3725 = vmatprep.mubr.bf16.mxu0 0
          %3726 = vmatmul.mubr.bf16.gmra.mxu0 %v3616
          %v3727 = vpop.f32.mrf.mxu0
          %v3728 = vadd.f32 0.0, %v3727
          %v3729 = vpop.f32.mrf.mxu0
          %v3730 = vpop.f32.mrf.mxu0
          %v3731 = vadd.f32 0.0, %v3730
          %v3732 = vpop.f32.mrf.mxu0
          %3733 = vmatprep.mubr.bf16.mxu0 0
          %3734 = vmatmul.mubr.bf16.gmra.mxu0 %v3617
          %v3735 = vpop.f32.mrf.mxu0
          %v3736 = vadd.f32 0.0, %v3735
          %v3737 = vpop.f32.mrf.mxu0
          %v3738 = vpop.f32.mrf.mxu0
          %v3739 = vadd.f32 0.0, %v3738
          %v3740 = vpop.f32.mrf.mxu0
          %3741 = vmatprep.mubr.bf16.mxu0 0
          %3742 = vmatmul.mubr.bf16.gmra.mxu0 %v3618
          %v3743 = vpop.f32.mrf.mxu0
          %v3744 = vadd.f32 0.0, %v3743
          %v3745 = vpop.f32.mrf.mxu0
          %v3746 = vpop.f32.mrf.mxu0
          %v3747 = vadd.f32 0.0, %v3746
          %v3748 = vpop.f32.mrf.mxu0
          %3749 = vmatprep.mubr.bf16.mxu0 0
          %3750 = vmatmul.mubr.bf16.gmra.mxu0 %v3619
          %v3751 = vpop.f32.mrf.mxu0
          %v3752 = vadd.f32 0.0, %v3751
          %v3753 = vpop.f32.mrf.mxu0
          %v3754 = vpop.f32.mrf.mxu0
          %v3755 = vadd.f32 0.0, %v3754
          %v3756 = vpop.f32.mrf.mxu0
          %3757 = vdwg.mxu0
          %v3758 = vadd.f32 %v3728, %v1851
          %v3759 = vadd.f32 %v3731, %v1851
          %v3760 = vadd.f32 %v3736, %v1851
          %v3761 = vadd.f32 %v3739, %v1851
          %v3762 = vadd.f32 %v3744, %v1851
          %v3763 = vadd.f32 %v3747, %v1851
          %v3764 = vadd.f32 %v3752, %v1851
          %v3765 = vadd.f32 %v3755, %v1851
          %v3766 = vadd.f32 %v3592, %v3655
          %v3767 = vadd.f32 %v3595, %v3659
          %v3768 = vadd.f32 %v3598, %v3665
          %v3769 = vadd.f32 %v3601, %v3669
          %v3770 = vadd.f32 %v3604, %v3675
          %v3771 = vadd.f32 %v3607, %v3679
          %v3772 = vadd.f32 %v3610, %v3685
          %v3773 = vadd.f32 %v3613, %v3689
          %v3774 = vxor.u32 %v3766, 2147483648
          %v3775 = vxor.u32 %v3767, 2147483648
          %v3776 = vxor.u32 %v3768, 2147483648
          %v3777 = vxor.u32 %v3769, 2147483648
          %v3778 = vxor.u32 %v3770, 2147483648
          %v3779 = vxor.u32 %v3771, 2147483648
          %v3780 = vxor.u32 %v3772, 2147483648
          %v3781 = vxor.u32 %v3773, 2147483648
          %v3782 = vmul.f32 %v3774, 1.442695
          %v3783 = vpow.pop %v3782
          %v3784 = vmul.f32 %v3775, 1.442695
          %v3785 = vpow.pop %v3784
          %v3786 = vmul.f32 %v3776, 1.442695
          %v3787 = vpow.pop %v3786
          %v3788 = vmul.f32 %v3777, 1.442695
          %v3789 = vpow.pop %v3788
          %v3790 = vmul.f32 %v3778, 1.442695
          %v3791 = vpow.pop %v3790
          %v3792 = vmul.f32 %v3779, 1.442695
          %v3793 = vpow.pop %v3792
          %v3794 = vmul.f32 %v3780, 1.442695
          %v3795 = vpow.pop %v3794
          %v3796 = vmul.f32 %v3781, 1.442695
          %v3797 = vpow.pop %v3796
          %v3798 = vadd.f32 %v3783, 1.0
          %v3799 = vadd.f32 %v3785, 1.0
          %v3800 = vadd.f32 %v3787, 1.0
          %v3801 = vadd.f32 %v3789, 1.0
          %v3802 = vadd.f32 %v3791, 1.0
          %v3803 = vadd.f32 %v3793, 1.0
          %v3804 = vadd.f32 %v3795, 1.0
          %v3805 = vadd.f32 %v3797, 1.0
          %v3806 = vrcp.pop %v3798
          %v3807 = vmul.f32 1.0, %v3806
          %v3808 = vrcp.pop %v3799
          %v3809 = vmul.f32 1.0, %v3808
          %v3810 = vrcp.pop %v3800
          %v3811 = vmul.f32 1.0, %v3810
          %v3812 = vrcp.pop %v3801
          %v3813 = vmul.f32 1.0, %v3812
          %v3814 = vrcp.pop %v3802
          %v3815 = vmul.f32 1.0, %v3814
          %v3816 = vrcp.pop %v3803
          %v3817 = vmul.f32 1.0, %v3816
          %v3818 = vrcp.pop %v3804
          %v3819 = vmul.f32 1.0, %v3818
          %v3820 = vrcp.pop %v3805
          %v3821 = vmul.f32 1.0, %v3820
          %v3822 = vadd.f32 %v3593, %v3657
          %v3823 = vadd.f32 %v3596, %v3661
          %v3824 = vadd.f32 %v3599, %v3667
          %v3825 = vadd.f32 %v3602, %v3671
          %v3826 = vadd.f32 %v3605, %v3677
          %v3827 = vadd.f32 %v3608, %v3681
          %v3828 = vadd.f32 %v3611, %v3687
          %v3829 = vadd.f32 %v3614, %v3691
          %v3830 = vxor.u32 %v3822, 2147483648
          %v3831 = vxor.u32 %v3823, 2147483648
          %v3832 = vxor.u32 %v3824, 2147483648
          %v3833 = vxor.u32 %v3825, 2147483648
          %v3834 = vxor.u32 %v3826, 2147483648
          %v3835 = vxor.u32 %v3827, 2147483648
          %v3836 = vxor.u32 %v3828, 2147483648
          %v3837 = vxor.u32 %v3829, 2147483648
          %v3838 = vmul.f32 %v3830, 1.442695
          %v3839 = vpow.pop %v3838
          %v3840 = vmul.f32 %v3831, 1.442695
          %v3841 = vpow.pop %v3840
          %v3842 = vmul.f32 %v3832, 1.442695
          %v3843 = vpow.pop %v3842
          %v3844 = vmul.f32 %v3833, 1.442695
          %v3845 = vpow.pop %v3844
          %v3846 = vmul.f32 %v3834, 1.442695
          %v3847 = vpow.pop %v3846
          %v3848 = vmul.f32 %v3835, 1.442695
          %v3849 = vpow.pop %v3848
          %v3850 = vmul.f32 %v3836, 1.442695
          %v3851 = vpow.pop %v3850
          %v3852 = vmul.f32 %v3837, 1.442695
          %v3853 = vpow.pop %v3852
          %v3854 = vadd.f32 %v3839, 1.0
          %v3855 = vadd.f32 %v3841, 1.0
          %v3856 = vadd.f32 %v3843, 1.0
          %v3857 = vadd.f32 %v3845, 1.0
          %v3858 = vadd.f32 %v3847, 1.0
          %v3859 = vadd.f32 %v3849, 1.0
          %v3860 = vadd.f32 %v3851, 1.0
          %v3861 = vadd.f32 %v3853, 1.0
          %v3862 = vrcp.pop %v3854
          %v3863 = vmul.f32 1.0, %v3862
          %v3864 = vrcp.pop %v3855
          %v3865 = vmul.f32 1.0, %v3864
          %v3866 = vrcp.pop %v3856
          %v3867 = vmul.f32 1.0, %v3866
          %v3868 = vrcp.pop %v3857
          %v3869 = vmul.f32 1.0, %v3868
          %v3870 = vrcp.pop %v3858
          %v3871 = vmul.f32 1.0, %v3870
          %v3872 = vrcp.pop %v3859
          %v3873 = vmul.f32 1.0, %v3872
          %v3874 = vrcp.pop %v3860
          %v3875 = vmul.f32 1.0, %v3874
          %v3876 = vrcp.pop %v3861
          %v3877 = vmul.f32 1.0, %v3876
          %v3878 = vmul.f32 %v3807, %v3758
          %v3879 = vmul.f32 %v3809, %v3759
          %v3880 = vmul.f32 %v3811, %v3760
          %v3881 = vmul.f32 %v3813, %v3761
          %v3882 = vmul.f32 %v3815, %v3762
          %v3883 = vmul.f32 %v3817, %v3763
          %v3884 = vmul.f32 %v3819, %v3764
          %v3885 = vmul.f32 %v3821, %v3765
          %v3886 = vadd.f32 %v3594, %v3878
          %v3887 = vadd.f32 %v3597, %v3879
          %v3888 = vadd.f32 %v3600, %v3880
          %v3889 = vadd.f32 %v3603, %v3881
          %v3890 = vadd.f32 %v3606, %v3882
          %v3891 = vadd.f32 %v3609, %v3883
          %v3892 = vadd.f32 %v3612, %v3884
          %v3893 = vadd.f32 %v3615, %v3885
          %v3894 = vtanh.pop %v3886
          %v3895 = vtanh.pop %v3887
          %v3896 = vtanh.pop %v3888
          %v3897 = vtanh.pop %v3889
          %v3898 = vtanh.pop %v3890
          %v3899 = vtanh.pop %v3891
          %v3900 = vtanh.pop %v3892
          %v3901 = vtanh.pop %v3893
          %v3902 = vsub.f32 1.0, %v3863
          %v3903 = vsub.f32 1.0, %v3865
          %v3904 = vsub.f32 1.0, %v3867
          %v3905 = vsub.f32 1.0, %v3869
          %v3906 = vsub.f32 1.0, %v3871
          %v3907 = vsub.f32 1.0, %v3873
          %v3908 = vsub.f32 1.0, %v3875
          %v3909 = vsub.f32 1.0, %v3877
          %v3910 = vmul.f32 %v3902, %v3894
          %v3911 = vmul.f32 %v3903, %v3895
          %v3912 = vmul.f32 %v3904, %v3896
          %v3913 = vmul.f32 %v3905, %v3897
          %v3914 = vmul.f32 %v3906, %v3898
          %v3915 = vmul.f32 %v3907, %v3899
          %v3916 = vmul.f32 %v3908, %v3900
          %v3917 = vmul.f32 %v3909, %v3901
          %v3918 = vmul.f32 %v3863, %v3583
          %v3919 = vmul.f32 %v3865, %v3584
          %v3920 = vmul.f32 %v3867, %v3585
          %v3921 = vmul.f32 %v3869, %v3586
          %v3922 = vmul.f32 %v3871, %v3587
          %v3923 = vmul.f32 %v3873, %v3588
          %v3924 = vmul.f32 %v3875, %v3589
          %v3925 = vmul.f32 %v3877, %v3590
          %v3926 = vadd.f32 %v3910, %v3918
          %v3927 = vadd.f32 %v3911, %v3919
          %v3928 = vadd.f32 %v3912, %v3920
          %v3929 = vadd.f32 %v3913, %v3921
          %v3930 = vadd.f32 %v3914, %v3922
          %v3931 = vadd.f32 %v3915, %v3923
          %v3932 = vadd.f32 %v3916, %v3924
          %v3933 = vadd.f32 %v3917, %v3925
          %s3934 = sadd.s32 %s608, 4
          %v3935 = vstv %s3934
          %vm3936 = vcmp.gt.s32.totalorder %v1806, %v3935
          %vm3937 = vcmp.gt.s32.totalorder %v1807, %v3935
          %vm3938 = vcmp.gt.s32.totalorder %v1808, %v3935
          %vm3939 = vcmp.gt.s32.totalorder %v1809, %v3935
          %vm3940 = vcmp.gt.s32.totalorder %v1810, %v3935
          %vm3941 = vcmp.gt.s32.totalorder %v1811, %v3935
          %vm3942 = vcmp.gt.s32.totalorder %v1812, %v3935
          %vm3943 = vcmp.gt.s32.totalorder %v1813, %v3935
          %v3944 = vsel %vm3936, 1, 0
          %v3945 = vsel %vm3937, 1, 0
          %v3946 = vsel %vm3938, 1, 0
          %v3947 = vsel %vm3939, 1, 0
          %v3948 = vsel %vm3940, 1, 0
          %v3949 = vsel %vm3941, 1, 0
          %v3950 = vsel %vm3942, 1, 0
          %v3951 = vsel %vm3943, 1, 0
          %3952 = vset.pattern.permute.xlu0 0
          %3953 = vperm.xlu0 %3952, %v3944
          %v3954 = vpop.permute.xlu0 %3953
          %3955 = vset.pattern.permute.xlu0 0
          %3956 = vperm.xlu0 %3955, %v3945
          %v3957 = vpop.permute.xlu0 %3956
          %3958 = vset.pattern.permute.xlu0 0
          %3959 = vperm.xlu0 %3958, %v3946
          %v3960 = vpop.permute.xlu0 %3959
          %3961 = vset.pattern.permute.xlu0 0
          %3962 = vperm.xlu0 %3961, %v3947
          %v3963 = vpop.permute.xlu0 %3962
          %3964 = vset.pattern.permute.xlu0 0
          %3965 = vperm.xlu0 %3964, %v3948
          %v3966 = vpop.permute.xlu0 %3965
          %3967 = vset.pattern.permute.xlu0 0
          %3968 = vperm.xlu0 %3967, %v3949
          %v3969 = vpop.permute.xlu0 %3968
          %3970 = vset.pattern.permute.xlu0 0
          %3971 = vperm.xlu0 %3970, %v3950
          %v3972 = vpop.permute.xlu0 %3971
          %3973 = vset.pattern.permute.xlu0 0
          %3974 = vperm.xlu0 %3973, %v3951
          %v3975 = vpop.permute.xlu0 %3974
          %vm3976 = vcmp.eq.s32.totalorder %v3954, 1
          %vm3977 = vcmp.eq.s32.totalorder %v3957, 1
          %vm3978 = vcmp.eq.s32.totalorder %v3960, 1
          %vm3979 = vcmp.eq.s32.totalorder %v3963, 1
          %vm3980 = vcmp.eq.s32.totalorder %v3966, 1
          %vm3981 = vcmp.eq.s32.totalorder %v3969, 1
          %vm3982 = vcmp.eq.s32.totalorder %v3972, 1
          %vm3983 = vcmp.eq.s32.totalorder %v3975, 1
          %v3984 = vsel %vm3976, %v3926, %v3583
          %v3985 = vsel %vm3977, %v3927, %v3584
          %v3986 = vsel %vm3978, %v3928, %v3585
          %v3987 = vsel %vm3979, %v3929, %v3586
          %v3988 = vsel %vm3980, %v3930, %v3587
          %v3989 = vsel %vm3981, %v3931, %v3588
          %v3990 = vsel %vm3982, %v3932, %v3589
          %v3991 = vsel %vm3983, %v3933, %v3590
          %s3992 = scalar_lea.vmem [#allocation2], 960
          %v3993 = vld [vmem:[%s3992] sm:$0xff]
          %v3994 = vld [vmem:[%s3992 + $0x8] sm:$0xff]
          %v3995 = vld [vmem:[%s3992 + $0x10] sm:$0xff]
          %v3996 = vld [vmem:[%s3992 + $0x18] sm:$0xff]
          %v3997 = vld [vmem:[%s3992 + $0x20] sm:$0xff]
          %v3998 = vld [vmem:[%s3992 + $0x28] sm:$0xff]
          %v3999 = vld [vmem:[%s3992 + $0x30] sm:$0xff]
          %v4000 = vld [vmem:[%s3992 + $0x38] sm:$0xff]
          %v4001 = vld [vmem:[%s3992 + $0x40] sm:$0xff]
          %v4002 = vld [vmem:[%s3992 + $0x48] sm:$0xff]
          %v4003 = vld [vmem:[%s3992 + $0x50] sm:$0xff]
          %v4004 = vld [vmem:[%s3992 + $0x58] sm:$0xff]
          %v4005 = vld [vmem:[%s3992 + $0x60] sm:$0xff]
          %v4006 = vld [vmem:[%s3992 + $0x68] sm:$0xff]
          %v4007 = vld [vmem:[%s3992 + $0x70] sm:$0xff]
          %v4008 = vld [vmem:[%s3992 + $0x78] sm:$0xff]
          %v4009 = vld [vmem:[%s3992 + $0x80] sm:$0xff]
          %v4010 = vld [vmem:[%s3992 + $0x88] sm:$0xff]
          %v4011 = vld [vmem:[%s3992 + $0x90] sm:$0xff]
          %v4012 = vld [vmem:[%s3992 + $0x98] sm:$0xff]
          %v4013 = vld [vmem:[%s3992 + $0xa0] sm:$0xff]
          %v4014 = vld [vmem:[%s3992 + $0xa8] sm:$0xff]
          %v4015 = vld [vmem:[%s3992 + $0xb0] sm:$0xff]
          %v4016 = vld [vmem:[%s3992 + $0xb8] sm:$0xff]
          %v4017 = vpack.c.bf16 %v3985, %v3984
          %v4018 = vpack.c.bf16 %v3987, %v3986
          %v4019 = vpack.c.bf16 %v3989, %v3988
          %v4020 = vpack.c.bf16 %v3991, %v3990
          %4021 = vmatprep.subr.bf16.mxu0 %v1991
          %4022 = vmatpush1.bf16.msra.mxu0 %v1990
          %4023 = vmatprep.subr.bf16.mxu0 %v1988
          %4024 = vmatpush1.bf16.msra.mxu0 %v1987
          %4025 = vmatprep.subr.bf16.mxu0 %v1985
          %4026 = vmatpush1.bf16.msra.mxu0 %v1984
          %4027 = vmatprep.subr.bf16.mxu0 %v1982
          %4028 = vmatpush1.bf16.msra.mxu0 %v1981
          %4029 = vmatprep.subr.bf16.mxu0 %v1979
          %4030 = vmatpush1.bf16.msra.mxu0 %v1978
          %4031 = vmatprep.subr.bf16.mxu0 %v1976
          %4032 = vmatpush1.bf16.msra.mxu0 %v1975
          %4033 = vmatprep.subr.bf16.mxu0 %v1973
          %4034 = vmatpush1.bf16.msra.mxu0 %v1972
          %4035 = vmatprep.subr.bf16.mxu0 %v1970
          %4036 = vmatpush1.bf16.msra.mxu0 %v1969
          %4037 = vmatprep.subr.bf16.mxu0 0
          %4038 = vmatpush2.bf16.msra.mxu0 0
          %4039 = vmatprep.subr.bf16.mxu0 0
          %4040 = vmatpush2.bf16.msra.mxu0 0
          %4041 = vmatprep.subr.bf16.mxu0 0
          %4042 = vmatpush2.bf16.msra.mxu0 0
          %4043 = vmatprep.subr.bf16.mxu0 0
          %4044 = vmatpush2.bf16.msra.mxu0 0
          %4045 = vmatprep.subr.bf16.mxu0 0
          %4046 = vmatpush2.bf16.msra.mxu0 0
          %4047 = vmatprep.subr.bf16.mxu0 0
          %4048 = vmatpush2.bf16.msra.mxu0 0
          %4049 = vmatprep.subr.bf16.mxu0 0
          %4050 = vmatpush2.bf16.msra.mxu0 0
          %4051 = vmatprep.subr.bf16.mxu0 0
          %4052 = vmatpush2.bf16.msra.mxu0 0
          %4053 = vmatprep.mubr.bf16.mxu0 0
          %4054 = vmatmul.mubr.bf16.gmra.mxu0 %v4017
          %v4055 = vpop.f32.mrf.mxu0
          %v4056 = vadd.f32 0.0, %v4055
          %v4057 = vpop.f32.mrf.mxu0
          %v4058 = vadd.f32 0.0, %v4057
          %v4059 = vpop.f32.mrf.mxu0
          %v4060 = vadd.f32 0.0, %v4059
          %v4061 = vpop.f32.mrf.mxu0
          %v4062 = vadd.f32 0.0, %v4061
          %4063 = vmatprep.mubr.bf16.mxu0 0
          %4064 = vmatmul.mubr.bf16.gmra.mxu0 %v4018
          %v4065 = vpop.f32.mrf.mxu0
          %v4066 = vadd.f32 0.0, %v4065
          %v4067 = vpop.f32.mrf.mxu0
          %v4068 = vadd.f32 0.0, %v4067
          %v4069 = vpop.f32.mrf.mxu0
          %v4070 = vadd.f32 0.0, %v4069
          %v4071 = vpop.f32.mrf.mxu0
          %v4072 = vadd.f32 0.0, %v4071
          %4073 = vmatprep.mubr.bf16.mxu0 0
          %4074 = vmatmul.mubr.bf16.gmra.mxu0 %v4019
          %v4075 = vpop.f32.mrf.mxu0
          %v4076 = vadd.f32 0.0, %v4075
          %v4077 = vpop.f32.mrf.mxu0
          %v4078 = vadd.f32 0.0, %v4077
          %v4079 = vpop.f32.mrf.mxu0
          %v4080 = vadd.f32 0.0, %v4079
          %v4081 = vpop.f32.mrf.mxu0
          %v4082 = vadd.f32 0.0, %v4081
          %4083 = vmatprep.mubr.bf16.mxu0 0
          %4084 = vmatmul.mubr.bf16.gmra.mxu0 %v4020
          %v4085 = vpop.f32.mrf.mxu0
          %v4086 = vadd.f32 0.0, %v4085
          %v4087 = vpop.f32.mrf.mxu0
          %v4088 = vadd.f32 0.0, %v4087
          %v4089 = vpop.f32.mrf.mxu0
          %v4090 = vadd.f32 0.0, %v4089
          %v4091 = vpop.f32.mrf.mxu0
          %v4092 = vadd.f32 0.0, %v4091
          %4093 = vdwg.mxu0
          %4094 = vmatprep.subr.bf16.mxu0 0
          %4095 = vmatpush1.bf16.msra.mxu0 %v1992
          %4096 = vmatprep.subr.bf16.mxu0 0
          %4097 = vmatpush1.bf16.msra.mxu0 %v1989
          %4098 = vmatprep.subr.bf16.mxu0 0
          %4099 = vmatpush1.bf16.msra.mxu0 %v1986
          %4100 = vmatprep.subr.bf16.mxu0 0
          %4101 = vmatpush1.bf16.msra.mxu0 %v1983
          %4102 = vmatprep.subr.bf16.mxu0 0
          %4103 = vmatpush1.bf16.msra.mxu0 %v1980
          %4104 = vmatprep.subr.bf16.mxu0 0
          %4105 = vmatpush1.bf16.msra.mxu0 %v1977
          %4106 = vmatprep.subr.bf16.mxu0 0
          %4107 = vmatpush1.bf16.msra.mxu0 %v1974
          %4108 = vmatprep.subr.bf16.mxu0 0
          %4109 = vmatpush1.bf16.msra.mxu0 %v1971
          %4110 = vmatprep.subr.bf16.mxu0 0
          %4111 = vmatpush2.bf16.msra.mxu0 0
          %4112 = vmatprep.subr.bf16.mxu0 0
          %4113 = vmatpush2.bf16.msra.mxu0 0
          %4114 = vmatprep.subr.bf16.mxu0 0
          %4115 = vmatpush2.bf16.msra.mxu0 0
          %4116 = vmatprep.subr.bf16.mxu0 0
          %4117 = vmatpush2.bf16.msra.mxu0 0
          %4118 = vmatprep.subr.bf16.mxu0 0
          %4119 = vmatpush2.bf16.msra.mxu0 0
          %4120 = vmatprep.subr.bf16.mxu0 0
          %4121 = vmatpush2.bf16.msra.mxu0 0
          %4122 = vmatprep.subr.bf16.mxu0 0
          %4123 = vmatpush2.bf16.msra.mxu0 0
          %4124 = vmatprep.subr.bf16.mxu0 0
          %4125 = vmatpush2.bf16.msra.mxu0 0
          %4126 = vmatprep.mubr.bf16.mxu0 0
          %4127 = vmatmul.mubr.bf16.gmra.mxu0 %v4017
          %v4128 = vpop.f32.mrf.mxu0
          %v4129 = vadd.f32 0.0, %v4128
          %v4130 = vpop.f32.mrf.mxu0
          %v4131 = vpop.f32.mrf.mxu0
          %v4132 = vadd.f32 0.0, %v4131
          %v4133 = vpop.f32.mrf.mxu0
          %4134 = vmatprep.mubr.bf16.mxu0 0
          %4135 = vmatmul.mubr.bf16.gmra.mxu0 %v4018
          %v4136 = vpop.f32.mrf.mxu0
          %v4137 = vadd.f32 0.0, %v4136
          %v4138 = vpop.f32.mrf.mxu0
          %v4139 = vpop.f32.mrf.mxu0
          %v4140 = vadd.f32 0.0, %v4139
          %v4141 = vpop.f32.mrf.mxu0
          %4142 = vmatprep.mubr.bf16.mxu0 0
          %4143 = vmatmul.mubr.bf16.gmra.mxu0 %v4019
          %v4144 = vpop.f32.mrf.mxu0
          %v4145 = vadd.f32 0.0, %v4144
          %v4146 = vpop.f32.mrf.mxu0
          %v4147 = vpop.f32.mrf.mxu0
          %v4148 = vadd.f32 0.0, %v4147
          %v4149 = vpop.f32.mrf.mxu0
          %4150 = vmatprep.mubr.bf16.mxu0 0
          %4151 = vmatmul.mubr.bf16.gmra.mxu0 %v4020
          %v4152 = vpop.f32.mrf.mxu0
          %v4153 = vadd.f32 0.0, %v4152
          %v4154 = vpop.f32.mrf.mxu0
          %v4155 = vpop.f32.mrf.mxu0
          %v4156 = vadd.f32 0.0, %v4155
          %v4157 = vpop.f32.mrf.mxu0
          %4158 = vdwg.mxu0
          %v4159 = vadd.f32 %v4129, %v1851
          %v4160 = vadd.f32 %v4132, %v1851
          %v4161 = vadd.f32 %v4137, %v1851
          %v4162 = vadd.f32 %v4140, %v1851
          %v4163 = vadd.f32 %v4145, %v1851
          %v4164 = vadd.f32 %v4148, %v1851
          %v4165 = vadd.f32 %v4153, %v1851
          %v4166 = vadd.f32 %v4156, %v1851
          %v4167 = vadd.f32 %v3993, %v4056
          %v4168 = vadd.f32 %v3996, %v4060
          %v4169 = vadd.f32 %v3999, %v4066
          %v4170 = vadd.f32 %v4002, %v4070
          %v4171 = vadd.f32 %v4005, %v4076
          %v4172 = vadd.f32 %v4008, %v4080
          %v4173 = vadd.f32 %v4011, %v4086
          %v4174 = vadd.f32 %v4014, %v4090
          %v4175 = vxor.u32 %v4167, 2147483648
          %v4176 = vxor.u32 %v4168, 2147483648
          %v4177 = vxor.u32 %v4169, 2147483648
          %v4178 = vxor.u32 %v4170, 2147483648
          %v4179 = vxor.u32 %v4171, 2147483648
          %v4180 = vxor.u32 %v4172, 2147483648
          %v4181 = vxor.u32 %v4173, 2147483648
          %v4182 = vxor.u32 %v4174, 2147483648
          %v4183 = vmul.f32 %v4175, 1.442695
          %v4184 = vpow.pop %v4183
          %v4185 = vmul.f32 %v4176, 1.442695
          %v4186 = vpow.pop %v4185
          %v4187 = vmul.f32 %v4177, 1.442695
          %v4188 = vpow.pop %v4187
          %v4189 = vmul.f32 %v4178, 1.442695
          %v4190 = vpow.pop %v4189
          %v4191 = vmul.f32 %v4179, 1.442695
          %v4192 = vpow.pop %v4191
          %v4193 = vmul.f32 %v4180, 1.442695
          %v4194 = vpow.pop %v4193
          %v4195 = vmul.f32 %v4181, 1.442695
          %v4196 = vpow.pop %v4195
          %v4197 = vmul.f32 %v4182, 1.442695
          %v4198 = vpow.pop %v4197
          %v4199 = vadd.f32 %v4184, 1.0
          %v4200 = vadd.f32 %v4186, 1.0
          %v4201 = vadd.f32 %v4188, 1.0
          %v4202 = vadd.f32 %v4190, 1.0
          %v4203 = vadd.f32 %v4192, 1.0
          %v4204 = vadd.f32 %v4194, 1.0
          %v4205 = vadd.f32 %v4196, 1.0
          %v4206 = vadd.f32 %v4198, 1.0
          %v4207 = vrcp.pop %v4199
          %v4208 = vmul.f32 1.0, %v4207
          %v4209 = vrcp.pop %v4200
          %v4210 = vmul.f32 1.0, %v4209
          %v4211 = vrcp.pop %v4201
          %v4212 = vmul.f32 1.0, %v4211
          %v4213 = vrcp.pop %v4202
          %v4214 = vmul.f32 1.0, %v4213
          %v4215 = vrcp.pop %v4203
          %v4216 = vmul.f32 1.0, %v4215
          %v4217 = vrcp.pop %v4204
          %v4218 = vmul.f32 1.0, %v4217
          %v4219 = vrcp.pop %v4205
          %v4220 = vmul.f32 1.0, %v4219
          %v4221 = vrcp.pop %v4206
          %v4222 = vmul.f32 1.0, %v4221
          %v4223 = vadd.f32 %v3994, %v4058
          %v4224 = vadd.f32 %v3997, %v4062
          %v4225 = vadd.f32 %v4000, %v4068
          %v4226 = vadd.f32 %v4003, %v4072
          %v4227 = vadd.f32 %v4006, %v4078
          %v4228 = vadd.f32 %v4009, %v4082
          %v4229 = vadd.f32 %v4012, %v4088
          %v4230 = vadd.f32 %v4015, %v4092
          %v4231 = vxor.u32 %v4223, 2147483648
          %v4232 = vxor.u32 %v4224, 2147483648
          %v4233 = vxor.u32 %v4225, 2147483648
          %v4234 = vxor.u32 %v4226, 2147483648
          %v4235 = vxor.u32 %v4227, 2147483648
          %v4236 = vxor.u32 %v4228, 2147483648
          %v4237 = vxor.u32 %v4229, 2147483648
          %v4238 = vxor.u32 %v4230, 2147483648
          %v4239 = vmul.f32 %v4231, 1.442695
          %v4240 = vpow.pop %v4239
          %v4241 = vmul.f32 %v4232, 1.442695
          %v4242 = vpow.pop %v4241
          %v4243 = vmul.f32 %v4233, 1.442695
          %v4244 = vpow.pop %v4243
          %v4245 = vmul.f32 %v4234, 1.442695
          %v4246 = vpow.pop %v4245
          %v4247 = vmul.f32 %v4235, 1.442695
          %v4248 = vpow.pop %v4247
          %v4249 = vmul.f32 %v4236, 1.442695
          %v4250 = vpow.pop %v4249
          %v4251 = vmul.f32 %v4237, 1.442695
          %v4252 = vpow.pop %v4251
          %v4253 = vmul.f32 %v4238, 1.442695
          %v4254 = vpow.pop %v4253
          %v4255 = vadd.f32 %v4240, 1.0
          %v4256 = vadd.f32 %v4242, 1.0
          %v4257 = vadd.f32 %v4244, 1.0
          %v4258 = vadd.f32 %v4246, 1.0
          %v4259 = vadd.f32 %v4248, 1.0
          %v4260 = vadd.f32 %v4250, 1.0
          %v4261 = vadd.f32 %v4252, 1.0
          %v4262 = vadd.f32 %v4254, 1.0
          %v4263 = vrcp.pop %v4255
          %v4264 = vmul.f32 1.0, %v4263
          %v4265 = vrcp.pop %v4256
          %v4266 = vmul.f32 1.0, %v4265
          %v4267 = vrcp.pop %v4257
          %v4268 = vmul.f32 1.0, %v4267
          %v4269 = vrcp.pop %v4258
          %v4270 = vmul.f32 1.0, %v4269
          %v4271 = vrcp.pop %v4259
          %v4272 = vmul.f32 1.0, %v4271
          %v4273 = vrcp.pop %v4260
          %v4274 = vmul.f32 1.0, %v4273
          %v4275 = vrcp.pop %v4261
          %v4276 = vmul.f32 1.0, %v4275
          %v4277 = vrcp.pop %v4262
          %v4278 = vmul.f32 1.0, %v4277
          %v4279 = vmul.f32 %v4208, %v4159
          %v4280 = vmul.f32 %v4210, %v4160
          %v4281 = vmul.f32 %v4212, %v4161
          %v4282 = vmul.f32 %v4214, %v4162
          %v4283 = vmul.f32 %v4216, %v4163
          %v4284 = vmul.f32 %v4218, %v4164
          %v4285 = vmul.f32 %v4220, %v4165
          %v4286 = vmul.f32 %v4222, %v4166
          %v4287 = vadd.f32 %v3995, %v4279
          %v4288 = vadd.f32 %v3998, %v4280
          %v4289 = vadd.f32 %v4001, %v4281
          %v4290 = vadd.f32 %v4004, %v4282
          %v4291 = vadd.f32 %v4007, %v4283
          %v4292 = vadd.f32 %v4010, %v4284
          %v4293 = vadd.f32 %v4013, %v4285
          %v4294 = vadd.f32 %v4016, %v4286
          %v4295 = vtanh.pop %v4287
          %v4296 = vtanh.pop %v4288
          %v4297 = vtanh.pop %v4289
          %v4298 = vtanh.pop %v4290
          %v4299 = vtanh.pop %v4291
          %v4300 = vtanh.pop %v4292
          %v4301 = vtanh.pop %v4293
          %v4302 = vtanh.pop %v4294
          %v4303 = vsub.f32 1.0, %v4264
          %v4304 = vsub.f32 1.0, %v4266
          %v4305 = vsub.f32 1.0, %v4268
          %v4306 = vsub.f32 1.0, %v4270
          %v4307 = vsub.f32 1.0, %v4272
          %v4308 = vsub.f32 1.0, %v4274
          %v4309 = vsub.f32 1.0, %v4276
          %v4310 = vsub.f32 1.0, %v4278
          %v4311 = vmul.f32 %v4303, %v4295
          %v4312 = vmul.f32 %v4304, %v4296
          %v4313 = vmul.f32 %v4305, %v4297
          %v4314 = vmul.f32 %v4306, %v4298
          %v4315 = vmul.f32 %v4307, %v4299
          %v4316 = vmul.f32 %v4308, %v4300
          %v4317 = vmul.f32 %v4309, %v4301
          %v4318 = vmul.f32 %v4310, %v4302
          %v4319 = vmul.f32 %v4264, %v3984
          %v4320 = vmul.f32 %v4266, %v3985
          %v4321 = vmul.f32 %v4268, %v3986
          %v4322 = vmul.f32 %v4270, %v3987
          %v4323 = vmul.f32 %v4272, %v3988
          %v4324 = vmul.f32 %v4274, %v3989
          %v4325 = vmul.f32 %v4276, %v3990
          %v4326 = vmul.f32 %v4278, %v3991
          %v4327 = vadd.f32 %v4311, %v4319
          %v4328 = vadd.f32 %v4312, %v4320
          %v4329 = vadd.f32 %v4313, %v4321
          %v4330 = vadd.f32 %v4314, %v4322
          %v4331 = vadd.f32 %v4315, %v4323
          %v4332 = vadd.f32 %v4316, %v4324
          %v4333 = vadd.f32 %v4317, %v4325
          %v4334 = vadd.f32 %v4318, %v4326
          %s4335 = sadd.s32 %s608, 5
          %v4336 = vstv %s4335
          %vm4337 = vcmp.gt.s32.totalorder %v1806, %v4336
          %vm4338 = vcmp.gt.s32.totalorder %v1807, %v4336
          %vm4339 = vcmp.gt.s32.totalorder %v1808, %v4336
          %vm4340 = vcmp.gt.s32.totalorder %v1809, %v4336
          %vm4341 = vcmp.gt.s32.totalorder %v1810, %v4336
          %vm4342 = vcmp.gt.s32.totalorder %v1811, %v4336
          %vm4343 = vcmp.gt.s32.totalorder %v1812, %v4336
          %vm4344 = vcmp.gt.s32.totalorder %v1813, %v4336
          %v4345 = vsel %vm4337, 1, 0
          %v4346 = vsel %vm4338, 1, 0
          %v4347 = vsel %vm4339, 1, 0
          %v4348 = vsel %vm4340, 1, 0
          %v4349 = vsel %vm4341, 1, 0
          %v4350 = vsel %vm4342, 1, 0
          %v4351 = vsel %vm4343, 1, 0
          %v4352 = vsel %vm4344, 1, 0
          %4353 = vset.pattern.permute.xlu0 0
          %4354 = vperm.xlu0 %4353, %v4345
          %v4355 = vpop.permute.xlu0 %4354
          %4356 = vset.pattern.permute.xlu0 0
          %4357 = vperm.xlu0 %4356, %v4346
          %v4358 = vpop.permute.xlu0 %4357
          %4359 = vset.pattern.permute.xlu0 0
          %4360 = vperm.xlu0 %4359, %v4347
          %v4361 = vpop.permute.xlu0 %4360
          %4362 = vset.pattern.permute.xlu0 0
          %4363 = vperm.xlu0 %4362, %v4348
          %v4364 = vpop.permute.xlu0 %4363
          %4365 = vset.pattern.permute.xlu0 0
          %4366 = vperm.xlu0 %4365, %v4349
          %v4367 = vpop.permute.xlu0 %4366
          %4368 = vset.pattern.permute.xlu0 0
          %4369 = vperm.xlu0 %4368, %v4350
          %v4370 = vpop.permute.xlu0 %4369
          %4371 = vset.pattern.permute.xlu0 0
          %4372 = vperm.xlu0 %4371, %v4351
          %v4373 = vpop.permute.xlu0 %4372
          %4374 = vset.pattern.permute.xlu0 0
          %4375 = vperm.xlu0 %4374, %v4352
          %v4376 = vpop.permute.xlu0 %4375
          %vm4377 = vcmp.eq.s32.totalorder %v4355, 1
          %vm4378 = vcmp.eq.s32.totalorder %v4358, 1
          %vm4379 = vcmp.eq.s32.totalorder %v4361, 1
          %vm4380 = vcmp.eq.s32.totalorder %v4364, 1
          %vm4381 = vcmp.eq.s32.totalorder %v4367, 1
          %vm4382 = vcmp.eq.s32.totalorder %v4370, 1
          %vm4383 = vcmp.eq.s32.totalorder %v4373, 1
          %vm4384 = vcmp.eq.s32.totalorder %v4376, 1
          %v4385 = vsel %vm4377, %v4327, %v3984
          %v4386 = vsel %vm4378, %v4328, %v3985
          %v4387 = vsel %vm4379, %v4329, %v3986
          %v4388 = vsel %vm4380, %v4330, %v3987
          %v4389 = vsel %vm4381, %v4331, %v3988
          %v4390 = vsel %vm4382, %v4332, %v3989
          %v4391 = vsel %vm4383, %v4333, %v3990
          %v4392 = vsel %vm4384, %v4334, %v3991
          %s4393 = scalar_lea.vmem [#allocation2], 1152
          %v4394 = vld [vmem:[%s4393] sm:$0xff]
          %v4395 = vld [vmem:[%s4393 + $0x8] sm:$0xff]
          %v4396 = vld [vmem:[%s4393 + $0x10] sm:$0xff]
          %v4397 = vld [vmem:[%s4393 + $0x18] sm:$0xff]
          %v4398 = vld [vmem:[%s4393 + $0x20] sm:$0xff]
          %v4399 = vld [vmem:[%s4393 + $0x28] sm:$0xff]
          %v4400 = vld [vmem:[%s4393 + $0x30] sm:$0xff]
          %v4401 = vld [vmem:[%s4393 + $0x38] sm:$0xff]
          %v4402 = vld [vmem:[%s4393 + $0x40] sm:$0xff]
          %v4403 = vld [vmem:[%s4393 + $0x48] sm:$0xff]
          %v4404 = vld [vmem:[%s4393 + $0x50] sm:$0xff]
          %v4405 = vld [vmem:[%s4393 + $0x58] sm:$0xff]
          %v4406 = vld [vmem:[%s4393 + $0x60] sm:$0xff]
          %v4407 = vld [vmem:[%s4393 + $0x68] sm:$0xff]
          %v4408 = vld [vmem:[%s4393 + $0x70] sm:$0xff]
          %v4409 = vld [vmem:[%s4393 + $0x78] sm:$0xff]
          %v4410 = vld [vmem:[%s4393 + $0x80] sm:$0xff]
          %v4411 = vld [vmem:[%s4393 + $0x88] sm:$0xff]
          %v4412 = vld [vmem:[%s4393 + $0x90] sm:$0xff]
          %v4413 = vld [vmem:[%s4393 + $0x98] sm:$0xff]
          %v4414 = vld [vmem:[%s4393 + $0xa0] sm:$0xff]
          %v4415 = vld [vmem:[%s4393 + $0xa8] sm:$0xff]
          %v4416 = vld [vmem:[%s4393 + $0xb0] sm:$0xff]
          %v4417 = vld [vmem:[%s4393 + $0xb8] sm:$0xff]
          %v4418 = vpack.c.bf16 %v4386, %v4385
          %v4419 = vpack.c.bf16 %v4388, %v4387
          %v4420 = vpack.c.bf16 %v4390, %v4389
          %v4421 = vpack.c.bf16 %v4392, %v4391
          %4422 = vmatprep.subr.bf16.mxu0 %v1991
          %4423 = vmatpush1.bf16.msra.mxu0 %v1990
          %4424 = vmatprep.subr.bf16.mxu0 %v1988
          %4425 = vmatpush1.bf16.msra.mxu0 %v1987
          %4426 = vmatprep.subr.bf16.mxu0 %v1985
          %4427 = vmatpush1.bf16.msra.mxu0 %v1984
          %4428 = vmatprep.subr.bf16.mxu0 %v1982
          %4429 = vmatpush1.bf16.msra.mxu0 %v1981
          %4430 = vmatprep.subr.bf16.mxu0 %v1979
          %4431 = vmatpush1.bf16.msra.mxu0 %v1978
          %4432 = vmatprep.subr.bf16.mxu0 %v1976
          %4433 = vmatpush1.bf16.msra.mxu0 %v1975
          %4434 = vmatprep.subr.bf16.mxu0 %v1973
          %4435 = vmatpush1.bf16.msra.mxu0 %v1972
          %4436 = vmatprep.subr.bf16.mxu0 %v1970
          %4437 = vmatpush1.bf16.msra.mxu0 %v1969
          %4438 = vmatprep.subr.bf16.mxu0 0
          %4439 = vmatpush2.bf16.msra.mxu0 0
          %4440 = vmatprep.subr.bf16.mxu0 0
          %4441 = vmatpush2.bf16.msra.mxu0 0
          %4442 = vmatprep.subr.bf16.mxu0 0
          %4443 = vmatpush2.bf16.msra.mxu0 0
          %4444 = vmatprep.subr.bf16.mxu0 0
          %4445 = vmatpush2.bf16.msra.mxu0 0
          %4446 = vmatprep.subr.bf16.mxu0 0
          %4447 = vmatpush2.bf16.msra.mxu0 0
          %4448 = vmatprep.subr.bf16.mxu0 0
          %4449 = vmatpush2.bf16.msra.mxu0 0
          %4450 = vmatprep.subr.bf16.mxu0 0
          %4451 = vmatpush2.bf16.msra.mxu0 0
          %4452 = vmatprep.subr.bf16.mxu0 0
          %4453 = vmatpush2.bf16.msra.mxu0 0
          %4454 = vmatprep.mubr.bf16.mxu0 0
          %4455 = vmatmul.mubr.bf16.gmra.mxu0 %v4418
          %v4456 = vpop.f32.mrf.mxu0
          %v4457 = vadd.f32 0.0, %v4456
          %v4458 = vpop.f32.mrf.mxu0
          %v4459 = vadd.f32 0.0, %v4458
          %v4460 = vpop.f32.mrf.mxu0
          %v4461 = vadd.f32 0.0, %v4460
          %v4462 = vpop.f32.mrf.mxu0
          %v4463 = vadd.f32 0.0, %v4462
          %4464 = vmatprep.mubr.bf16.mxu0 0
          %4465 = vmatmul.mubr.bf16.gmra.mxu0 %v4419
          %v4466 = vpop.f32.mrf.mxu0
          %v4467 = vadd.f32 0.0, %v4466
          %v4468 = vpop.f32.mrf.mxu0
          %v4469 = vadd.f32 0.0, %v4468
          %v4470 = vpop.f32.mrf.mxu0
          %v4471 = vadd.f32 0.0, %v4470
          %v4472 = vpop.f32.mrf.mxu0
          %v4473 = vadd.f32 0.0, %v4472
          %4474 = vmatprep.mubr.bf16.mxu0 0
          %4475 = vmatmul.mubr.bf16.gmra.mxu0 %v4420
          %v4476 = vpop.f32.mrf.mxu0
          %v4477 = vadd.f32 0.0, %v4476
          %v4478 = vpop.f32.mrf.mxu0
          %v4479 = vadd.f32 0.0, %v4478
          %v4480 = vpop.f32.mrf.mxu0
          %v4481 = vadd.f32 0.0, %v4480
          %v4482 = vpop.f32.mrf.mxu0
          %v4483 = vadd.f32 0.0, %v4482
          %4484 = vmatprep.mubr.bf16.mxu0 0
          %4485 = vmatmul.mubr.bf16.gmra.mxu0 %v4421
          %v4486 = vpop.f32.mrf.mxu0
          %v4487 = vadd.f32 0.0, %v4486
          %v4488 = vpop.f32.mrf.mxu0
          %v4489 = vadd.f32 0.0, %v4488
          %v4490 = vpop.f32.mrf.mxu0
          %v4491 = vadd.f32 0.0, %v4490
          %v4492 = vpop.f32.mrf.mxu0
          %v4493 = vadd.f32 0.0, %v4492
          %4494 = vdwg.mxu0
          %4495 = vmatprep.subr.bf16.mxu0 0
          %4496 = vmatpush1.bf16.msra.mxu0 %v1992
          %4497 = vmatprep.subr.bf16.mxu0 0
          %4498 = vmatpush1.bf16.msra.mxu0 %v1989
          %4499 = vmatprep.subr.bf16.mxu0 0
          %4500 = vmatpush1.bf16.msra.mxu0 %v1986
          %4501 = vmatprep.subr.bf16.mxu0 0
          %4502 = vmatpush1.bf16.msra.mxu0 %v1983
          %4503 = vmatprep.subr.bf16.mxu0 0
          %4504 = vmatpush1.bf16.msra.mxu0 %v1980
          %4505 = vmatprep.subr.bf16.mxu0 0
          %4506 = vmatpush1.bf16.msra.mxu0 %v1977
          %4507 = vmatprep.subr.bf16.mxu0 0
          %4508 = vmatpush1.bf16.msra.mxu0 %v1974
          %4509 = vmatprep.subr.bf16.mxu0 0
          %4510 = vmatpush1.bf16.msra.mxu0 %v1971
          %4511 = vmatprep.subr.bf16.mxu0 0
          %4512 = vmatpush2.bf16.msra.mxu0 0
          %4513 = vmatprep.subr.bf16.mxu0 0
          %4514 = vmatpush2.bf16.msra.mxu0 0
          %4515 = vmatprep.subr.bf16.mxu0 0
          %4516 = vmatpush2.bf16.msra.mxu0 0
          %4517 = vmatprep.subr.bf16.mxu0 0
          %4518 = vmatpush2.bf16.msra.mxu0 0
          %4519 = vmatprep.subr.bf16.mxu0 0
          %4520 = vmatpush2.bf16.msra.mxu0 0
          %4521 = vmatprep.subr.bf16.mxu0 0
          %4522 = vmatpush2.bf16.msra.mxu0 0
          %4523 = vmatprep.subr.bf16.mxu0 0
          %4524 = vmatpush2.bf16.msra.mxu0 0
          %4525 = vmatprep.subr.bf16.mxu0 0
          %4526 = vmatpush2.bf16.msra.mxu0 0
          %4527 = vmatprep.mubr.bf16.mxu0 0
          %4528 = vmatmul.mubr.bf16.gmra.mxu0 %v4418
          %v4529 = vpop.f32.mrf.mxu0
          %v4530 = vadd.f32 0.0, %v4529
          %v4531 = vpop.f32.mrf.mxu0
          %v4532 = vpop.f32.mrf.mxu0
          %v4533 = vadd.f32 0.0, %v4532
          %v4534 = vpop.f32.mrf.mxu0
          %4535 = vmatprep.mubr.bf16.mxu0 0
          %4536 = vmatmul.mubr.bf16.gmra.mxu0 %v4419
          %v4537 = vpop.f32.mrf.mxu0
          %v4538 = vadd.f32 0.0, %v4537
          %v4539 = vpop.f32.mrf.mxu0
          %v4540 = vpop.f32.mrf.mxu0
          %v4541 = vadd.f32 0.0, %v4540
          %v4542 = vpop.f32.mrf.mxu0
          %4543 = vmatprep.mubr.bf16.mxu0 0
          %4544 = vmatmul.mubr.bf16.gmra.mxu0 %v4420
          %v4545 = vpop.f32.mrf.mxu0
          %v4546 = vadd.f32 0.0, %v4545
          %v4547 = vpop.f32.mrf.mxu0
          %v4548 = vpop.f32.mrf.mxu0
          %v4549 = vadd.f32 0.0, %v4548
          %v4550 = vpop.f32.mrf.mxu0
          %4551 = vmatprep.mubr.bf16.mxu0 0
          %4552 = vmatmul.mubr.bf16.gmra.mxu0 %v4421
          %v4553 = vpop.f32.mrf.mxu0
          %v4554 = vadd.f32 0.0, %v4553
          %v4555 = vpop.f32.mrf.mxu0
          %v4556 = vpop.f32.mrf.mxu0
          %v4557 = vadd.f32 0.0, %v4556
          %v4558 = vpop.f32.mrf.mxu0
          %4559 = vdwg.mxu0
          %v4560 = vadd.f32 %v4530, %v1851
          %v4561 = vadd.f32 %v4533, %v1851
          %v4562 = vadd.f32 %v4538, %v1851
          %v4563 = vadd.f32 %v4541, %v1851
          %v4564 = vadd.f32 %v4546, %v1851
          %v4565 = vadd.f32 %v4549, %v1851
          %v4566 = vadd.f32 %v4554, %v1851
          %v4567 = vadd.f32 %v4557, %v1851
          %v4568 = vadd.f32 %v4394, %v4457
          %v4569 = vadd.f32 %v4397, %v4461
          %v4570 = vadd.f32 %v4400, %v4467
          %v4571 = vadd.f32 %v4403, %v4471
          %v4572 = vadd.f32 %v4406, %v4477
          %v4573 = vadd.f32 %v4409, %v4481
          %v4574 = vadd.f32 %v4412, %v4487
          %v4575 = vadd.f32 %v4415, %v4491
          %v4576 = vxor.u32 %v4568, 2147483648
          %v4577 = vxor.u32 %v4569, 2147483648
          %v4578 = vxor.u32 %v4570, 2147483648
          %v4579 = vxor.u32 %v4571, 2147483648
          %v4580 = vxor.u32 %v4572, 2147483648
          %v4581 = vxor.u32 %v4573, 2147483648
          %v4582 = vxor.u32 %v4574, 2147483648
          %v4583 = vxor.u32 %v4575, 2147483648
          %v4584 = vmul.f32 %v4576, 1.442695
          %v4585 = vpow.pop %v4584
          %v4586 = vmul.f32 %v4577, 1.442695
          %v4587 = vpow.pop %v4586
          %v4588 = vmul.f32 %v4578, 1.442695
          %v4589 = vpow.pop %v4588
          %v4590 = vmul.f32 %v4579, 1.442695
          %v4591 = vpow.pop %v4590
          %v4592 = vmul.f32 %v4580, 1.442695
          %v4593 = vpow.pop %v4592
          %v4594 = vmul.f32 %v4581, 1.442695
          %v4595 = vpow.pop %v4594
          %v4596 = vmul.f32 %v4582, 1.442695
          %v4597 = vpow.pop %v4596
          %v4598 = vmul.f32 %v4583, 1.442695
          %v4599 = vpow.pop %v4598
          %v4600 = vadd.f32 %v4585, 1.0
          %v4601 = vadd.f32 %v4587, 1.0
          %v4602 = vadd.f32 %v4589, 1.0
          %v4603 = vadd.f32 %v4591, 1.0
          %v4604 = vadd.f32 %v4593, 1.0
          %v4605 = vadd.f32 %v4595, 1.0
          %v4606 = vadd.f32 %v4597, 1.0
          %v4607 = vadd.f32 %v4599, 1.0
          %v4608 = vrcp.pop %v4600
          %v4609 = vmul.f32 1.0, %v4608
          %v4610 = vrcp.pop %v4601
          %v4611 = vmul.f32 1.0, %v4610
          %v4612 = vrcp.pop %v4602
          %v4613 = vmul.f32 1.0, %v4612
          %v4614 = vrcp.pop %v4603
          %v4615 = vmul.f32 1.0, %v4614
          %v4616 = vrcp.pop %v4604
          %v4617 = vmul.f32 1.0, %v4616
          %v4618 = vrcp.pop %v4605
          %v4619 = vmul.f32 1.0, %v4618
          %v4620 = vrcp.pop %v4606
          %v4621 = vmul.f32 1.0, %v4620
          %v4622 = vrcp.pop %v4607
          %v4623 = vmul.f32 1.0, %v4622
          %v4624 = vadd.f32 %v4395, %v4459
          %v4625 = vadd.f32 %v4398, %v4463
          %v4626 = vadd.f32 %v4401, %v4469
          %v4627 = vadd.f32 %v4404, %v4473
          %v4628 = vadd.f32 %v4407, %v4479
          %v4629 = vadd.f32 %v4410, %v4483
          %v4630 = vadd.f32 %v4413, %v4489
          %v4631 = vadd.f32 %v4416, %v4493
          %v4632 = vxor.u32 %v4624, 2147483648
          %v4633 = vxor.u32 %v4625, 2147483648
          %v4634 = vxor.u32 %v4626, 2147483648
          %v4635 = vxor.u32 %v4627, 2147483648
          %v4636 = vxor.u32 %v4628, 2147483648
          %v4637 = vxor.u32 %v4629, 2147483648
          %v4638 = vxor.u32 %v4630, 2147483648
          %v4639 = vxor.u32 %v4631, 2147483648
          %v4640 = vmul.f32 %v4632, 1.442695
          %v4641 = vpow.pop %v4640
          %v4642 = vmul.f32 %v4633, 1.442695
          %v4643 = vpow.pop %v4642
          %v4644 = vmul.f32 %v4634, 1.442695
          %v4645 = vpow.pop %v4644
          %v4646 = vmul.f32 %v4635, 1.442695
          %v4647 = vpow.pop %v4646
          %v4648 = vmul.f32 %v4636, 1.442695
          %v4649 = vpow.pop %v4648
          %v4650 = vmul.f32 %v4637, 1.442695
          %v4651 = vpow.pop %v4650
          %v4652 = vmul.f32 %v4638, 1.442695
          %v4653 = vpow.pop %v4652
          %v4654 = vmul.f32 %v4639, 1.442695
          %v4655 = vpow.pop %v4654
          %v4656 = vadd.f32 %v4641, 1.0
          %v4657 = vadd.f32 %v4643, 1.0
          %v4658 = vadd.f32 %v4645, 1.0
          %v4659 = vadd.f32 %v4647, 1.0
          %v4660 = vadd.f32 %v4649, 1.0
          %v4661 = vadd.f32 %v4651, 1.0
          %v4662 = vadd.f32 %v4653, 1.0
          %v4663 = vadd.f32 %v4655, 1.0
          %v4664 = vrcp.pop %v4656
          %v4665 = vmul.f32 1.0, %v4664
          %v4666 = vrcp.pop %v4657
          %v4667 = vmul.f32 1.0, %v4666
          %v4668 = vrcp.pop %v4658
          %v4669 = vmul.f32 1.0, %v4668
          %v4670 = vrcp.pop %v4659
          %v4671 = vmul.f32 1.0, %v4670
          %v4672 = vrcp.pop %v4660
          %v4673 = vmul.f32 1.0, %v4672
          %v4674 = vrcp.pop %v4661
          %v4675 = vmul.f32 1.0, %v4674
          %v4676 = vrcp.pop %v4662
          %v4677 = vmul.f32 1.0, %v4676
          %v4678 = vrcp.pop %v4663
          %v4679 = vmul.f32 1.0, %v4678
          %v4680 = vmul.f32 %v4609, %v4560
          %v4681 = vmul.f32 %v4611, %v4561
          %v4682 = vmul.f32 %v4613, %v4562
          %v4683 = vmul.f32 %v4615, %v4563
          %v4684 = vmul.f32 %v4617, %v4564
          %v4685 = vmul.f32 %v4619, %v4565
          %v4686 = vmul.f32 %v4621, %v4566
          %v4687 = vmul.f32 %v4623, %v4567
          %v4688 = vadd.f32 %v4396, %v4680
          %v4689 = vadd.f32 %v4399, %v4681
          %v4690 = vadd.f32 %v4402, %v4682
          %v4691 = vadd.f32 %v4405, %v4683
          %v4692 = vadd.f32 %v4408, %v4684
          %v4693 = vadd.f32 %v4411, %v4685
          %v4694 = vadd.f32 %v4414, %v4686
          %v4695 = vadd.f32 %v4417, %v4687
          %v4696 = vtanh.pop %v4688
          %v4697 = vtanh.pop %v4689
          %v4698 = vtanh.pop %v4690
          %v4699 = vtanh.pop %v4691
          %v4700 = vtanh.pop %v4692
          %v4701 = vtanh.pop %v4693
          %v4702 = vtanh.pop %v4694
          %v4703 = vtanh.pop %v4695
          %v4704 = vsub.f32 1.0, %v4665
          %v4705 = vsub.f32 1.0, %v4667
          %v4706 = vsub.f32 1.0, %v4669
          %v4707 = vsub.f32 1.0, %v4671
          %v4708 = vsub.f32 1.0, %v4673
          %v4709 = vsub.f32 1.0, %v4675
          %v4710 = vsub.f32 1.0, %v4677
          %v4711 = vsub.f32 1.0, %v4679
          %v4712 = vmul.f32 %v4704, %v4696
          %v4713 = vmul.f32 %v4705, %v4697
          %v4714 = vmul.f32 %v4706, %v4698
          %v4715 = vmul.f32 %v4707, %v4699
          %v4716 = vmul.f32 %v4708, %v4700
          %v4717 = vmul.f32 %v4709, %v4701
          %v4718 = vmul.f32 %v4710, %v4702
          %v4719 = vmul.f32 %v4711, %v4703
          %v4720 = vmul.f32 %v4665, %v4385
          %v4721 = vmul.f32 %v4667, %v4386
          %v4722 = vmul.f32 %v4669, %v4387
          %v4723 = vmul.f32 %v4671, %v4388
          %v4724 = vmul.f32 %v4673, %v4389
          %v4725 = vmul.f32 %v4675, %v4390
          %v4726 = vmul.f32 %v4677, %v4391
          %v4727 = vmul.f32 %v4679, %v4392
          %v4728 = vadd.f32 %v4712, %v4720
          %v4729 = vadd.f32 %v4713, %v4721
          %v4730 = vadd.f32 %v4714, %v4722
          %v4731 = vadd.f32 %v4715, %v4723
          %v4732 = vadd.f32 %v4716, %v4724
          %v4733 = vadd.f32 %v4717, %v4725
          %v4734 = vadd.f32 %v4718, %v4726
          %v4735 = vadd.f32 %v4719, %v4727
          %s4736 = sadd.s32 %s608, 6
          %v4737 = vstv %s4736
          %vm4738 = vcmp.gt.s32.totalorder %v1806, %v4737
          %vm4739 = vcmp.gt.s32.totalorder %v1807, %v4737
          %vm4740 = vcmp.gt.s32.totalorder %v1808, %v4737
          %vm4741 = vcmp.gt.s32.totalorder %v1809, %v4737
          %vm4742 = vcmp.gt.s32.totalorder %v1810, %v4737
          %vm4743 = vcmp.gt.s32.totalorder %v1811, %v4737
          %vm4744 = vcmp.gt.s32.totalorder %v1812, %v4737
          %vm4745 = vcmp.gt.s32.totalorder %v1813, %v4737
          %v4746 = vsel %vm4738, 1, 0
          %v4747 = vsel %vm4739, 1, 0
          %v4748 = vsel %vm4740, 1, 0
          %v4749 = vsel %vm4741, 1, 0
          %v4750 = vsel %vm4742, 1, 0
          %v4751 = vsel %vm4743, 1, 0
          %v4752 = vsel %vm4744, 1, 0
          %v4753 = vsel %vm4745, 1, 0
          %4754 = vset.pattern.permute.xlu0 0
          %4755 = vperm.xlu0 %4754, %v4746
          %v4756 = vpop.permute.xlu0 %4755
          %4757 = vset.pattern.permute.xlu0 0
          %4758 = vperm.xlu0 %4757, %v4747
          %v4759 = vpop.permute.xlu0 %4758
          %4760 = vset.pattern.permute.xlu0 0
          %4761 = vperm.xlu0 %4760, %v4748
          %v4762 = vpop.permute.xlu0 %4761
          %4763 = vset.pattern.permute.xlu0 0
          %4764 = vperm.xlu0 %4763, %v4749
          %v4765 = vpop.permute.xlu0 %4764
          %4766 = vset.pattern.permute.xlu0 0
          %4767 = vperm.xlu0 %4766, %v4750
          %v4768 = vpop.permute.xlu0 %4767
          %4769 = vset.pattern.permute.xlu0 0
          %4770 = vperm.xlu0 %4769, %v4751
          %v4771 = vpop.permute.xlu0 %4770
          %4772 = vset.pattern.permute.xlu0 0
          %4773 = vperm.xlu0 %4772, %v4752
          %v4774 = vpop.permute.xlu0 %4773
          %4775 = vset.pattern.permute.xlu0 0
          %4776 = vperm.xlu0 %4775, %v4753
          %v4777 = vpop.permute.xlu0 %4776
          %vm4778 = vcmp.eq.s32.totalorder %v4756, 1
          %vm4779 = vcmp.eq.s32.totalorder %v4759, 1
          %vm4780 = vcmp.eq.s32.totalorder %v4762, 1
          %vm4781 = vcmp.eq.s32.totalorder %v4765, 1
          %vm4782 = vcmp.eq.s32.totalorder %v4768, 1
          %vm4783 = vcmp.eq.s32.totalorder %v4771, 1
          %vm4784 = vcmp.eq.s32.totalorder %v4774, 1
          %vm4785 = vcmp.eq.s32.totalorder %v4777, 1
          %v4786 = vsel %vm4778, %v4728, %v4385
          %v4787 = vsel %vm4779, %v4729, %v4386
          %v4788 = vsel %vm4780, %v4730, %v4387
          %v4789 = vsel %vm4781, %v4731, %v4388
          %v4790 = vsel %vm4782, %v4732, %v4389
          %v4791 = vsel %vm4783, %v4733, %v4390
          %v4792 = vsel %vm4784, %v4734, %v4391
          %v4793 = vsel %vm4785, %v4735, %v4392
          %s4794 = scalar_lea.vmem [#allocation2], 1344
          %v4795 = vld [vmem:[%s4794] sm:$0xff]
          %v4796 = vld [vmem:[%s4794 + $0x8] sm:$0xff]
          %v4797 = vld [vmem:[%s4794 + $0x10] sm:$0xff]
          %v4798 = vld [vmem:[%s4794 + $0x18] sm:$0xff]
          %v4799 = vld [vmem:[%s4794 + $0x20] sm:$0xff]
          %v4800 = vld [vmem:[%s4794 + $0x28] sm:$0xff]
          %v4801 = vld [vmem:[%s4794 + $0x30] sm:$0xff]
          %v4802 = vld [vmem:[%s4794 + $0x38] sm:$0xff]
          %v4803 = vld [vmem:[%s4794 + $0x40] sm:$0xff]
          %v4804 = vld [vmem:[%s4794 + $0x48] sm:$0xff]
          %v4805 = vld [vmem:[%s4794 + $0x50] sm:$0xff]
          %v4806 = vld [vmem:[%s4794 + $0x58] sm:$0xff]
          %v4807 = vld [vmem:[%s4794 + $0x60] sm:$0xff]
          %v4808 = vld [vmem:[%s4794 + $0x68] sm:$0xff]
          %v4809 = vld [vmem:[%s4794 + $0x70] sm:$0xff]
          %v4810 = vld [vmem:[%s4794 + $0x78] sm:$0xff]
          %v4811 = vld [vmem:[%s4794 + $0x80] sm:$0xff]
          %v4812 = vld [vmem:[%s4794 + $0x88] sm:$0xff]
          %v4813 = vld [vmem:[%s4794 + $0x90] sm:$0xff]
          %v4814 = vld [vmem:[%s4794 + $0x98] sm:$0xff]
          %v4815 = vld [vmem:[%s4794 + $0xa0] sm:$0xff]
          %v4816 = vld [vmem:[%s4794 + $0xa8] sm:$0xff]
          %v4817 = vld [vmem:[%s4794 + $0xb0] sm:$0xff]
          %v4818 = vld [vmem:[%s4794 + $0xb8] sm:$0xff]
          %v4819 = vpack.c.bf16 %v4787, %v4786
          %v4820 = vpack.c.bf16 %v4789, %v4788
          %v4821 = vpack.c.bf16 %v4791, %v4790
          %v4822 = vpack.c.bf16 %v4793, %v4792
          %4823 = vmatprep.subr.bf16.mxu0 %v1991
          %4824 = vmatpush1.bf16.msra.mxu0 %v1990
          %4825 = vmatprep.subr.bf16.mxu0 %v1988
          %4826 = vmatpush1.bf16.msra.mxu0 %v1987
          %4827 = vmatprep.subr.bf16.mxu0 %v1985
          %4828 = vmatpush1.bf16.msra.mxu0 %v1984
          %4829 = vmatprep.subr.bf16.mxu0 %v1982
          %4830 = vmatpush1.bf16.msra.mxu0 %v1981
          %4831 = vmatprep.subr.bf16.mxu0 %v1979
          %4832 = vmatpush1.bf16.msra.mxu0 %v1978
          %4833 = vmatprep.subr.bf16.mxu0 %v1976
          %4834 = vmatpush1.bf16.msra.mxu0 %v1975
          %4835 = vmatprep.subr.bf16.mxu0 %v1973
          %4836 = vmatpush1.bf16.msra.mxu0 %v1972
          %4837 = vmatprep.subr.bf16.mxu0 %v1970
          %4838 = vmatpush1.bf16.msra.mxu0 %v1969
          %4839 = vmatprep.subr.bf16.mxu0 0
          %4840 = vmatpush2.bf16.msra.mxu0 0
          %4841 = vmatprep.subr.bf16.mxu0 0
          %4842 = vmatpush2.bf16.msra.mxu0 0
          %4843 = vmatprep.subr.bf16.mxu0 0
          %4844 = vmatpush2.bf16.msra.mxu0 0
          %4845 = vmatprep.subr.bf16.mxu0 0
          %4846 = vmatpush2.bf16.msra.mxu0 0
          %4847 = vmatprep.subr.bf16.mxu0 0
          %4848 = vmatpush2.bf16.msra.mxu0 0
          %4849 = vmatprep.subr.bf16.mxu0 0
          %4850 = vmatpush2.bf16.msra.mxu0 0
          %4851 = vmatprep.subr.bf16.mxu0 0
          %4852 = vmatpush2.bf16.msra.mxu0 0
          %4853 = vmatprep.subr.bf16.mxu0 0
          %4854 = vmatpush2.bf16.msra.mxu0 0
          %4855 = vmatprep.mubr.bf16.mxu0 0
          %4856 = vmatmul.mubr.bf16.gmra.mxu0 %v4819
          %v4857 = vpop.f32.mrf.mxu0
          %v4858 = vadd.f32 0.0, %v4857
          %v4859 = vpop.f32.mrf.mxu0
          %v4860 = vadd.f32 0.0, %v4859
          %v4861 = vpop.f32.mrf.mxu0
          %v4862 = vadd.f32 0.0, %v4861
          %v4863 = vpop.f32.mrf.mxu0
          %v4864 = vadd.f32 0.0, %v4863
          %4865 = vmatprep.mubr.bf16.mxu0 0
          %4866 = vmatmul.mubr.bf16.gmra.mxu0 %v4820
          %v4867 = vpop.f32.mrf.mxu0
          %v4868 = vadd.f32 0.0, %v4867
          %v4869 = vpop.f32.mrf.mxu0
          %v4870 = vadd.f32 0.0, %v4869
          %v4871 = vpop.f32.mrf.mxu0
          %v4872 = vadd.f32 0.0, %v4871
          %v4873 = vpop.f32.mrf.mxu0
          %v4874 = vadd.f32 0.0, %v4873
          %4875 = vmatprep.mubr.bf16.mxu0 0
          %4876 = vmatmul.mubr.bf16.gmra.mxu0 %v4821
          %v4877 = vpop.f32.mrf.mxu0
          %v4878 = vadd.f32 0.0, %v4877
          %v4879 = vpop.f32.mrf.mxu0
          %v4880 = vadd.f32 0.0, %v4879
          %v4881 = vpop.f32.mrf.mxu0
          %v4882 = vadd.f32 0.0, %v4881
          %v4883 = vpop.f32.mrf.mxu0
          %v4884 = vadd.f32 0.0, %v4883
          %4885 = vmatprep.mubr.bf16.mxu0 0
          %4886 = vmatmul.mubr.bf16.gmra.mxu0 %v4822
          %v4887 = vpop.f32.mrf.mxu0
          %v4888 = vadd.f32 0.0, %v4887
          %v4889 = vpop.f32.mrf.mxu0
          %v4890 = vadd.f32 0.0, %v4889
          %v4891 = vpop.f32.mrf.mxu0
          %v4892 = vadd.f32 0.0, %v4891
          %v4893 = vpop.f32.mrf.mxu0
          %v4894 = vadd.f32 0.0, %v4893
          %4895 = vdwg.mxu0
          %4896 = vmatprep.subr.bf16.mxu0 0
          %4897 = vmatpush1.bf16.msra.mxu0 %v1992
          %4898 = vmatprep.subr.bf16.mxu0 0
          %4899 = vmatpush1.bf16.msra.mxu0 %v1989
          %4900 = vmatprep.subr.bf16.mxu0 0
          %4901 = vmatpush1.bf16.msra.mxu0 %v1986
          %4902 = vmatprep.subr.bf16.mxu0 0
          %4903 = vmatpush1.bf16.msra.mxu0 %v1983
          %4904 = vmatprep.subr.bf16.mxu0 0
          %4905 = vmatpush1.bf16.msra.mxu0 %v1980
          %4906 = vmatprep.subr.bf16.mxu0 0
          %4907 = vmatpush1.bf16.msra.mxu0 %v1977
          %4908 = vmatprep.subr.bf16.mxu0 0
          %4909 = vmatpush1.bf16.msra.mxu0 %v1974
          %4910 = vmatprep.subr.bf16.mxu0 0
          %4911 = vmatpush1.bf16.msra.mxu0 %v1971
          %4912 = vmatprep.subr.bf16.mxu0 0
          %4913 = vmatpush2.bf16.msra.mxu0 0
          %4914 = vmatprep.subr.bf16.mxu0 0
          %4915 = vmatpush2.bf16.msra.mxu0 0
          %4916 = vmatprep.subr.bf16.mxu0 0
          %4917 = vmatpush2.bf16.msra.mxu0 0
          %4918 = vmatprep.subr.bf16.mxu0 0
          %4919 = vmatpush2.bf16.msra.mxu0 0
          %4920 = vmatprep.subr.bf16.mxu0 0
          %4921 = vmatpush2.bf16.msra.mxu0 0
          %4922 = vmatprep.subr.bf16.mxu0 0
          %4923 = vmatpush2.bf16.msra.mxu0 0
          %4924 = vmatprep.subr.bf16.mxu0 0
          %4925 = vmatpush2.bf16.msra.mxu0 0
          %4926 = vmatprep.subr.bf16.mxu0 0
          %4927 = vmatpush2.bf16.msra.mxu0 0
          %4928 = vmatprep.mubr.bf16.mxu0 0
          %4929 = vmatmul.mubr.bf16.gmra.mxu0 %v4819
          %v4930 = vpop.f32.mrf.mxu0
          %v4931 = vadd.f32 0.0, %v4930
          %v4932 = vpop.f32.mrf.mxu0
          %v4933 = vpop.f32.mrf.mxu0
          %v4934 = vadd.f32 0.0, %v4933
          %v4935 = vpop.f32.mrf.mxu0
          %4936 = vmatprep.mubr.bf16.mxu0 0
          %4937 = vmatmul.mubr.bf16.gmra.mxu0 %v4820
          %v4938 = vpop.f32.mrf.mxu0
          %v4939 = vadd.f32 0.0, %v4938
          %v4940 = vpop.f32.mrf.mxu0
          %v4941 = vpop.f32.mrf.mxu0
          %v4942 = vadd.f32 0.0, %v4941
          %v4943 = vpop.f32.mrf.mxu0
          %4944 = vmatprep.mubr.bf16.mxu0 0
          %4945 = vmatmul.mubr.bf16.gmra.mxu0 %v4821
          %v4946 = vpop.f32.mrf.mxu0
          %v4947 = vadd.f32 0.0, %v4946
          %v4948 = vpop.f32.mrf.mxu0
          %v4949 = vpop.f32.mrf.mxu0
          %v4950 = vadd.f32 0.0, %v4949
          %v4951 = vpop.f32.mrf.mxu0
          %4952 = vmatprep.mubr.bf16.mxu0 0
          %4953 = vmatmul.mubr.bf16.gmra.mxu0 %v4822
          %v4954 = vpop.f32.mrf.mxu0
          %v4955 = vadd.f32 0.0, %v4954
          %v4956 = vpop.f32.mrf.mxu0
          %v4957 = vpop.f32.mrf.mxu0
          %v4958 = vadd.f32 0.0, %v4957
          %v4959 = vpop.f32.mrf.mxu0
          %4960 = vdwg.mxu0
          %v4961 = vadd.f32 %v4931, %v1851
          %v4962 = vadd.f32 %v4934, %v1851
          %v4963 = vadd.f32 %v4939, %v1851
          %v4964 = vadd.f32 %v4942, %v1851
          %v4965 = vadd.f32 %v4947, %v1851
          %v4966 = vadd.f32 %v4950, %v1851
          %v4967 = vadd.f32 %v4955, %v1851
          %v4968 = vadd.f32 %v4958, %v1851
          %v4969 = vadd.f32 %v4795, %v4858
          %v4970 = vadd.f32 %v4798, %v4862
          %v4971 = vadd.f32 %v4801, %v4868
          %v4972 = vadd.f32 %v4804, %v4872
          %v4973 = vadd.f32 %v4807, %v4878
          %v4974 = vadd.f32 %v4810, %v4882
          %v4975 = vadd.f32 %v4813, %v4888
          %v4976 = vadd.f32 %v4816, %v4892
          %v4977 = vxor.u32 %v4969, 2147483648
          %v4978 = vxor.u32 %v4970, 2147483648
          %v4979 = vxor.u32 %v4971, 2147483648
          %v4980 = vxor.u32 %v4972, 2147483648
          %v4981 = vxor.u32 %v4973, 2147483648
          %v4982 = vxor.u32 %v4974, 2147483648
          %v4983 = vxor.u32 %v4975, 2147483648
          %v4984 = vxor.u32 %v4976, 2147483648
          %v4985 = vmul.f32 %v4977, 1.442695
          %v4986 = vpow.pop %v4985
          %v4987 = vmul.f32 %v4978, 1.442695
          %v4988 = vpow.pop %v4987
          %v4989 = vmul.f32 %v4979, 1.442695
          %v4990 = vpow.pop %v4989
          %v4991 = vmul.f32 %v4980, 1.442695
          %v4992 = vpow.pop %v4991
          %v4993 = vmul.f32 %v4981, 1.442695
          %v4994 = vpow.pop %v4993
          %v4995 = vmul.f32 %v4982, 1.442695
          %v4996 = vpow.pop %v4995
          %v4997 = vmul.f32 %v4983, 1.442695
          %v4998 = vpow.pop %v4997
          %v4999 = vmul.f32 %v4984, 1.442695
          %v5000 = vpow.pop %v4999
          %v5001 = vadd.f32 %v4986, 1.0
          %v5002 = vadd.f32 %v4988, 1.0
          %v5003 = vadd.f32 %v4990, 1.0
          %v5004 = vadd.f32 %v4992, 1.0
          %v5005 = vadd.f32 %v4994, 1.0
          %v5006 = vadd.f32 %v4996, 1.0
          %v5007 = vadd.f32 %v4998, 1.0
          %v5008 = vadd.f32 %v5000, 1.0
          %v5009 = vrcp.pop %v5001
          %v5010 = vmul.f32 1.0, %v5009
          %v5011 = vrcp.pop %v5002
          %v5012 = vmul.f32 1.0, %v5011
          %v5013 = vrcp.pop %v5003
          %v5014 = vmul.f32 1.0, %v5013
          %v5015 = vrcp.pop %v5004
          %v5016 = vmul.f32 1.0, %v5015
          %v5017 = vrcp.pop %v5005
          %v5018 = vmul.f32 1.0, %v5017
          %v5019 = vrcp.pop %v5006
          %v5020 = vmul.f32 1.0, %v5019
          %v5021 = vrcp.pop %v5007
          %v5022 = vmul.f32 1.0, %v5021
          %v5023 = vrcp.pop %v5008
          %v5024 = vmul.f32 1.0, %v5023
          %v5025 = vadd.f32 %v4796, %v4860
          %v5026 = vadd.f32 %v4799, %v4864
          %v5027 = vadd.f32 %v4802, %v4870
          %v5028 = vadd.f32 %v4805, %v4874
          %v5029 = vadd.f32 %v4808, %v4880
          %v5030 = vadd.f32 %v4811, %v4884
          %v5031 = vadd.f32 %v4814, %v4890
          %v5032 = vadd.f32 %v4817, %v4894
          %v5033 = vxor.u32 %v5025, 2147483648
          %v5034 = vxor.u32 %v5026, 2147483648
          %v5035 = vxor.u32 %v5027, 2147483648
          %v5036 = vxor.u32 %v5028, 2147483648
          %v5037 = vxor.u32 %v5029, 2147483648
          %v5038 = vxor.u32 %v5030, 2147483648
          %v5039 = vxor.u32 %v5031, 2147483648
          %v5040 = vxor.u32 %v5032, 2147483648
          %v5041 = vmul.f32 %v5033, 1.442695
          %v5042 = vpow.pop %v5041
          %v5043 = vmul.f32 %v5034, 1.442695
          %v5044 = vpow.pop %v5043
          %v5045 = vmul.f32 %v5035, 1.442695
          %v5046 = vpow.pop %v5045
          %v5047 = vmul.f32 %v5036, 1.442695
          %v5048 = vpow.pop %v5047
          %v5049 = vmul.f32 %v5037, 1.442695
          %v5050 = vpow.pop %v5049
          %v5051 = vmul.f32 %v5038, 1.442695
          %v5052 = vpow.pop %v5051
          %v5053 = vmul.f32 %v5039, 1.442695
          %v5054 = vpow.pop %v5053
          %v5055 = vmul.f32 %v5040, 1.442695
          %v5056 = vpow.pop %v5055
          %v5057 = vadd.f32 %v5042, 1.0
          %v5058 = vadd.f32 %v5044, 1.0
          %v5059 = vadd.f32 %v5046, 1.0
          %v5060 = vadd.f32 %v5048, 1.0
          %v5061 = vadd.f32 %v5050, 1.0
          %v5062 = vadd.f32 %v5052, 1.0
          %v5063 = vadd.f32 %v5054, 1.0
          %v5064 = vadd.f32 %v5056, 1.0
          %v5065 = vrcp.pop %v5057
          %v5066 = vmul.f32 1.0, %v5065
          %v5067 = vrcp.pop %v5058
          %v5068 = vmul.f32 1.0, %v5067
          %v5069 = vrcp.pop %v5059
          %v5070 = vmul.f32 1.0, %v5069
          %v5071 = vrcp.pop %v5060
          %v5072 = vmul.f32 1.0, %v5071
          %v5073 = vrcp.pop %v5061
          %v5074 = vmul.f32 1.0, %v5073
          %v5075 = vrcp.pop %v5062
          %v5076 = vmul.f32 1.0, %v5075
          %v5077 = vrcp.pop %v5063
          %v5078 = vmul.f32 1.0, %v5077
          %v5079 = vrcp.pop %v5064
          %v5080 = vmul.f32 1.0, %v5079
          %v5081 = vmul.f32 %v5010, %v4961
          %v5082 = vmul.f32 %v5012, %v4962
          %v5083 = vmul.f32 %v5014, %v4963
          %v5084 = vmul.f32 %v5016, %v4964
          %v5085 = vmul.f32 %v5018, %v4965
          %v5086 = vmul.f32 %v5020, %v4966
          %v5087 = vmul.f32 %v5022, %v4967
          %v5088 = vmul.f32 %v5024, %v4968
          %v5089 = vadd.f32 %v4797, %v5081
          %v5090 = vadd.f32 %v4800, %v5082
          %v5091 = vadd.f32 %v4803, %v5083
          %v5092 = vadd.f32 %v4806, %v5084
          %v5093 = vadd.f32 %v4809, %v5085
          %v5094 = vadd.f32 %v4812, %v5086
          %v5095 = vadd.f32 %v4815, %v5087
          %v5096 = vadd.f32 %v4818, %v5088
          %v5097 = vtanh.pop %v5089
          %v5098 = vtanh.pop %v5090
          %v5099 = vtanh.pop %v5091
          %v5100 = vtanh.pop %v5092
          %v5101 = vtanh.pop %v5093
          %v5102 = vtanh.pop %v5094
          %v5103 = vtanh.pop %v5095
          %v5104 = vtanh.pop %v5096
          %v5105 = vsub.f32 1.0, %v5066
          %v5106 = vsub.f32 1.0, %v5068
          %v5107 = vsub.f32 1.0, %v5070
          %v5108 = vsub.f32 1.0, %v5072
          %v5109 = vsub.f32 1.0, %v5074
          %v5110 = vsub.f32 1.0, %v5076
          %v5111 = vsub.f32 1.0, %v5078
          %v5112 = vsub.f32 1.0, %v5080
          %v5113 = vmul.f32 %v5105, %v5097
          %v5114 = vmul.f32 %v5106, %v5098
          %v5115 = vmul.f32 %v5107, %v5099
          %v5116 = vmul.f32 %v5108, %v5100
          %v5117 = vmul.f32 %v5109, %v5101
          %v5118 = vmul.f32 %v5110, %v5102
          %v5119 = vmul.f32 %v5111, %v5103
          %v5120 = vmul.f32 %v5112, %v5104
          %v5121 = vmul.f32 %v5066, %v4786
          %v5122 = vmul.f32 %v5068, %v4787
          %v5123 = vmul.f32 %v5070, %v4788
          %v5124 = vmul.f32 %v5072, %v4789
          %v5125 = vmul.f32 %v5074, %v4790
          %v5126 = vmul.f32 %v5076, %v4791
          %v5127 = vmul.f32 %v5078, %v4792
          %v5128 = vmul.f32 %v5080, %v4793
          %v5129 = vadd.f32 %v5113, %v5121
          %v5130 = vadd.f32 %v5114, %v5122
          %v5131 = vadd.f32 %v5115, %v5123
          %v5132 = vadd.f32 %v5116, %v5124
          %v5133 = vadd.f32 %v5117, %v5125
          %v5134 = vadd.f32 %v5118, %v5126
          %v5135 = vadd.f32 %v5119, %v5127
          %v5136 = vadd.f32 %v5120, %v5128
          %s5137 = sadd.s32 %s608, 7
          %v5138 = vstv %s5137
          %vm5139 = vcmp.gt.s32.totalorder %v1806, %v5138
          %vm5140 = vcmp.gt.s32.totalorder %v1807, %v5138
          %vm5141 = vcmp.gt.s32.totalorder %v1808, %v5138
          %vm5142 = vcmp.gt.s32.totalorder %v1809, %v5138
          %vm5143 = vcmp.gt.s32.totalorder %v1810, %v5138
          %vm5144 = vcmp.gt.s32.totalorder %v1811, %v5138
          %vm5145 = vcmp.gt.s32.totalorder %v1812, %v5138
          %vm5146 = vcmp.gt.s32.totalorder %v1813, %v5138
          %v5147 = vsel %vm5139, 1, 0
          %v5148 = vsel %vm5140, 1, 0
          %v5149 = vsel %vm5141, 1, 0
          %v5150 = vsel %vm5142, 1, 0
          %v5151 = vsel %vm5143, 1, 0
          %v5152 = vsel %vm5144, 1, 0
          %v5153 = vsel %vm5145, 1, 0
          %v5154 = vsel %vm5146, 1, 0
          %5155 = vset.pattern.permute.xlu0 0
          %5156 = vperm.xlu0 %5155, %v5147
          %v5157 = vpop.permute.xlu0 %5156
          %5158 = vset.pattern.permute.xlu0 0
          %5159 = vperm.xlu0 %5158, %v5148
          %v5160 = vpop.permute.xlu0 %5159
          %5161 = vset.pattern.permute.xlu0 0
          %5162 = vperm.xlu0 %5161, %v5149
          %v5163 = vpop.permute.xlu0 %5162
          %5164 = vset.pattern.permute.xlu0 0
          %5165 = vperm.xlu0 %5164, %v5150
          %v5166 = vpop.permute.xlu0 %5165
          %5167 = vset.pattern.permute.xlu0 0
          %5168 = vperm.xlu0 %5167, %v5151
          %v5169 = vpop.permute.xlu0 %5168
          %5170 = vset.pattern.permute.xlu0 0
          %5171 = vperm.xlu0 %5170, %v5152
          %v5172 = vpop.permute.xlu0 %5171
          %5173 = vset.pattern.permute.xlu0 0
          %5174 = vperm.xlu0 %5173, %v5153
          %v5175 = vpop.permute.xlu0 %5174
          %5176 = vset.pattern.permute.xlu0 0
          %5177 = vperm.xlu0 %5176, %v5154
          %v5178 = vpop.permute.xlu0 %5177
          %vm5179 = vcmp.eq.s32.totalorder %v5157, 1
          %vm5180 = vcmp.eq.s32.totalorder %v5160, 1
          %vm5181 = vcmp.eq.s32.totalorder %v5163, 1
          %vm5182 = vcmp.eq.s32.totalorder %v5166, 1
          %vm5183 = vcmp.eq.s32.totalorder %v5169, 1
          %vm5184 = vcmp.eq.s32.totalorder %v5172, 1
          %vm5185 = vcmp.eq.s32.totalorder %v5175, 1
          %vm5186 = vcmp.eq.s32.totalorder %v5178, 1
          %v5187 = vsel %vm5179, %v5129, %v4786
          %v5188 = vsel %vm5180, %v5130, %v4787
          %v5189 = vsel %vm5181, %v5131, %v4788
          %v5190 = vsel %vm5182, %v5132, %v4789
          %v5191 = vsel %vm5183, %v5133, %v4790
          %v5192 = vsel %vm5184, %v5134, %v4791
          %v5193 = vsel %vm5185, %v5135, %v4792
          %v5194 = vsel %vm5186, %v5136, %v4793
          %5195 = vst [vmem:[%s585] sm:$0xff] %v5187
          %5196 = vst [vmem:[%s585 + $0x8] sm:$0xff] %v5188
          %5197 = vst [vmem:[%s585 + $0x10] sm:$0xff] %v5189
          %5198 = vst [vmem:[%s585 + $0x18] sm:$0xff] %v5190
          %5199 = vst [vmem:[%s585 + $0x20] sm:$0xff] %v5191
          %5200 = vst [vmem:[%s585 + $0x28] sm:$0xff] %v5192
          %5201 = vst [vmem:[%s585 + $0x30] sm:$0xff] %v5193
          %5202 = vst [vmem:[%s585 + $0x38] sm:$0xff] %v5194
        $region93: #{tpu_custom_call.1} parent=80 // pred_fallthru
          _
        %s5203 = sand.u32 %s185, 1
        %s5204 = scalar_lea.sflag [#allocation7], %s5203
        %s5205 = sand.u32 %s185, 1
        %s5206 = smul.addr %s5205, 64
        %s5207 = scalar_lea.vmem [#allocation6], %s5206
        // Predicated region
        $region94: #{tpu_custom_call.1} parent=80 // pred_check
          %p5208 = pneg %p195
        $region95: #{tpu_custom_call.1} parent=80 // pred_check_branch
          %5210 = sbr.rel (%p5208) target = $region97
        $region96: #{tpu_custom_call.1} parent=80 // pred_region
          %s5211 = smul.u32 8, %s31
          %s5213 = ssub.s32 1024, 1024
          %5214 = vsyncadd %s5204, %s5213
          %s5215 = smul.addr %s5211, 128
          %s5216 = scalar_lea.hbm %s7, %s5215
          %s5217 = sshll.u32 %s5207, 4
          %s5218 = int_to_ptr.vmem [resolvable:$true] %s5217
          %5223 = dma.vmem_to_hbm [thread:$0]  %s5218, 1024, %s5216, %s5204, 128, 128, 8
        $region97: #{tpu_custom_call.1} parent=80 // pred_fallthru
          _
      $region81: #{tpu_custom_call.1} parent=5 // pred_fallthru
        _
      %p5224 = scmp.le.s32.totalorder 2, %s22
      // Predicated region
      $region98: #{tpu_custom_call.1} parent=5 // pred_check
        %p5225 = pneg %p5224
      $region99: #{tpu_custom_call.1} parent=5 // pred_check_branch
        %5227 = sbr.rel (%p5225) target = $region101
      $region100: #{tpu_custom_call.1} parent=5 // pred_region
        %s5228 = ssub.s32 %s22, 2
        // Predicated region
        $region102: #{tpu_custom_call.1} parent=100 // pred_check
          %p5229 = pneg %p201
        $region103: #{tpu_custom_call.1} parent=100 // pred_check_branch
          %5231 = sbr.rel (%p5229) target = $region105
        $region104: #{tpu_custom_call.1} parent=100 // pred_region
          %s5232 = sand.u32 %s186, 1
          %s5233 = scalar_lea.sflag [#allocation7], %s5232
          %s5234 = sand.u32 %s186, 1
          %s5235 = smul.addr %s5234, 64
          %s5236 = scalar_lea.vmem [#allocation6], %s5235
          %5237 = dma.done %s5233, 1024
        $region105: #{tpu_custom_call.1} parent=100 // pred_fallthru
          _
      $region101: #{tpu_custom_call.1} parent=5 // pred_fallthru
        _
    $region6: #{tpu_custom_call.1} parent=1 // loop_footer
      %s26 = sadd.s32 1, %s22
    $region7: #{tpu_custom_call.1} parent=1 // loop_footer_branch
      %21 = sbr.rel target = $region3
    $region8: #{tpu_custom_call.1} parent=1 // loop_exit
      _
    %5238 = vsyncpa [#allocation7], 1
    %s5239 = scalar_lea.sflag [#allocation7], 1
    %5240 = vsyncpa %s5239, 1

</llo_original>
